<compile_context>
chip_gen: v6e
topology: v6e:2x2x1
jax: 0.10.0
libtpu: 0.0.40
codegen_flags: <defaults>
</compile_context>

<pallas_src>
import functools

import jax
import jax.numpy as jnp
from jax.experimental import pallas as pl
from jax.experimental.pallas import tpu as pltpu

_VMEM_LIMIT = 48 * 1024 * 1024  # safe on v7x (64 MiB/TC) and v5e/v6e (128 MiB)


def _largest_divisor_leq(n, cap):
    cap = max(1, min(cap, n))
    for d in range(cap, 0, -1):
        if n % d == 0:
            return d
    return 1


# ---------------------- fused 3x3 conv + bias + ReLU (im2col in VMEM) ----------------------

def _conv3x3_kernel(x_ref, w_ref, b_ref, o_ref, patch_ref, *, th, W, Cin):
    # x_ref:     (1, H+2, W+2, Cin) bf16 -- whole padded image of batch n (resident across row tiles)
    # w_ref:     (9*Cin, Cout)      bf16 -- rows ordered (kh, kw, cin)
    # b_ref:     (1, Cout)          f32
    # o_ref:     (1, th*W, Cout)    bf16 -- rows = (h_local * W + w)
    # patch_ref: (th*W, 9*Cin)      bf16 VMEM scratch (im2col built in VMEM, not HBM)
    r0 = pl.program_id(1) * th
    for i in range(th):
        for kh in range(3):
            for kw in range(3):
                t = kh * 3 + kw
                patch_ref[i * W:(i + 1) * W, t * Cin:(t + 1) * Cin] = (
                    x_ref[0, r0 + i + kh, kw:kw + W, :])
    acc = jnp.dot(patch_ref[...], w_ref[...], preferred_element_type=jnp.float32)
    acc = acc + b_ref[...]
    o_ref[0] = jnp.maximum(acc, 0.0).astype(o_ref.dtype)


def conv3x3_relu_pallas(x, w, b):
    """3x3 conv, stride 1, pad 1, + ReLU.  x: NHWC, w: (9*Cin, Cout) bf16, b: (1, Cout) f32."""
    N, H, W, Cin = x.shape
    Cout = w.shape[1]
    x = x.astype(w.dtype)
    xp = jnp.pad(x, ((0, 0), (1, 1), (1, 1), (0, 0)))  # single HBM copy, read once per image

    # Row-tile so the matmul M dim (th*W) is ~256; keep the tile (8,·)-legal.
    th = _largest_divisor_leq(H, max(1, 256 // W))
    if (th * W) % 8 != 0:
        th = H  # block then equals the full (H*W) dim -> always legal
    grid = (N, H // th)

    kernel = functools.partial(_conv3x3_kernel, th=th, W=W, Cin=Cin)
    # TODO(synk): Cout=64 layers could pad the output lane dim to 128 for unmasked stores.
    out = pl.pallas_call(
        kernel,
        out_shape=jax.ShapeDtypeStruct((N, H * W, Cout), jnp.bfloat16),
        grid_spec=pltpu.PrefetchScalarGridSpec(
            num_scalar_prefetch=0,
            grid=grid,
            in_specs=[
                pl.BlockSpec((1, H + 2, W + 2, Cin), lambda n, r: (n, 0, 0, 0)),
                pl.BlockSpec((9 * Cin, Cout), lambda n, r: (0, 0)),
                pl.BlockSpec((1, Cout), lambda n, r: (0, 0)),
            ],
            out_specs=pl.BlockSpec((1, th * W, Cout), lambda n, r: (n, r, 0)),
            scratch_shapes=[pltpu.VMEM((th * W, 9 * Cin), jnp.bfloat16)]),
        compiler_params=pltpu.CompilerParams(
            dimension_semantics=("parallel", "arbitrary"),
            vmem_limit_bytes=_VMEM_LIMIT),
    )(xp, w, b)
    return out.reshape(N, H, W, Cout)


# ----------------------------- fused linear (+ bias, optional ReLU) -----------------------------

def _linear_kernel(x_ref, w_ref, b_ref, o_ref, *, apply_relu):
    k = pl.program_id(1)

    @pl.when(k == 0)
    def _():
        o_ref[...] = jnp.broadcast_to(b_ref[...], o_ref.shape)

    o_ref[...] += jnp.dot(x_ref[...], w_ref[...], preferred_element_type=jnp.float32)

    if apply_relu:
        @pl.when(k == pl.num_programs(1) - 1)
        def _():
            o_ref[...] = jnp.maximum(o_ref[...], 0.0)


def _pick_tk(K, N, itemsize=2, budget=8 * 1024 * 1024):
    """Largest 128-multiple divisor of K whose weight block stays <= budget bytes."""
    if K * N * itemsize <= budget:
        return K
    cap = max(128, budget // (N * itemsize))
    best = 0
    for tk in range(128, cap + 1, 128):
        if K % tk == 0:
            best = tk
    return best if best > 0 else K


def linear_pallas(x, w, b, *, relu):
    """y = relu?(x @ w + b).  x:(M,K), w:(K,N) bf16, b:(1,N) f32.  Output f32."""
    M, K = x.shape
    K2, N = w.shape
    assert K == K2
    x = x.astype(w.dtype)

    tm = M if M <= 256 else _largest_divisor_leq(M, 256)
    if tm != M and tm % 8 != 0:
        tm = M
    tk = _pick_tk(K, N, itemsize=jnp.dtype(w.dtype).itemsize)
    assert M % tm == 0 and K % tk == 0

    kernel = functools.partial(_linear_kernel, apply_relu=relu)
    # TODO(synk): pipeline_mode=pl.Buffered(3) on the weight spec could help weight-streaming FCs.
    return pl.pallas_call(
        kernel,
        out_shape=jax.ShapeDtypeStruct((M, N), jnp.float32),
        grid_spec=pltpu.PrefetchScalarGridSpec(
            num_scalar_prefetch=0,
            grid=(M // tm, K // tk),
            in_specs=[pl.BlockSpec((tm, tk), lambda m, k: (m, k)),
                      pl.BlockSpec((tk, N), lambda m, k: (k, 0)),
                      pl.BlockSpec((1, N), lambda m, k: (0, 0))],
            out_specs=pl.BlockSpec((tm, N), lambda m, k: (m, 0))),
        compiler_params=pltpu.CompilerParams(
            dimension_semantics=("parallel", "arbitrary"),
            vmem_limit_bytes=_VMEM_LIMIT),
    )(x, w, b)


# -------------------------------------- 2x2 max pool --------------------------------------

def _maxpool_kernel(x_ref, o_ref, *, tr, C):
    # x_ref: (1, 2*tr, W/2, 2*C)  (two W-neighbours folded into lanes)
    # o_ref: (1, tr,   W/2,   C)
    for i in range(tr):
        top = x_ref[0, 2 * i]
        bot = x_ref[0, 2 * i + 1]
        m = jnp.maximum(top, bot)                       # max over the two rows
        o_ref[0, i] = jnp.maximum(m[:, :C], m[:, C:])   # max over the two columns


def maxpool2x2_pallas(x):
    """2x2 / stride-2 max pool (NHWC), single-input pipelined kernel."""
    N, H, W, C = x.shape
    Hh, Wh = H // 2, W // 2
    xr = x.reshape(N, H, Wh, 2 * C)        # free metadata reshape: folds W pairs into lanes
    tr = _largest_divisor_leq(Hh, 8)
    kernel = functools.partial(_maxpool_kernel, tr=tr, C=C)
    return pl.pallas_call(
        kernel,
        out_shape=jax.ShapeDtypeStruct((N, Hh, Wh, C), x.dtype),
        grid=(N, Hh // tr),
        in_specs=[pl.BlockSpec((1, 2 * tr, Wh, 2 * C), lambda n, r: (n, r, 0, 0))],
        out_specs=pl.BlockSpec((1, tr, Wh, C), lambda n, r: (n, r, 0, 0)),
        compiler_params=pltpu.CompilerParams(
            dimension_semantics=("parallel", "arbitrary"),
            vmem_limit_bytes=_VMEM_LIMIT),
    )(xr)


# ------------------------------------------ glue ------------------------------------------

def adaptive_avg_pool_nhwc(x, out_h, out_w):
    """torch.nn.AdaptiveAvgPool2d semantics (static bins), NHWC.  Pure data movement / tiny means."""
    N, H, W, C = x.shape
    rows = []
    for i in range(out_h):
        h0, h1 = (i * H) // out_h, -(-((i + 1) * H) // out_h)
        cols = []
        for j in range(out_w):
            w0, w1 = (j * W) // out_w, -(-((j + 1) * W) // out_w)
            cols.append(jnp.mean(x[:, h0:h1, w0:w1, :].astype(jnp.float32), axis=(1, 2)))
        rows.append(jnp.stack(cols, axis=1))
    return jnp.stack(rows, axis=1).astype(x.dtype)   # (N, out_h, out_w, C)


# ------------------------------------------ model ------------------------------------------

VGG16_CFG = [64, 64, "M", 128, 128, "M", 256, 256, 256, "M",
             512, 512, 512, "M", 512, 512, 512, "M"]


def init_params(key):
    """Deterministic synthetic VGG16 weights (He init), kernel-ready layouts:
    conv: (9*Cin, Cout) bf16, rows in (kh, kw, cin) order; fc: (in, out) bf16.
    FC1 rows follow NHWC flatten order (h, w, c) so no transpose is needed at runtime."""
    params = {"convs": [], "fcs": []}
    cin = 3
    for v in VGG16_CFG:
        if v == "M":
            continue
        key, k1 = jax.random.split(key)
        fan_in = 9 * cin
        w = (jax.random.normal(k1, (9 * cin, v), jnp.float32)
             * jnp.sqrt(2.0 / fan_in)).astype(jnp.bfloat16)
        params["convs"].append((w, jnp.zeros((1, v), jnp.float32)))
        cin = v
    for (din, dout) in [(512 * 7 * 7, 4096), (4096, 4096), (4096, 10)]:
        key, k1 = jax.random.split(key)
        w = (jax.random.normal(k1, (din, dout), jnp.float32)
             * jnp.sqrt(2.0 / din)).astype(jnp.bfloat16)
        params["fcs"].append((w, jnp.zeros((1, dout), jnp.float32)))
    return params


def beer_model_forward(params, x_nchw):
    x = jnp.transpose(x_nchw, (0, 2, 3, 1)).astype(jnp.bfloat16)   # NCHW -> NHWC, bf16 activations
    ci = 0
    for v in VGG16_CFG:
        if v == "M":
            x = maxpool2x2_pallas(x)
        else:
            w, b = params["convs"][ci]
            x = conv3x3_relu_pallas(x, w, b)
            ci += 1
    x = adaptive_avg_pool_nhwc(x, 7, 7)             # (N, 7, 7, 512)
    n = x.shape[0]
    x = x.reshape(n, -1)                            # NHWC flatten; FC1 rows match this order

    w1, b1 = params["fcs"][0]
    x = linear_pallas(x, w1, b1, relu=True)
    # TODO(synk): nn.Dropout(0.5) is identity in eval mode; training-mode dropout not implemented.
    w2, b2 = params["fcs"][1]
    x = linear_pallas(x, w2, b2, relu=True)
    w3, b3 = params["fcs"][2]
    x = linear_pallas(x, w3, b3, relu=False)
    return x                                        # (N, 10) f32


if __name__ == "__main__":
    key = jax.random.PRNGKey(0)
    kp, kx = jax.random.split(key)
    params = init_params(kp)
    # Small NCHW input (>=32 spatial so the 5 maxpools stay valid).
    x = jax.random.normal(kx, (2, 3, 32, 32), jnp.float32)
    out = beer_model_forward(params, x)
    out = jax.block_until_ready(out)
    assert out.shape == (2, 10) and out.dtype == jnp.float32
    print("KERNEL_OK")
</pallas_src>

<mosaic_0001>
module attributes {stable_mosaic.version = 11 : i64} {
  func.func @_conv3x3_kernel(%arg0: i32, %arg1: i32, %arg2: memref<1x34x34x3xbf16, #tpu.memory_space<vmem>>, %arg3: memref<27x64xbf16, #tpu.memory_space<vmem>>, %arg4: memref<1x64xf32, #tpu.memory_space<vmem>>, %arg5: memref<1x256x64xbf16, #tpu.memory_space<vmem>>, %arg6: memref<256x27xbf16, #tpu.memory_space<vmem>>) attributes {dimension_semantics = [#tpu.dimension_semantics<parallel>, #tpu.dimension_semantics<arbitrary>], iteration_bounds = array<i64: 2, 4>, scalar_prefetch = 0 : i64, scratch_operands = 1 : i64, tpu.core_type = #tpu.core_type<tc>, window_params = [{transform_indices = @transform_0, window_bounds = array<i64: 1, 34, 34, 3>}, {pipeline_mode = #tpu.pipeline_mode<synchronous>, transform_indices = @transform_1, window_bounds = array<i64: 27, 64>}, {pipeline_mode = #tpu.pipeline_mode<synchronous>, transform_indices = @transform_2, window_bounds = array<i64: 1, 64>}, {transform_indices = @transform_3, window_bounds = array<i64: 1, 256, 64>}]} {
    %c8_i32 = arith.constant 8 : i32
    %0 = arith.muli %arg1, %c8_i32 : i32
    %c0_i32 = arith.constant 0 : i32
    %1 = arith.addi %0, %c0_i32 : i32
    %c0_i32_0 = arith.constant 0 : i32
    %2 = arith.addi %1, %c0_i32_0 : i32
    %c0 = arith.constant 0 : index
    %3 = arith.index_cast %2 : i32 to index
    %c0_1 = arith.constant 0 : index
    %c0_2 = arith.constant 0 : index
    %4 = vector.load %arg2[%c0, %3, %c0_1, %c0_2] : memref<1x34x34x3xbf16, #tpu.memory_space<vmem>>, vector<1x1x32x3xbf16>
    %5 = vector.shape_cast %4 : vector<1x1x32x3xbf16> to vector<32x3xbf16>
    %c0_3 = arith.constant 0 : index
    %c0_4 = arith.constant 0 : index
    %6 = vector.load %arg6[%c0_3, %c0_4] : memref<256x27xbf16, #tpu.memory_space<vmem>>, vector<32x3xbf16>
    tpu.vector_store %arg6[%c0_3, %c0_4], %5 {strides = array<i32>} : memref<256x27xbf16, #tpu.memory_space<vmem>>, vector<32x3xbf16>,
    %c0_i32_5 = arith.constant 0 : i32
    %7 = arith.addi %0, %c0_i32_5 : i32
    %c0_i32_6 = arith.constant 0 : i32
    %8 = arith.addi %7, %c0_i32_6 : i32
    %c0_7 = arith.constant 0 : index
    %9 = arith.index_cast %8 : i32 to index
    %c1 = arith.constant 1 : index
    %c0_8 = arith.constant 0 : index
    %10 = vector.load %arg2[%c0_7, %9, %c1, %c0_8] : memref<1x34x34x3xbf16, #tpu.memory_space<vmem>>, vector<1x1x32x3xbf16>
    %11 = vector.shape_cast %10 : vector<1x1x32x3xbf16> to vector<32x3xbf16>
    %c0_9 = arith.constant 0 : index
    %c3 = arith.constant 3 : index
    %12 = vector.load %arg6[%c0_9, %c3] : memref<256x27xbf16, #tpu.memory_space<vmem>>, vector<32x3xbf16>
    tpu.vector_store %arg6[%c0_9, %c3], %11 {strides = array<i32>} : memref<256x27xbf16, #tpu.memory_space<vmem>>, vector<32x3xbf16>,
    %c0_i32_10 = arith.constant 0 : i32
    %13 = arith.addi %0, %c0_i32_10 : i32
    %c0_i32_11 = arith.constant 0 : i32
    %14 = arith.addi %13, %c0_i32_11 : i32
    %c0_12 = arith.constant 0 : index
    %15 = arith.index_cast %14 : i32 to index
    %c2 = arith.constant 2 : index
    %c0_13 = arith.constant 0 : index
    %16 = vector.load %arg2[%c0_12, %15, %c2, %c0_13] : memref<1x34x34x3xbf16, #tpu.memory_space<vmem>>, vector<1x1x32x3xbf16>
    %17 = vector.shape_cast %16 : vector<1x1x32x3xbf16> to vector<32x3xbf16>
    %c0_14 = arith.constant 0 : index
    %c6 = arith.constant 6 : index
    %18 = vector.load %arg6[%c0_14, %c6] : memref<256x27xbf16, #tpu.memory_space<vmem>>, vector<32x3xbf16>
    tpu.vector_store %arg6[%c0_14, %c6], %17 {strides = array<i32>} : memref<256x27xbf16, #tpu.memory_space<vmem>>, vector<32x3xbf16>,
    %c0_i32_15 = arith.constant 0 : i32
    %19 = arith.addi %0, %c0_i32_15 : i32
    %c1_i32 = arith.constant 1 : i32
    %20 = arith.addi %19, %c1_i32 : i32
    %c0_16 = arith.constant 0 : index
    %21 = arith.index_cast %20 : i32 to index
    %c0_17 = arith.constant 0 : index
    %c0_18 = arith.constant 0 : index
    %22 = vector.load %arg2[%c0_16, %21, %c0_17, %c0_18] : memref<1x34x34x3xbf16, #tpu.memory_space<vmem>>, vector<1x1x32x3xbf16>
    %23 = vector.shape_cast %22 : vector<1x1x32x3xbf16> to vector<32x3xbf16>
    %c0_19 = arith.constant 0 : index
    %c9 = arith.constant 9 : index
    %24 = vector.load %arg6[%c0_19, %c9] : memref<256x27xbf16, #tpu.memory_space<vmem>>, vector<32x3xbf16>
    tpu.vector_store %arg6[%c0_19, %c9], %23 {strides = array<i32>} : memref<256x27xbf16, #tpu.memory_space<vmem>>, vector<32x3xbf16>,
    %c0_i32_20 = arith.constant 0 : i32
    %25 = arith.addi %0, %c0_i32_20 : i32
    %c1_i32_21 = arith.constant 1 : i32
    %26 = arith.addi %25, %c1_i32_21 : i32
    %c0_22 = arith.constant 0 : index
    %27 = arith.index_cast %26 : i32 to index
    %c1_23 = arith.constant 1 : index
    %c0_24 = arith.constant 0 : index
    %28 = vector.load %arg2[%c0_22, %27, %c1_23, %c0_24] : memref<1x34x34x3xbf16, #tpu.memory_space<vmem>>, vector<1x1x32x3xbf16>
    %29 = vector.shape_cast %28 : vector<1x1x32x3xbf16> to vector<32x3xbf16>
    %c0_25 = arith.constant 0 : index
    %c12 = arith.constant 12 : index
    %30 = vector.load %arg6[%c0_25, %c12] : memref<256x27xbf16, #tpu.memory_space<vmem>>, vector<32x3xbf16>
    tpu.vector_store %arg6[%c0_25, %c12], %29 {strides = array<i32>} : memref<256x27xbf16, #tpu.memory_space<vmem>>, vector<32x3xbf16>,
    %c0_i32_26 = arith.constant 0 : i32
    %31 = arith.addi %0, %c0_i32_26 : i32
    %c1_i32_27 = arith.constant 1 : i32
    %32 = arith.addi %31, %c1_i32_27 : i32
    %c0_28 = arith.constant 0 : index
    %33 = arith.index_cast %32 : i32 to index
    %c2_29 = arith.constant 2 : index
    %c0_30 = arith.constant 0 : index
    %34 = vector.load %arg2[%c0_28, %33, %c2_29, %c0_30] : memref<1x34x34x3xbf16, #tpu.memory_space<vmem>>, vector<1x1x32x3xbf16>
    %35 = vector.shape_cast %34 : vector<1x1x32x3xbf16> to vector<32x3xbf16>
    %c0_31 = arith.constant 0 : index
    %c15 = arith.constant 15 : index
    %36 = vector.load %arg6[%c0_31, %c15] : memref<256x27xbf16, #tpu.memory_space<vmem>>, vector<32x3xbf16>
    tpu.vector_store %arg6[%c0_31, %c15], %35 {strides = array<i32>} : memref<256x27xbf16, #tpu.memory_space<vmem>>, vector<32x3xbf16>,
    %c0_i32_32 = arith.constant 0 : i32
    %37 = arith.addi %0, %c0_i32_32 : i32
    %c2_i32 = arith.constant 2 : i32
    %38 = arith.addi %37, %c2_i32 : i32
    %c0_33 = arith.constant 0 : index
    %39 = arith.index_cast %38 : i32 to index
    %c0_34 = arith.constant 0 : index
    %c0_35 = arith.constant 0 : index
    %40 = vector.load %arg2[%c0_33, %39, %c0_34, %c0_35] : memref<1x34x34x3xbf16, #tpu.memory_space<vmem>>, vector<1x1x32x3xbf16>
    %41 = vector.shape_cast %40 : vector<1x1x32x3xbf16> to vector<32x3xbf16>
    %c0_36 = arith.constant 0 : index
    %c18 = arith.constant 18 : index
    %42 = vector.load %arg6[%c0_36, %c18] : memref<256x27xbf16, #tpu.memory_space<vmem>>, vector<32x3xbf16>
    tpu.vector_store %arg6[%c0_36, %c18], %41 {strides = array<i32>} : memref<256x27xbf16, #tpu.memory_space<vmem>>, vector<32x3xbf16>,
    %c0_i32_37 = arith.constant 0 : i32
    %43 = arith.addi %0, %c0_i32_37 : i32
    %c2_i32_38 = arith.constant 2 : i32
    %44 = arith.addi %43, %c2_i32_38 : i32
    %c0_39 = arith.constant 0 : index
    %45 = arith.index_cast %44 : i32 to index
    %c1_40 = arith.constant 1 : index
    %c0_41 = arith.constant 0 : index
    %46 = vector.load %arg2[%c0_39, %45, %c1_40, %c0_41] : memref<1x34x34x3xbf16, #tpu.memory_space<vmem>>, vector<1x1x32x3xbf16>
    %47 = vector.shape_cast %46 : vector<1x1x32x3xbf16> to vector<32x3xbf16>
    %c0_42 = arith.constant 0 : index
    %c21 = arith.constant 21 : index
    %48 = vector.load %arg6[%c0_42, %c21] : memref<256x27xbf16, #tpu.memory_space<vmem>>, vector<32x3xbf16>
    tpu.vector_store %arg6[%c0_42, %c21], %47 {strides = array<i32>} : memref<256x27xbf16, #tpu.memory_space<vmem>>, vector<32x3xbf16>,
    %c0_i32_43 = arith.constant 0 : i32
    %49 = arith.addi %0, %c0_i32_43 : i32
    %c2_i32_44 = arith.constant 2 : i32
    %50 = arith.addi %49, %c2_i32_44 : i32
    %c0_45 = arith.constant 0 : index
    %51 = arith.index_cast %50 : i32 to index
    %c2_46 = arith.constant 2 : index
    %c0_47 = arith.constant 0 : index
    %52 = vector.load %arg2[%c0_45, %51, %c2_46, %c0_47] : memref<1x34x34x3xbf16, #tpu.memory_space<vmem>>, vector<1x1x32x3xbf16>
    %53 = vector.shape_cast %52 : vector<1x1x32x3xbf16> to vector<32x3xbf16>
    %c0_48 = arith.constant 0 : index
    %c24 = arith.constant 24 : index
    %54 = vector.load %arg6[%c0_48, %c24] : memref<256x27xbf16, #tpu.memory_space<vmem>>, vector<32x3xbf16>
    tpu.vector_store %arg6[%c0_48, %c24], %53 {strides = array<i32>} : memref<256x27xbf16, #tpu.memory_space<vmem>>, vector<32x3xbf16>,
    %c1_i32_49 = arith.constant 1 : i32
    %55 = arith.addi %0, %c1_i32_49 : i32
    %c0_i32_50 = arith.constant 0 : i32
    %56 = arith.addi %55, %c0_i32_50 : i32
    %c0_51 = arith.constant 0 : index
    %57 = arith.index_cast %56 : i32 to index
    %c0_52 = arith.constant 0 : index
    %c0_53 = arith.constant 0 : index
    %58 = vector.load %arg2[%c0_51, %57, %c0_52, %c0_53] : memref<1x34x34x3xbf16, #tpu.memory_space<vmem>>, vector<1x1x32x3xbf16>
    %59 = vector.shape_cast %58 : vector<1x1x32x3xbf16> to vector<32x3xbf16>
    %c32 = arith.constant 32 : index
    %c0_54 = arith.constant 0 : index
    %60 = vector.load %arg6[%c32, %c0_54] : memref<256x27xbf16, #tpu.memory_space<vmem>>, vector<32x3xbf16>
    tpu.vector_store %arg6[%c32, %c0_54], %59 {strides = array<i32>} : memref<256x27xbf16, #tpu.memory_space<vmem>>, vector<32x3xbf16>,
    %c1_i32_55 = arith.constant 1 : i32
    %61 = arith.addi %0, %c1_i32_55 : i32
    %c0_i32_56 = arith.constant 0 : i32
    %62 = arith.addi %61, %c0_i32_56 : i32
    %c0_57 = arith.constant 0 : index
    %63 = arith.index_cast %62 : i32 to index
    %c1_58 = arith.constant 1 : index
    %c0_59 = arith.constant 0 : index
    %64 = vector.load %arg2[%c0_57, %63, %c1_58, %c0_59] : memref<1x34x34x3xbf16, #tpu.memory_space<vmem>>, vector<1x1x32x3xbf16>
    %65 = vector.shape_cast %64 : vector<1x1x32x3xbf16> to vector<32x3xbf16>
    %c32_60 = arith.constant 32 : index
    %c3_61 = arith.constant 3 : index
    %66 = vector.load %arg6[%c32_60, %c3_61] : memref<256x27xbf16, #tpu.memory_space<vmem>>, vector<32x3xbf16>
    tpu.vector_store %arg6[%c32_60, %c3_61], %65 {strides = array<i32>} : memref<256x27xbf16, #tpu.memory_space<vmem>>, vector<32x3xbf16>,
    %c1_i32_62 = arith.constant 1 : i32
    %67 = arith.addi %0, %c1_i32_62 : i32
    %c0_i32_63 = arith.constant 0 : i32
    %68 = arith.addi %67, %c0_i32_63 : i32
    %c0_64 = arith.constant 0 : index
    %69 = arith.index_cast %68 : i32 to index
    %c2_65 = arith.constant 2 : index
    %c0_66 = arith.constant 0 : index
    %70 = vector.load %arg2[%c0_64, %69, %c2_65, %c0_66] : memref<1x34x34x3xbf16, #tpu.memory_space<vmem>>, vector<1x1x32x3xbf16>
    %71 = vector.shape_cast %70 : vector<1x1x32x3xbf16> to vector<32x3xbf16>
    %c32_67 = arith.constant 32 : index
    %c6_68 = arith.constant 6 : index
    %72 = vector.load %arg6[%c32_67, %c6_68] : memref<256x27xbf16, #tpu.memory_space<vmem>>, vector<32x3xbf16>
    tpu.vector_store %arg6[%c32_67, %c6_68], %71 {strides = array<i32>} : memref<256x27xbf16, #tpu.memory_space<vmem>>, vector<32x3xbf16>,
    %c1_i32_69 = arith.constant 1 : i32
    %73 = arith.addi %0, %c1_i32_69 : i32
    %c1_i32_70 = arith.constant 1 : i32
    %74 = arith.addi %73, %c1_i32_70 : i32
    %c0_71 = arith.constant 0 : index
    %75 = arith.index_cast %74 : i32 to index
    %c0_72 = arith.constant 0 : index
    %c0_73 = arith.constant 0 : index
    %76 = vector.load %arg2[%c0_71, %75, %c0_72, %c0_73] : memref<1x34x34x3xbf16, #tpu.memory_space<vmem>>, vector<1x1x32x3xbf16>
    %77 = vector.shape_cast %76 : vector<1x1x32x3xbf16> to vector<32x3xbf16>
    %c32_74 = arith.constant 32 : index
    %c9_75 = arith.constant 9 : index
    %78 = vector.load %arg6[%c32_74, %c9_75] : memref<256x27xbf16, #tpu.memory_space<vmem>>, vector<32x3xbf16>
    tpu.vector_store %arg6[%c32_74, %c9_75], %77 {strides = array<i32>} : memref<256x27xbf16, #tpu.memory_space<vmem>>, vector<32x3xbf16>,
    %c1_i32_76 = arith.constant 1 : i32
    %79 = arith.addi %0, %c1_i32_76 : i32
    %c1_i32_77 = arith.constant 1 : i32
    %80 = arith.addi %79, %c1_i32_77 : i32
    %c0_78 = arith.constant 0 : index
    %81 = arith.index_cast %80 : i32 to index
    %c1_79 = arith.constant 1 : index
    %c0_80 = arith.constant 0 : index
    %82 = vector.load %arg2[%c0_78, %81, %c1_79, %c0_80] : memref<1x34x34x3xbf16, #tpu.memory_space<vmem>>, vector<1x1x32x3xbf16>
    %83 = vector.shape_cast %82 : vector<1x1x32x3xbf16> to vector<32x3xbf16>
    %c32_81 = arith.constant 32 : index
    %c12_82 = arith.constant 12 : index
    %84 = vector.load %arg6[%c32_81, %c12_82] : memref<256x27xbf16, #tpu.memory_space<vmem>>, vector<32x3xbf16>
    tpu.vector_store %arg6[%c32_81, %c12_82], %83 {strides = array<i32>} : memref<256x27xbf16, #tpu.memory_space<vmem>>, vector<32x3xbf16>,
    %c1_i32_83 = arith.constant 1 : i32
    %85 = arith.addi %0, %c1_i32_83 : i32
    %c1_i32_84 = arith.constant 1 : i32
    %86 = arith.addi %85, %c1_i32_84 : i32
    %c0_85 = arith.constant 0 : index
    %87 = arith.index_cast %86 : i32 to index
    %c2_86 = arith.constant 2 : index
    %c0_87 = arith.constant 0 : index
    %88 = vector.load %arg2[%c0_85, %87, %c2_86, %c0_87] : memref<1x34x34x3xbf16, #tpu.memory_space<vmem>>, vector<1x1x32x3xbf16>
    %89 = vector.shape_cast %88 : vector<1x1x32x3xbf16> to vector<32x3xbf16>
    %c32_88 = arith.constant 32 : index
    %c15_89 = arith.constant 15 : index
    %90 = vector.load %arg6[%c32_88, %c15_89] : memref<256x27xbf16, #tpu.memory_space<vmem>>, vector<32x3xbf16>
    tpu.vector_store %arg6[%c32_88, %c15_89], %89 {strides = array<i32>} : memref<256x27xbf16, #tpu.memory_space<vmem>>, vector<32x3xbf16>,
    %c1_i32_90 = arith.constant 1 : i32
    %91 = arith.addi %0, %c1_i32_90 : i32
    %c2_i32_91 = arith.constant 2 : i32
    %92 = arith.addi %91, %c2_i32_91 : i32
    %c0_92 = arith.constant 0 : index
    %93 = arith.index_cast %92 : i32 to index
    %c0_93 = arith.constant 0 : index
    %c0_94 = arith.constant 0 : index
    %94 = vector.load %arg2[%c0_92, %93, %c0_93, %c0_94] : memref<1x34x34x3xbf16, #tpu.memory_space<vmem>>, vector<1x1x32x3xbf16>
    %95 = vector.shape_cast %94 : vector<1x1x32x3xbf16> to vector<32x3xbf16>
    %c32_95 = arith.constant 32 : index
    %c18_96 = arith.constant 18 : index
    %96 = vector.load %arg6[%c32_95, %c18_96] : memref<256x27xbf16, #tpu.memory_space<vmem>>, vector<32x3xbf16>
    tpu.vector_store %arg6[%c32_95, %c18_96], %95 {strides = array<i32>} : memref<256x27xbf16, #tpu.memory_space<vmem>>, vector<32x3xbf16>,
    %c1_i32_97 = arith.constant 1 : i32
    %97 = arith.addi %0, %c1_i32_97 : i32
    %c2_i32_98 = arith.constant 2 : i32
    %98 = arith.addi %97, %c2_i32_98 : i32
    %c0_99 = arith.constant 0 : index
    %99 = arith.index_cast %98 : i32 to index
    %c1_100 = arith.constant 1 : index
    %c0_101 = arith.constant 0 : index
    %100 = vector.load %arg2[%c0_99, %99, %c1_100, %c0_101] : memref<1x34x34x3xbf16, #tpu.memory_space<vmem>>, vector<1x1x32x3xbf16>
    %101 = vector.shape_cast %100 : vector<1x1x32x3xbf16> to vector<32x3xbf16>
    %c32_102 = arith.constant 32 : index
    %c21_103 = arith.constant 21 : index
    %102 = vector.load %arg6[%c32_102, %c21_103] : memref<256x27xbf16, #tpu.memory_space<vmem>>, vector<32x3xbf16>
    tpu.vector_store %arg6[%c32_102, %c21_103], %101 {strides = array<i32>} : memref<256x27xbf16, #tpu.memory_space<vmem>>, vector<32x3xbf16>,
    %c1_i32_104 = arith.constant 1 : i32
    %103 = arith.addi %0, %c1_i32_104 : i32
    %c2_i32_105 = arith.constant 2 : i32
    %104 = arith.addi %103, %c2_i32_105 : i32
    %c0_106 = arith.constant 0 : index
    %105 = arith.index_cast %104 : i32 to index
    %c2_107 = arith.constant 2 : index
    %c0_108 = arith.constant 0 : index
    %106 = vector.load %arg2[%c0_106, %105, %c2_107, %c0_108] : memref<1x34x34x3xbf16, #tpu.memory_space<vmem>>, vector<1x1x32x3xbf16>
    %107 = vector.shape_cast %106 : vector<1x1x32x3xbf16> to vector<32x3xbf16>
    %c32_109 = arith.constant 32 : index
    %c24_110 = arith.constant 24 : index
    %108 = vector.load %arg6[%c32_109, %c24_110] : memref<256x27xbf16, #tpu.memory_space<vmem>>, vector<32x3xbf16>
    tpu.vector_store %arg6[%c32_109, %c24_110], %107 {strides = array<i32>} : memref<256x27xbf16, #tpu.memory_space<vmem>>, vector<32x3xbf16>,
    %c2_i32_111 = arith.constant 2 : i32
    %109 = arith.addi %0, %c2_i32_111 : i32
    %c0_i32_112 = arith.constant 0 : i32
    %110 = arith.addi %109, %c0_i32_112 : i32
    %c0_113 = arith.constant 0 : index
    %111 = arith.index_cast %110 : i32 to index
    %c0_114 = arith.constant 0 : index
    %c0_115 = arith.constant 0 : index
    %112 = vector.load %arg2[%c0_113, %111, %c0_114, %c0_115] : memref<1x34x34x3xbf16, #tpu.memory_space<vmem>>, vector<1x1x32x3xbf16>
    %113 = vector.shape_cast %112 : vector<1x1x32x3xbf16> to vector<32x3xbf16>
    %c64 = arith.constant 64 : index
    %c0_116 = arith.constant 0 : index
    %114 = vector.load %arg6[%c64, %c0_116] : memref<256x27xbf16, #tpu.memory_space<vmem>>, vector<32x3xbf16>
    tpu.vector_store %arg6[%c64, %c0_116], %113 {strides = array<i32>} : memref<256x27xbf16, #tpu.memory_space<vmem>>, vector<32x3xbf16>,
    %c2_i32_117 = arith.constant 2 : i32
    %115 = arith.addi %0, %c2_i32_117 : i32
    %c0_i32_118 = arith.constant 0 : i32
    %116 = arith.addi %115, %c0_i32_118 : i32
    %c0_119 = arith.constant 0 : index
    %117 = arith.index_cast %116 : i32 to index
    %c1_120 = arith.constant 1 : index
    %c0_121 = arith.constant 0 : index
    %118 = vector.load %arg2[%c0_119, %117, %c1_120, %c0_121] : memref<1x34x34x3xbf16, #tpu.memory_space<vmem>>, vector<1x1x32x3xbf16>
    %119 = vector.shape_cast %118 : vector<1x1x32x3xbf16> to vector<32x3xbf16>
    %c64_122 = arith.constant 64 : index
    %c3_123 = arith.constant 3 : index
    %120 = vector.load %arg6[%c64_122, %c3_123] : memref<256x27xbf16, #tpu.memory_space<vmem>>, vector<32x3xbf16>
    tpu.vector_store %arg6[%c64_122, %c3_123], %119 {strides = array<i32>} : memref<256x27xbf16, #tpu.memory_space<vmem>>, vector<32x3xbf16>,
    %c2_i32_124 = arith.constant 2 : i32
    %121 = arith.addi %0, %c2_i32_124 : i32
    %c0_i32_125 = arith.constant 0 : i32
    %122 = arith.addi %121, %c0_i32_125 : i32
    %c0_126 = arith.constant 0 : index
    %123 = arith.index_cast %122 : i32 to index
    %c2_127 = arith.constant 2 : index
    %c0_128 = arith.constant 0 : index
    %124 = vector.load %arg2[%c0_126, %123, %c2_127, %c0_128] : memref<1x34x34x3xbf16, #tpu.memory_space<vmem>>, vector<1x1x32x3xbf16>
    %125 = vector.shape_cast %124 : vector<1x1x32x3xbf16> to vector<32x3xbf16>
    %c64_129 = arith.constant 64 : index
    %c6_130 = arith.constant 6 : index
    %126 = vector.load %arg6[%c64_129, %c6_130] : memref<256x27xbf16, #tpu.memory_space<vmem>>, vector<32x3xbf16>
    tpu.vector_store %arg6[%c64_129, %c6_130], %125 {strides = array<i32>} : memref<256x27xbf16, #tpu.memory_space<vmem>>, vector<32x3xbf16>,
    %c2_i32_131 = arith.constant 2 : i32
    %127 = arith.addi %0, %c2_i32_131 : i32
    %c1_i32_132 = arith.constant 1 : i32
    %128 = arith.addi %127, %c1_i32_132 : i32
    %c0_133 = arith.constant 0 : index
    %129 = arith.index_cast %128 : i32 to index
    %c0_134 = arith.constant 0 : index
    %c0_135 = arith.constant 0 : index
    %130 = vector.load %arg2[%c0_133, %129, %c0_134, %c0_135] : memref<1x34x34x3xbf16, #tpu.memory_space<vmem>>, vector<1x1x32x3xbf16>
    %131 = vector.shape_cast %130 : vector<1x1x32x3xbf16> to vector<32x3xbf16>
    %c64_136 = arith.constant 64 : index
    %c9_137 = arith.constant 9 : index
    %132 = vector.load %arg6[%c64_136, %c9_137] : memref<256x27xbf16, #tpu.memory_space<vmem>>, vector<32x3xbf16>
    tpu.vector_store %arg6[%c64_136, %c9_137], %131 {strides = array<i32>} : memref<256x27xbf16, #tpu.memory_space<vmem>>, vector<32x3xbf16>,
    %c2_i32_138 = arith.constant 2 : i32
    %133 = arith.addi %0, %c2_i32_138 : i32
    %c1_i32_139 = arith.constant 1 : i32
    %134 = arith.addi %133, %c1_i32_139 : i32
    %c0_140 = arith.constant 0 : index
    %135 = arith.index_cast %134 : i32 to index
    %c1_141 = arith.constant 1 : index
    %c0_142 = arith.constant 0 : index
    %136 = vector.load %arg2[%c0_140, %135, %c1_141, %c0_142] : memref<1x34x34x3xbf16, #tpu.memory_space<vmem>>, vector<1x1x32x3xbf16>
    %137 = vector.shape_cast %136 : vector<1x1x32x3xbf16> to vector<32x3xbf16>
    %c64_143 = arith.constant 64 : index
    %c12_144 = arith.constant 12 : index
    %138 = vector.load %arg6[%c64_143, %c12_144] : memref<256x27xbf16, #tpu.memory_space<vmem>>, vector<32x3xbf16>
    tpu.vector_store %arg6[%c64_143, %c12_144], %137 {strides = array<i32>} : memref<256x27xbf16, #tpu.memory_space<vmem>>, vector<32x3xbf16>,
    %c2_i32_145 = arith.constant 2 : i32
    %139 = arith.addi %0, %c2_i32_145 : i32
    %c1_i32_146 = arith.constant 1 : i32
    %140 = arith.addi %139, %c1_i32_146 : i32
    %c0_147 = arith.constant 0 : index
    %141 = arith.index_cast %140 : i32 to index
    %c2_148 = arith.constant 2 : index
    %c0_149 = arith.constant 0 : index
    %142 = vector.load %arg2[%c0_147, %141, %c2_148, %c0_149] : memref<1x34x34x3xbf16, #tpu.memory_space<vmem>>, vector<1x1x32x3xbf16>
    %143 = vector.shape_cast %142 : vector<1x1x32x3xbf16> to vector<32x3xbf16>
    %c64_150 = arith.constant 64 : index
    %c15_151 = arith.constant 15 : index
    %144 = vector.load %arg6[%c64_150, %c15_151] : memref<256x27xbf16, #tpu.memory_space<vmem>>, vector<32x3xbf16>
    tpu.vector_store %arg6[%c64_150, %c15_151], %143 {strides = array<i32>} : memref<256x27xbf16, #tpu.memory_space<vmem>>, vector<32x3xbf16>,
    %c2_i32_152 = arith.constant 2 : i32
    %145 = arith.addi %0, %c2_i32_152 : i32
    %c2_i32_153 = arith.constant 2 : i32
    %146 = arith.addi %145, %c2_i32_153 : i32
    %c0_154 = arith.constant 0 : index
    %147 = arith.index_cast %146 : i32 to index
    %c0_155 = arith.constant 0 : index
    %c0_156 = arith.constant 0 : index
    %148 = vector.load %arg2[%c0_154, %147, %c0_155, %c0_156] : memref<1x34x34x3xbf16, #tpu.memory_space<vmem>>, vector<1x1x32x3xbf16>
    %149 = vector.shape_cast %148 : vector<1x1x32x3xbf16> to vector<32x3xbf16>
    %c64_157 = arith.constant 64 : index
    %c18_158 = arith.constant 18 : index
    %150 = vector.load %arg6[%c64_157, %c18_158] : memref<256x27xbf16, #tpu.memory_space<vmem>>, vector<32x3xbf16>
    tpu.vector_store %arg6[%c64_157, %c18_158], %149 {strides = array<i32>} : memref<256x27xbf16, #tpu.memory_space<vmem>>, vector<32x3xbf16>,
    %c2_i32_159 = arith.constant 2 : i32
    %151 = arith.addi %0, %c2_i32_159 : i32
    %c2_i32_160 = arith.constant 2 : i32
    %152 = arith.addi %151, %c2_i32_160 : i32
    %c0_161 = arith.constant 0 : index
    %153 = arith.index_cast %152 : i32 to index
    %c1_162 = arith.constant 1 : index
    %c0_163 = arith.constant 0 : index
    %154 = vector.load %arg2[%c0_161, %153, %c1_162, %c0_163] : memref<1x34x34x3xbf16, #tpu.memory_space<vmem>>, vector<1x1x32x3xbf16>
    %155 = vector.shape_cast %154 : vector<1x1x32x3xbf16> to vector<32x3xbf16>
    %c64_164 = arith.constant 64 : index
    %c21_165 = arith.constant 21 : index
    %156 = vector.load %arg6[%c64_164, %c21_165] : memref<256x27xbf16, #tpu.memory_space<vmem>>, vector<32x3xbf16>
    tpu.vector_store %arg6[%c64_164, %c21_165], %155 {strides = array<i32>} : memref<256x27xbf16, #tpu.memory_space<vmem>>, vector<32x3xbf16>,
    %c2_i32_166 = arith.constant 2 : i32
    %157 = arith.addi %0, %c2_i32_166 : i32
    %c2_i32_167 = arith.constant 2 : i32
    %158 = arith.addi %157, %c2_i32_167 : i32
    %c0_168 = arith.constant 0 : index
    %159 = arith.index_cast %158 : i32 to index
    %c2_169 = arith.constant 2 : index
    %c0_170 = arith.constant 0 : index
    %160 = vector.load %arg2[%c0_168, %159, %c2_169, %c0_170] : memref<1x34x34x3xbf16, #tpu.memory_space<vmem>>, vector<1x1x32x3xbf16>
    %161 = vector.shape_cast %160 : vector<1x1x32x3xbf16> to vector<32x3xbf16>
    %c64_171 = arith.constant 64 : index
    %c24_172 = arith.constant 24 : index
    %162 = vector.load %arg6[%c64_171, %c24_172] : memref<256x27xbf16, #tpu.memory_space<vmem>>, vector<32x3xbf16>
    tpu.vector_store %arg6[%c64_171, %c24_172], %161 {strides = array<i32>} : memref<256x27xbf16, #tpu.memory_space<vmem>>, vector<32x3xbf16>,
    %c3_i32 = arith.constant 3 : i32
    %163 = arith.addi %0, %c3_i32 : i32
    %c0_i32_173 = arith.constant 0 : i32
    %164 = arith.addi %163, %c0_i32_173 : i32
    %c0_174 = arith.constant 0 : index
    %165 = arith.index_cast %164 : i32 to index
    %c0_175 = arith.constant 0 : index
    %c0_176 = arith.constant 0 : index
    %166 = vector.load %arg2[%c0_174, %165, %c0_175, %c0_176] : memref<1x34x34x3xbf16, #tpu.memory_space<vmem>>, vector<1x1x32x3xbf16>
    %167 = vector.shape_cast %166 : vector<1x1x32x3xbf16> to vector<32x3xbf16>
    %c96 = arith.constant 96 : index
    %c0_177 = arith.constant 0 : index
    %168 = vector.load %arg6[%c96, %c0_177] : memref<256x27xbf16, #tpu.memory_space<vmem>>, vector<32x3xbf16>
    tpu.vector_store %arg6[%c96, %c0_177], %167 {strides = array<i32>} : memref<256x27xbf16, #tpu.memory_space<vmem>>, vector<32x3xbf16>,
    %c3_i32_178 = arith.constant 3 : i32
    %169 = arith.addi %0, %c3_i32_178 : i32
    %c0_i32_179 = arith.constant 0 : i32
    %170 = arith.addi %169, %c0_i32_179 : i32
    %c0_180 = arith.constant 0 : index
    %171 = arith.index_cast %170 : i32 to index
    %c1_181 = arith.constant 1 : index
    %c0_182 = arith.constant 0 : index
    %172 = vector.load %arg2[%c0_180, %171, %c1_181, %c0_182] : memref<1x34x34x3xbf16, #tpu.memory_space<vmem>>, vector<1x1x32x3xbf16>
    %173 = vector.shape_cast %172 : vector<1x1x32x3xbf16> to vector<32x3xbf16>
    %c96_183 = arith.constant 96 : index
    %c3_184 = arith.constant 3 : index
    %174 = vector.load %arg6[%c96_183, %c3_184] : memref<256x27xbf16, #tpu.memory_space<vmem>>, vector<32x3xbf16>
    tpu.vector_store %arg6[%c96_183, %c3_184], %173 {strides = array<i32>} : memref<256x27xbf16, #tpu.memory_space<vmem>>, vector<32x3xbf16>,
    %c3_i32_185 = arith.constant 3 : i32
    %175 = arith.addi %0, %c3_i32_185 : i32
    %c0_i32_186 = arith.constant 0 : i32
    %176 = arith.addi %175, %c0_i32_186 : i32
    %c0_187 = arith.constant 0 : index
    %177 = arith.index_cast %176 : i32 to index
    %c2_188 = arith.constant 2 : index
    %c0_189 = arith.constant 0 : index
    %178 = vector.load %arg2[%c0_187, %177, %c2_188, %c0_189] : memref<1x34x34x3xbf16, #tpu.memory_space<vmem>>, vector<1x1x32x3xbf16>
    %179 = vector.shape_cast %178 : vector<1x1x32x3xbf16> to vector<32x3xbf16>
    %c96_190 = arith.constant 96 : index
    %c6_191 = arith.constant 6 : index
    %180 = vector.load %arg6[%c96_190, %c6_191] : memref<256x27xbf16, #tpu.memory_space<vmem>>, vector<32x3xbf16>
    tpu.vector_store %arg6[%c96_190, %c6_191], %179 {strides = array<i32>} : memref<256x27xbf16, #tpu.memory_space<vmem>>, vector<32x3xbf16>,
    %c3_i32_192 = arith.constant 3 : i32
    %181 = arith.addi %0, %c3_i32_192 : i32
    %c1_i32_193 = arith.constant 1 : i32
    %182 = arith.addi %181, %c1_i32_193 : i32
    %c0_194 = arith.constant 0 : index
    %183 = arith.index_cast %182 : i32 to index
    %c0_195 = arith.constant 0 : index
    %c0_196 = arith.constant 0 : index
    %184 = vector.load %arg2[%c0_194, %183, %c0_195, %c0_196] : memref<1x34x34x3xbf16, #tpu.memory_space<vmem>>, vector<1x1x32x3xbf16>
    %185 = vector.shape_cast %184 : vector<1x1x32x3xbf16> to vector<32x3xbf16>
    %c96_197 = arith.constant 96 : index
    %c9_198 = arith.constant 9 : index
    %186 = vector.load %arg6[%c96_197, %c9_198] : memref<256x27xbf16, #tpu.memory_space<vmem>>, vector<32x3xbf16>
    tpu.vector_store %arg6[%c96_197, %c9_198], %185 {strides = array<i32>} : memref<256x27xbf16, #tpu.memory_space<vmem>>, vector<32x3xbf16>,
    %c3_i32_199 = arith.constant 3 : i32
    %187 = arith.addi %0, %c3_i32_199 : i32
    %c1_i32_200 = arith.constant 1 : i32
    %188 = arith.addi %187, %c1_i32_200 : i32
    %c0_201 = arith.constant 0 : index
    %189 = arith.index_cast %188 : i32 to index
    %c1_202 = arith.constant 1 : index
    %c0_203 = arith.constant 0 : index
    %190 = vector.load %arg2[%c0_201, %189, %c1_202, %c0_203] : memref<1x34x34x3xbf16, #tpu.memory_space<vmem>>, vector<1x1x32x3xbf16>
    %191 = vector.shape_cast %190 : vector<1x1x32x3xbf16> to vector<32x3xbf16>
    %c96_204 = arith.constant 96 : index
    %c12_205 = arith.constant 12 : index
    %192 = vector.load %arg6[%c96_204, %c12_205] : memref<256x27xbf16, #tpu.memory_space<vmem>>, vector<32x3xbf16>
    tpu.vector_store %arg6[%c96_204, %c12_205], %191 {strides = array<i32>} : memref<256x27xbf16, #tpu.memory_space<vmem>>, vector<32x3xbf16>,
    %c3_i32_206 = arith.constant 3 : i32
    %193 = arith.addi %0, %c3_i32_206 : i32
    %c1_i32_207 = arith.constant 1 : i32
    %194 = arith.addi %193, %c1_i32_207 : i32
    %c0_208 = arith.constant 0 : index
    %195 = arith.index_cast %194 : i32 to index
    %c2_209 = arith.constant 2 : index
    %c0_210 = arith.constant 0 : index
    %196 = vector.load %arg2[%c0_208, %195, %c2_209, %c0_210] : memref<1x34x34x3xbf16, #tpu.memory_space<vmem>>, vector<1x1x32x3xbf16>
    %197 = vector.shape_cast %196 : vector<1x1x32x3xbf16> to vector<32x3xbf16>
    %c96_211 = arith.constant 96 : index
    %c15_212 = arith.constant 15 : index
    %198 = vector.load %arg6[%c96_211, %c15_212] : memref<256x27xbf16, #tpu.memory_space<vmem>>, vector<32x3xbf16>
    tpu.vector_store %arg6[%c96_211, %c15_212], %197 {strides = array<i32>} : memref<256x27xbf16, #tpu.memory_space<vmem>>, vector<32x3xbf16>,
    %c3_i32_213 = arith.constant 3 : i32
    %199 = arith.addi %0, %c3_i32_213 : i32
    %c2_i32_214 = arith.constant 2 : i32
    %200 = arith.addi %199, %c2_i32_214 : i32
    %c0_215 = arith.constant 0 : index
    %201 = arith.index_cast %200 : i32 to index
    %c0_216 = arith.constant 0 : index
    %c0_217 = arith.constant 0 : index
    %202 = vector.load %arg2[%c0_215, %201, %c0_216, %c0_217] : memref<1x34x34x3xbf16, #tpu.memory_space<vmem>>, vector<1x1x32x3xbf16>
    %203 = vector.shape_cast %202 : vector<1x1x32x3xbf16> to vector<32x3xbf16>
    %c96_218 = arith.constant 96 : index
    %c18_219 = arith.constant 18 : index
    %204 = vector.load %arg6[%c96_218, %c18_219] : memref<256x27xbf16, #tpu.memory_space<vmem>>, vector<32x3xbf16>
    tpu.vector_store %arg6[%c96_218, %c18_219], %203 {strides = array<i32>} : memref<256x27xbf16, #tpu.memory_space<vmem>>, vector<32x3xbf16>,
    %c3_i32_220 = arith.constant 3 : i32
    %205 = arith.addi %0, %c3_i32_220 : i32
    %c2_i32_221 = arith.constant 2 : i32
    %206 = arith.addi %205, %c2_i32_221 : i32
    %c0_222 = arith.constant 0 : index
    %207 = arith.index_cast %206 : i32 to index
    %c1_223 = arith.constant 1 : index
    %c0_224 = arith.constant 0 : index
    %208 = vector.load %arg2[%c0_222, %207, %c1_223, %c0_224] : memref<1x34x34x3xbf16, #tpu.memory_space<vmem>>, vector<1x1x32x3xbf16>
    %209 = vector.shape_cast %208 : vector<1x1x32x3xbf16> to vector<32x3xbf16>
    %c96_225 = arith.constant 96 : index
    %c21_226 = arith.constant 21 : index
    %210 = vector.load %arg6[%c96_225, %c21_226] : memref<256x27xbf16, #tpu.memory_space<vmem>>, vector<32x3xbf16>
    tpu.vector_store %arg6[%c96_225, %c21_226], %209 {strides = array<i32>} : memref<256x27xbf16, #tpu.memory_space<vmem>>, vector<32x3xbf16>,
    %c3_i32_227 = arith.constant 3 : i32
    %211 = arith.addi %0, %c3_i32_227 : i32
    %c2_i32_228 = arith.constant 2 : i32
    %212 = arith.addi %211, %c2_i32_228 : i32
    %c0_229 = arith.constant 0 : index
    %213 = arith.index_cast %212 : i32 to index
    %c2_230 = arith.constant 2 : index
    %c0_231 = arith.constant 0 : index
    %214 = vector.load %arg2[%c0_229, %213, %c2_230, %c0_231] : memref<1x34x34x3xbf16, #tpu.memory_space<vmem>>, vector<1x1x32x3xbf16>
    %215 = vector.shape_cast %214 : vector<1x1x32x3xbf16> to vector<32x3xbf16>
    %c96_232 = arith.constant 96 : index
    %c24_233 = arith.constant 24 : index
    %216 = vector.load %arg6[%c96_232, %c24_233] : memref<256x27xbf16, #tpu.memory_space<vmem>>, vector<32x3xbf16>
    tpu.vector_store %arg6[%c96_232, %c24_233], %215 {strides = array<i32>} : memref<256x27xbf16, #tpu.memory_space<vmem>>, vector<32x3xbf16>,
    %c4_i32 = arith.constant 4 : i32
    %217 = arith.addi %0, %c4_i32 : i32
    %c0_i32_234 = arith.constant 0 : i32
    %218 = arith.addi %217, %c0_i32_234 : i32
    %c0_235 = arith.constant 0 : index
    %219 = arith.index_cast %218 : i32 to index
    %c0_236 = arith.constant 0 : index
    %c0_237 = arith.constant 0 : index
    %220 = vector.load %arg2[%c0_235, %219, %c0_236, %c0_237] : memref<1x34x34x3xbf16, #tpu.memory_space<vmem>>, vector<1x1x32x3xbf16>
    %221 = vector.shape_cast %220 : vector<1x1x32x3xbf16> to vector<32x3xbf16>
    %c128 = arith.constant 128 : index
    %c0_238 = arith.constant 0 : index
    %222 = vector.load %arg6[%c128, %c0_238] : memref<256x27xbf16, #tpu.memory_space<vmem>>, vector<32x3xbf16>
    tpu.vector_store %arg6[%c128, %c0_238], %221 {strides = array<i32>} : memref<256x27xbf16, #tpu.memory_space<vmem>>, vector<32x3xbf16>,
    %c4_i32_239 = arith.constant 4 : i32
    %223 = arith.addi %0, %c4_i32_239 : i32
    %c0_i32_240 = arith.constant 0 : i32
    %224 = arith.addi %223, %c0_i32_240 : i32
    %c0_241 = arith.constant 0 : index
    %225 = arith.index_cast %224 : i32 to index
    %c1_242 = arith.constant 1 : index
    %c0_243 = arith.constant 0 : index
    %226 = vector.load %arg2[%c0_241, %225, %c1_242, %c0_243] : memref<1x34x34x3xbf16, #tpu.memory_space<vmem>>, vector<1x1x32x3xbf16>
    %227 = vector.shape_cast %226 : vector<1x1x32x3xbf16> to vector<32x3xbf16>
    %c128_244 = arith.constant 128 : index
    %c3_245 = arith.constant 3 : index
    %228 = vector.load %arg6[%c128_244, %c3_245] : memref<256x27xbf16, #tpu.memory_space<vmem>>, vector<32x3xbf16>
    tpu.vector_store %arg6[%c128_244, %c3_245], %227 {strides = array<i32>} : memref<256x27xbf16, #tpu.memory_space<vmem>>, vector<32x3xbf16>,
    %c4_i32_246 = arith.constant 4 : i32
    %229 = arith.addi %0, %c4_i32_246 : i32
    %c0_i32_247 = arith.constant 0 : i32
    %230 = arith.addi %229, %c0_i32_247 : i32
    %c0_248 = arith.constant 0 : index
    %231 = arith.index_cast %230 : i32 to index
    %c2_249 = arith.constant 2 : index
    %c0_250 = arith.constant 0 : index
    %232 = vector.load %arg2[%c0_248, %231, %c2_249, %c0_250] : memref<1x34x34x3xbf16, #tpu.memory_space<vmem>>, vector<1x1x32x3xbf16>
    %233 = vector.shape_cast %232 : vector<1x1x32x3xbf16> to vector<32x3xbf16>
    %c128_251 = arith.constant 128 : index
    %c6_252 = arith.constant 6 : index
    %234 = vector.load %arg6[%c128_251, %c6_252] : memref<256x27xbf16, #tpu.memory_space<vmem>>, vector<32x3xbf16>
    tpu.vector_store %arg6[%c128_251, %c6_252], %233 {strides = array<i32>} : memref<256x27xbf16, #tpu.memory_space<vmem>>, vector<32x3xbf16>,
    %c4_i32_253 = arith.constant 4 : i32
    %235 = arith.addi %0, %c4_i32_253 : i32
    %c1_i32_254 = arith.constant 1 : i32
    %236 = arith.addi %235, %c1_i32_254 : i32
    %c0_255 = arith.constant 0 : index
    %237 = arith.index_cast %236 : i32 to index
    %c0_256 = arith.constant 0 : index
    %c0_257 = arith.constant 0 : index
    %238 = vector.load %arg2[%c0_255, %237, %c0_256, %c0_257] : memref<1x34x34x3xbf16, #tpu.memory_space<vmem>>, vector<1x1x32x3xbf16>
    %239 = vector.shape_cast %238 : vector<1x1x32x3xbf16> to vector<32x3xbf16>
    %c128_258 = arith.constant 128 : index
    %c9_259 = arith.constant 9 : index
    %240 = vector.load %arg6[%c128_258, %c9_259] : memref<256x27xbf16, #tpu.memory_space<vmem>>, vector<32x3xbf16>
    tpu.vector_store %arg6[%c128_258, %c9_259], %239 {strides = array<i32>} : memref<256x27xbf16, #tpu.memory_space<vmem>>, vector<32x3xbf16>,
    %c4_i32_260 = arith.constant 4 : i32
    %241 = arith.addi %0, %c4_i32_260 : i32
    %c1_i32_261 = arith.constant 1 : i32
    %242 = arith.addi %241, %c1_i32_261 : i32
    %c0_262 = arith.constant 0 : index
    %243 = arith.index_cast %242 : i32 to index
    %c1_263 = arith.constant 1 : index
    %c0_264 = arith.constant 0 : index
    %244 = vector.load %arg2[%c0_262, %243, %c1_263, %c0_264] : memref<1x34x34x3xbf16, #tpu.memory_space<vmem>>, vector<1x1x32x3xbf16>
    %245 = vector.shape_cast %244 : vector<1x1x32x3xbf16> to vector<32x3xbf16>
    %c128_265 = arith.constant 128 : index
    %c12_266 = arith.constant 12 : index
    %246 = vector.load %arg6[%c128_265, %c12_266] : memref<256x27xbf16, #tpu.memory_space<vmem>>, vector<32x3xbf16>
    tpu.vector_store %arg6[%c128_265, %c12_266], %245 {strides = array<i32>} : memref<256x27xbf16, #tpu.memory_space<vmem>>, vector<32x3xbf16>,
    %c4_i32_267 = arith.constant 4 : i32
    %247 = arith.addi %0, %c4_i32_267 : i32
    %c1_i32_268 = arith.constant 1 : i32
    %248 = arith.addi %247, %c1_i32_268 : i32
    %c0_269 = arith.constant 0 : index
    %249 = arith.index_cast %248 : i32 to index
    %c2_270 = arith.constant 2 : index
    %c0_271 = arith.constant 0 : index
    %250 = vector.load %arg2[%c0_269, %249, %c2_270, %c0_271] : memref<1x34x34x3xbf16, #tpu.memory_space<vmem>>, vector<1x1x32x3xbf16>
    %251 = vector.shape_cast %250 : vector<1x1x32x3xbf16> to vector<32x3xbf16>
    %c128_272 = arith.constant 128 : index
    %c15_273 = arith.constant 15 : index
    %252 = vector.load %arg6[%c128_272, %c15_273] : memref<256x27xbf16, #tpu.memory_space<vmem>>, vector<32x3xbf16>
    tpu.vector_store %arg6[%c128_272, %c15_273], %251 {strides = array<i32>} : memref<256x27xbf16, #tpu.memory_space<vmem>>, vector<32x3xbf16>,
    %c4_i32_274 = arith.constant 4 : i32
    %253 = arith.addi %0, %c4_i32_274 : i32
    %c2_i32_275 = arith.constant 2 : i32
    %254 = arith.addi %253, %c2_i32_275 : i32
    %c0_276 = arith.constant 0 : index
    %255 = arith.index_cast %254 : i32 to index
    %c0_277 = arith.constant 0 : index
    %c0_278 = arith.constant 0 : index
    %256 = vector.load %arg2[%c0_276, %255, %c0_277, %c0_278] : memref<1x34x34x3xbf16, #tpu.memory_space<vmem>>, vector<1x1x32x3xbf16>
    %257 = vector.shape_cast %256 : vector<1x1x32x3xbf16> to vector<32x3xbf16>
    %c128_279 = arith.constant 128 : index
    %c18_280 = arith.constant 18 : index
    %258 = vector.load %arg6[%c128_279, %c18_280] : memref<256x27xbf16, #tpu.memory_space<vmem>>, vector<32x3xbf16>
    tpu.vector_store %arg6[%c128_279, %c18_280], %257 {strides = array<i32>} : memref<256x27xbf16, #tpu.memory_space<vmem>>, vector<32x3xbf16>,
    %c4_i32_281 = arith.constant 4 : i32
    %259 = arith.addi %0, %c4_i32_281 : i32
    %c2_i32_282 = arith.constant 2 : i32
    %260 = arith.addi %259, %c2_i32_282 : i32
    %c0_283 = arith.constant 0 : index
    %261 = arith.index_cast %260 : i32 to index
    %c1_284 = arith.constant 1 : index
    %c0_285 = arith.constant 0 : index
    %262 = vector.load %arg2[%c0_283, %261, %c1_284, %c0_285] : memref<1x34x34x3xbf16, #tpu.memory_space<vmem>>, vector<1x1x32x3xbf16>
    %263 = vector.shape_cast %262 : vector<1x1x32x3xbf16> to vector<32x3xbf16>
    %c128_286 = arith.constant 128 : index
    %c21_287 = arith.constant 21 : index
    %264 = vector.load %arg6[%c128_286, %c21_287] : memref<256x27xbf16, #tpu.memory_space<vmem>>, vector<32x3xbf16>
    tpu.vector_store %arg6[%c128_286, %c21_287], %263 {strides = array<i32>} : memref<256x27xbf16, #tpu.memory_space<vmem>>, vector<32x3xbf16>,
    %c4_i32_288 = arith.constant 4 : i32
    %265 = arith.addi %0, %c4_i32_288 : i32
    %c2_i32_289 = arith.constant 2 : i32
    %266 = arith.addi %265, %c2_i32_289 : i32
    %c0_290 = arith.constant 0 : index
    %267 = arith.index_cast %266 : i32 to index
    %c2_291 = arith.constant 2 : index
    %c0_292 = arith.constant 0 : index
    %268 = vector.load %arg2[%c0_290, %267, %c2_291, %c0_292] : memref<1x34x34x3xbf16, #tpu.memory_space<vmem>>, vector<1x1x32x3xbf16>
    %269 = vector.shape_cast %268 : vector<1x1x32x3xbf16> to vector<32x3xbf16>
    %c128_293 = arith.constant 128 : index
    %c24_294 = arith.constant 24 : index
    %270 = vector.load %arg6[%c128_293, %c24_294] : memref<256x27xbf16, #tpu.memory_space<vmem>>, vector<32x3xbf16>
    tpu.vector_store %arg6[%c128_293, %c24_294], %269 {strides = array<i32>} : memref<256x27xbf16, #tpu.memory_space<vmem>>, vector<32x3xbf16>,
    %c5_i32 = arith.constant 5 : i32
    %271 = arith.addi %0, %c5_i32 : i32
    %c0_i32_295 = arith.constant 0 : i32
    %272 = arith.addi %271, %c0_i32_295 : i32
    %c0_296 = arith.constant 0 : index
    %273 = arith.index_cast %272 : i32 to index
    %c0_297 = arith.constant 0 : index
    %c0_298 = arith.constant 0 : index
    %274 = vector.load %arg2[%c0_296, %273, %c0_297, %c0_298] : memref<1x34x34x3xbf16, #tpu.memory_space<vmem>>, vector<1x1x32x3xbf16>
    %275 = vector.shape_cast %274 : vector<1x1x32x3xbf16> to vector<32x3xbf16>
    %c160 = arith.constant 160 : index
    %c0_299 = arith.constant 0 : index
    %276 = vector.load %arg6[%c160, %c0_299] : memref<256x27xbf16, #tpu.memory_space<vmem>>, vector<32x3xbf16>
    tpu.vector_store %arg6[%c160, %c0_299], %275 {strides = array<i32>} : memref<256x27xbf16, #tpu.memory_space<vmem>>, vector<32x3xbf16>,
    %c5_i32_300 = arith.constant 5 : i32
    %277 = arith.addi %0, %c5_i32_300 : i32
    %c0_i32_301 = arith.constant 0 : i32
    %278 = arith.addi %277, %c0_i32_301 : i32
    %c0_302 = arith.constant 0 : index
    %279 = arith.index_cast %278 : i32 to index
    %c1_303 = arith.constant 1 : index
    %c0_304 = arith.constant 0 : index
    %280 = vector.load %arg2[%c0_302, %279, %c1_303, %c0_304] : memref<1x34x34x3xbf16, #tpu.memory_space<vmem>>, vector<1x1x32x3xbf16>
    %281 = vector.shape_cast %280 : vector<1x1x32x3xbf16> to vector<32x3xbf16>
    %c160_305 = arith.constant 160 : index
    %c3_306 = arith.constant 3 : index
    %282 = vector.load %arg6[%c160_305, %c3_306] : memref<256x27xbf16, #tpu.memory_space<vmem>>, vector<32x3xbf16>
    tpu.vector_store %arg6[%c160_305, %c3_306], %281 {strides = array<i32>} : memref<256x27xbf16, #tpu.memory_space<vmem>>, vector<32x3xbf16>,
    %c5_i32_307 = arith.constant 5 : i32
    %283 = arith.addi %0, %c5_i32_307 : i32
    %c0_i32_308 = arith.constant 0 : i32
    %284 = arith.addi %283, %c0_i32_308 : i32
    %c0_309 = arith.constant 0 : index
    %285 = arith.index_cast %284 : i32 to index
    %c2_310 = arith.constant 2 : index
    %c0_311 = arith.constant 0 : index
    %286 = vector.load %arg2[%c0_309, %285, %c2_310, %c0_311] : memref<1x34x34x3xbf16, #tpu.memory_space<vmem>>, vector<1x1x32x3xbf16>
    %287 = vector.shape_cast %286 : vector<1x1x32x3xbf16> to vector<32x3xbf16>
    %c160_312 = arith.constant 160 : index
    %c6_313 = arith.constant 6 : index
    %288 = vector.load %arg6[%c160_312, %c6_313] : memref<256x27xbf16, #tpu.memory_space<vmem>>, vector<32x3xbf16>
    tpu.vector_store %arg6[%c160_312, %c6_313], %287 {strides = array<i32>} : memref<256x27xbf16, #tpu.memory_space<vmem>>, vector<32x3xbf16>,
    %c5_i32_314 = arith.constant 5 : i32
    %289 = arith.addi %0, %c5_i32_314 : i32
    %c1_i32_315 = arith.constant 1 : i32
    %290 = arith.addi %289, %c1_i32_315 : i32
    %c0_316 = arith.constant 0 : index
    %291 = arith.index_cast %290 : i32 to index
    %c0_317 = arith.constant 0 : index
    %c0_318 = arith.constant 0 : index
    %292 = vector.load %arg2[%c0_316, %291, %c0_317, %c0_318] : memref<1x34x34x3xbf16, #tpu.memory_space<vmem>>, vector<1x1x32x3xbf16>
    %293 = vector.shape_cast %292 : vector<1x1x32x3xbf16> to vector<32x3xbf16>
    %c160_319 = arith.constant 160 : index
    %c9_320 = arith.constant 9 : index
    %294 = vector.load %arg6[%c160_319, %c9_320] : memref<256x27xbf16, #tpu.memory_space<vmem>>, vector<32x3xbf16>
    tpu.vector_store %arg6[%c160_319, %c9_320], %293 {strides = array<i32>} : memref<256x27xbf16, #tpu.memory_space<vmem>>, vector<32x3xbf16>,
    %c5_i32_321 = arith.constant 5 : i32
    %295 = arith.addi %0, %c5_i32_321 : i32
    %c1_i32_322 = arith.constant 1 : i32
    %296 = arith.addi %295, %c1_i32_322 : i32
    %c0_323 = arith.constant 0 : index
    %297 = arith.index_cast %296 : i32 to index
    %c1_324 = arith.constant 1 : index
    %c0_325 = arith.constant 0 : index
    %298 = vector.load %arg2[%c0_323, %297, %c1_324, %c0_325] : memref<1x34x34x3xbf16, #tpu.memory_space<vmem>>, vector<1x1x32x3xbf16>
    %299 = vector.shape_cast %298 : vector<1x1x32x3xbf16> to vector<32x3xbf16>
    %c160_326 = arith.constant 160 : index
    %c12_327 = arith.constant 12 : index
    %300 = vector.load %arg6[%c160_326, %c12_327] : memref<256x27xbf16, #tpu.memory_space<vmem>>, vector<32x3xbf16>
    tpu.vector_store %arg6[%c160_326, %c12_327], %299 {strides = array<i32>} : memref<256x27xbf16, #tpu.memory_space<vmem>>, vector<32x3xbf16>,
    %c5_i32_328 = arith.constant 5 : i32
    %301 = arith.addi %0, %c5_i32_328 : i32
    %c1_i32_329 = arith.constant 1 : i32
    %302 = arith.addi %301, %c1_i32_329 : i32
    %c0_330 = arith.constant 0 : index
    %303 = arith.index_cast %302 : i32 to index
    %c2_331 = arith.constant 2 : index
    %c0_332 = arith.constant 0 : index
    %304 = vector.load %arg2[%c0_330, %303, %c2_331, %c0_332] : memref<1x34x34x3xbf16, #tpu.memory_space<vmem>>, vector<1x1x32x3xbf16>
    %305 = vector.shape_cast %304 : vector<1x1x32x3xbf16> to vector<32x3xbf16>
    %c160_333 = arith.constant 160 : index
    %c15_334 = arith.constant 15 : index
    %306 = vector.load %arg6[%c160_333, %c15_334] : memref<256x27xbf16, #tpu.memory_space<vmem>>, vector<32x3xbf16>
    tpu.vector_store %arg6[%c160_333, %c15_334], %305 {strides = array<i32>} : memref<256x27xbf16, #tpu.memory_space<vmem>>, vector<32x3xbf16>,
    %c5_i32_335 = arith.constant 5 : i32
    %307 = arith.addi %0, %c5_i32_335 : i32
    %c2_i32_336 = arith.constant 2 : i32
    %308 = arith.addi %307, %c2_i32_336 : i32
    %c0_337 = arith.constant 0 : index
    %309 = arith.index_cast %308 : i32 to index
    %c0_338 = arith.constant 0 : index
    %c0_339 = arith.constant 0 : index
    %310 = vector.load %arg2[%c0_337, %309, %c0_338, %c0_339] : memref<1x34x34x3xbf16, #tpu.memory_space<vmem>>, vector<1x1x32x3xbf16>
    %311 = vector.shape_cast %310 : vector<1x1x32x3xbf16> to vector<32x3xbf16>
    %c160_340 = arith.constant 160 : index
    %c18_341 = arith.constant 18 : index
    %312 = vector.load %arg6[%c160_340, %c18_341] : memref<256x27xbf16, #tpu.memory_space<vmem>>, vector<32x3xbf16>
    tpu.vector_store %arg6[%c160_340, %c18_341], %311 {strides = array<i32>} : memref<256x27xbf16, #tpu.memory_space<vmem>>, vector<32x3xbf16>,
    %c5_i32_342 = arith.constant 5 : i32
    %313 = arith.addi %0, %c5_i32_342 : i32
    %c2_i32_343 = arith.constant 2 : i32
    %314 = arith.addi %313, %c2_i32_343 : i32
    %c0_344 = arith.constant 0 : index
    %315 = arith.index_cast %314 : i32 to index
    %c1_345 = arith.constant 1 : index
    %c0_346 = arith.constant 0 : index
    %316 = vector.load %arg2[%c0_344, %315, %c1_345, %c0_346] : memref<1x34x34x3xbf16, #tpu.memory_space<vmem>>, vector<1x1x32x3xbf16>
    %317 = vector.shape_cast %316 : vector<1x1x32x3xbf16> to vector<32x3xbf16>
    %c160_347 = arith.constant 160 : index
    %c21_348 = arith.constant 21 : index
    %318 = vector.load %arg6[%c160_347, %c21_348] : memref<256x27xbf16, #tpu.memory_space<vmem>>, vector<32x3xbf16>
    tpu.vector_store %arg6[%c160_347, %c21_348], %317 {strides = array<i32>} : memref<256x27xbf16, #tpu.memory_space<vmem>>, vector<32x3xbf16>,
    %c5_i32_349 = arith.constant 5 : i32
    %319 = arith.addi %0, %c5_i32_349 : i32
    %c2_i32_350 = arith.constant 2 : i32
    %320 = arith.addi %319, %c2_i32_350 : i32
    %c0_351 = arith.constant 0 : index
    %321 = arith.index_cast %320 : i32 to index
    %c2_352 = arith.constant 2 : index
    %c0_353 = arith.constant 0 : index
    %322 = vector.load %arg2[%c0_351, %321, %c2_352, %c0_353] : memref<1x34x34x3xbf16, #tpu.memory_space<vmem>>, vector<1x1x32x3xbf16>
    %323 = vector.shape_cast %322 : vector<1x1x32x3xbf16> to vector<32x3xbf16>
    %c160_354 = arith.constant 160 : index
    %c24_355 = arith.constant 24 : index
    %324 = vector.load %arg6[%c160_354, %c24_355] : memref<256x27xbf16, #tpu.memory_space<vmem>>, vector<32x3xbf16>
    tpu.vector_store %arg6[%c160_354, %c24_355], %323 {strides = array<i32>} : memref<256x27xbf16, #tpu.memory_space<vmem>>, vector<32x3xbf16>,
    %c6_i32 = arith.constant 6 : i32
    %325 = arith.addi %0, %c6_i32 : i32
    %c0_i32_356 = arith.constant 0 : i32
    %326 = arith.addi %325, %c0_i32_356 : i32
    %c0_357 = arith.constant 0 : index
    %327 = arith.index_cast %326 : i32 to index
    %c0_358 = arith.constant 0 : index
    %c0_359 = arith.constant 0 : index
    %328 = vector.load %arg2[%c0_357, %327, %c0_358, %c0_359] : memref<1x34x34x3xbf16, #tpu.memory_space<vmem>>, vector<1x1x32x3xbf16>
    %329 = vector.shape_cast %328 : vector<1x1x32x3xbf16> to vector<32x3xbf16>
    %c192 = arith.constant 192 : index
    %c0_360 = arith.constant 0 : index
    %330 = vector.load %arg6[%c192, %c0_360] : memref<256x27xbf16, #tpu.memory_space<vmem>>, vector<32x3xbf16>
    tpu.vector_store %arg6[%c192, %c0_360], %329 {strides = array<i32>} : memref<256x27xbf16, #tpu.memory_space<vmem>>, vector<32x3xbf16>,
    %c6_i32_361 = arith.constant 6 : i32
    %331 = arith.addi %0, %c6_i32_361 : i32
    %c0_i32_362 = arith.constant 0 : i32
    %332 = arith.addi %331, %c0_i32_362 : i32
    %c0_363 = arith.constant 0 : index
    %333 = arith.index_cast %332 : i32 to index
    %c1_364 = arith.constant 1 : index
    %c0_365 = arith.constant 0 : index
    %334 = vector.load %arg2[%c0_363, %333, %c1_364, %c0_365] : memref<1x34x34x3xbf16, #tpu.memory_space<vmem>>, vector<1x1x32x3xbf16>
    %335 = vector.shape_cast %334 : vector<1x1x32x3xbf16> to vector<32x3xbf16>
    %c192_366 = arith.constant 192 : index
    %c3_367 = arith.constant 3 : index
    %336 = vector.load %arg6[%c192_366, %c3_367] : memref<256x27xbf16, #tpu.memory_space<vmem>>, vector<32x3xbf16>
    tpu.vector_store %arg6[%c192_366, %c3_367], %335 {strides = array<i32>} : memref<256x27xbf16, #tpu.memory_space<vmem>>, vector<32x3xbf16>,
    %c6_i32_368 = arith.constant 6 : i32
    %337 = arith.addi %0, %c6_i32_368 : i32
    %c0_i32_369 = arith.constant 0 : i32
    %338 = arith.addi %337, %c0_i32_369 : i32
    %c0_370 = arith.constant 0 : index
    %339 = arith.index_cast %338 : i32 to index
    %c2_371 = arith.constant 2 : index
    %c0_372 = arith.constant 0 : index
    %340 = vector.load %arg2[%c0_370, %339, %c2_371, %c0_372] : memref<1x34x34x3xbf16, #tpu.memory_space<vmem>>, vector<1x1x32x3xbf16>
    %341 = vector.shape_cast %340 : vector<1x1x32x3xbf16> to vector<32x3xbf16>
    %c192_373 = arith.constant 192 : index
    %c6_374 = arith.constant 6 : index
    %342 = vector.load %arg6[%c192_373, %c6_374] : memref<256x27xbf16, #tpu.memory_space<vmem>>, vector<32x3xbf16>
    tpu.vector_store %arg6[%c192_373, %c6_374], %341 {strides = array<i32>} : memref<256x27xbf16, #tpu.memory_space<vmem>>, vector<32x3xbf16>,
    %c6_i32_375 = arith.constant 6 : i32
    %343 = arith.addi %0, %c6_i32_375 : i32
    %c1_i32_376 = arith.constant 1 : i32
    %344 = arith.addi %343, %c1_i32_376 : i32
    %c0_377 = arith.constant 0 : index
    %345 = arith.index_cast %344 : i32 to index
    %c0_378 = arith.constant 0 : index
    %c0_379 = arith.constant 0 : index
    %346 = vector.load %arg2[%c0_377, %345, %c0_378, %c0_379] : memref<1x34x34x3xbf16, #tpu.memory_space<vmem>>, vector<1x1x32x3xbf16>
    %347 = vector.shape_cast %346 : vector<1x1x32x3xbf16> to vector<32x3xbf16>
    %c192_380 = arith.constant 192 : index
    %c9_381 = arith.constant 9 : index
    %348 = vector.load %arg6[%c192_380, %c9_381] : memref<256x27xbf16, #tpu.memory_space<vmem>>, vector<32x3xbf16>
    tpu.vector_store %arg6[%c192_380, %c9_381], %347 {strides = array<i32>} : memref<256x27xbf16, #tpu.memory_space<vmem>>, vector<32x3xbf16>,
    %c6_i32_382 = arith.constant 6 : i32
    %349 = arith.addi %0, %c6_i32_382 : i32
    %c1_i32_383 = arith.constant 1 : i32
    %350 = arith.addi %349, %c1_i32_383 : i32
    %c0_384 = arith.constant 0 : index
    %351 = arith.index_cast %350 : i32 to index
    %c1_385 = arith.constant 1 : index
    %c0_386 = arith.constant 0 : index
    %352 = vector.load %arg2[%c0_384, %351, %c1_385, %c0_386] : memref<1x34x34x3xbf16, #tpu.memory_space<vmem>>, vector<1x1x32x3xbf16>
    %353 = vector.shape_cast %352 : vector<1x1x32x3xbf16> to vector<32x3xbf16>
    %c192_387 = arith.constant 192 : index
    %c12_388 = arith.constant 12 : index
    %354 = vector.load %arg6[%c192_387, %c12_388] : memref<256x27xbf16, #tpu.memory_space<vmem>>, vector<32x3xbf16>
    tpu.vector_store %arg6[%c192_387, %c12_388], %353 {strides = array<i32>} : memref<256x27xbf16, #tpu.memory_space<vmem>>, vector<32x3xbf16>,
    %c6_i32_389 = arith.constant 6 : i32
    %355 = arith.addi %0, %c6_i32_389 : i32
    %c1_i32_390 = arith.constant 1 : i32
    %356 = arith.addi %355, %c1_i32_390 : i32
    %c0_391 = arith.constant 0 : index
    %357 = arith.index_cast %356 : i32 to index
    %c2_392 = arith.constant 2 : index
    %c0_393 = arith.constant 0 : index
    %358 = vector.load %arg2[%c0_391, %357, %c2_392, %c0_393] : memref<1x34x34x3xbf16, #tpu.memory_space<vmem>>, vector<1x1x32x3xbf16>
    %359 = vector.shape_cast %358 : vector<1x1x32x3xbf16> to vector<32x3xbf16>
    %c192_394 = arith.constant 192 : index
    %c15_395 = arith.constant 15 : index
    %360 = vector.load %arg6[%c192_394, %c15_395] : memref<256x27xbf16, #tpu.memory_space<vmem>>, vector<32x3xbf16>
    tpu.vector_store %arg6[%c192_394, %c15_395], %359 {strides = array<i32>} : memref<256x27xbf16, #tpu.memory_space<vmem>>, vector<32x3xbf16>,
    %c6_i32_396 = arith.constant 6 : i32
    %361 = arith.addi %0, %c6_i32_396 : i32
    %c2_i32_397 = arith.constant 2 : i32
    %362 = arith.addi %361, %c2_i32_397 : i32
    %c0_398 = arith.constant 0 : index
    %363 = arith.index_cast %362 : i32 to index
    %c0_399 = arith.constant 0 : index
    %c0_400 = arith.constant 0 : index
    %364 = vector.load %arg2[%c0_398, %363, %c0_399, %c0_400] : memref<1x34x34x3xbf16, #tpu.memory_space<vmem>>, vector<1x1x32x3xbf16>
    %365 = vector.shape_cast %364 : vector<1x1x32x3xbf16> to vector<32x3xbf16>
    %c192_401 = arith.constant 192 : index
    %c18_402 = arith.constant 18 : index
    %366 = vector.load %arg6[%c192_401, %c18_402] : memref<256x27xbf16, #tpu.memory_space<vmem>>, vector<32x3xbf16>
    tpu.vector_store %arg6[%c192_401, %c18_402], %365 {strides = array<i32>} : memref<256x27xbf16, #tpu.memory_space<vmem>>, vector<32x3xbf16>,
    %c6_i32_403 = arith.constant 6 : i32
    %367 = arith.addi %0, %c6_i32_403 : i32
    %c2_i32_404 = arith.constant 2 : i32
    %368 = arith.addi %367, %c2_i32_404 : i32
    %c0_405 = arith.constant 0 : index
    %369 = arith.index_cast %368 : i32 to index
    %c1_406 = arith.constant 1 : index
    %c0_407 = arith.constant 0 : index
    %370 = vector.load %arg2[%c0_405, %369, %c1_406, %c0_407] : memref<1x34x34x3xbf16, #tpu.memory_space<vmem>>, vector<1x1x32x3xbf16>
    %371 = vector.shape_cast %370 : vector<1x1x32x3xbf16> to vector<32x3xbf16>
    %c192_408 = arith.constant 192 : index
    %c21_409 = arith.constant 21 : index
    %372 = vector.load %arg6[%c192_408, %c21_409] : memref<256x27xbf16, #tpu.memory_space<vmem>>, vector<32x3xbf16>
    tpu.vector_store %arg6[%c192_408, %c21_409], %371 {strides = array<i32>} : memref<256x27xbf16, #tpu.memory_space<vmem>>, vector<32x3xbf16>,
    %c6_i32_410 = arith.constant 6 : i32
    %373 = arith.addi %0, %c6_i32_410 : i32
    %c2_i32_411 = arith.constant 2 : i32
    %374 = arith.addi %373, %c2_i32_411 : i32
    %c0_412 = arith.constant 0 : index
    %375 = arith.index_cast %374 : i32 to index
    %c2_413 = arith.constant 2 : index
    %c0_414 = arith.constant 0 : index
    %376 = vector.load %arg2[%c0_412, %375, %c2_413, %c0_414] : memref<1x34x34x3xbf16, #tpu.memory_space<vmem>>, vector<1x1x32x3xbf16>
    %377 = vector.shape_cast %376 : vector<1x1x32x3xbf16> to vector<32x3xbf16>
    %c192_415 = arith.constant 192 : index
    %c24_416 = arith.constant 24 : index
    %378 = vector.load %arg6[%c192_415, %c24_416] : memref<256x27xbf16, #tpu.memory_space<vmem>>, vector<32x3xbf16>
    tpu.vector_store %arg6[%c192_415, %c24_416], %377 {strides = array<i32>} : memref<256x27xbf16, #tpu.memory_space<vmem>>, vector<32x3xbf16>,
    %c7_i32 = arith.constant 7 : i32
    %379 = arith.addi %0, %c7_i32 : i32
    %c0_i32_417 = arith.constant 0 : i32
    %380 = arith.addi %379, %c0_i32_417 : i32
    %c0_418 = arith.constant 0 : index
    %381 = arith.index_cast %380 : i32 to index
    %c0_419 = arith.constant 0 : index
    %c0_420 = arith.constant 0 : index
    %382 = vector.load %arg2[%c0_418, %381, %c0_419, %c0_420] : memref<1x34x34x3xbf16, #tpu.memory_space<vmem>>, vector<1x1x32x3xbf16>
    %383 = vector.shape_cast %382 : vector<1x1x32x3xbf16> to vector<32x3xbf16>
    %c224 = arith.constant 224 : index
    %c0_421 = arith.constant 0 : index
    %384 = vector.load %arg6[%c224, %c0_421] : memref<256x27xbf16, #tpu.memory_space<vmem>>, vector<32x3xbf16>
    tpu.vector_store %arg6[%c224, %c0_421], %383 {strides = array<i32>} : memref<256x27xbf16, #tpu.memory_space<vmem>>, vector<32x3xbf16>,
    %c7_i32_422 = arith.constant 7 : i32
    %385 = arith.addi %0, %c7_i32_422 : i32
    %c0_i32_423 = arith.constant 0 : i32
    %386 = arith.addi %385, %c0_i32_423 : i32
    %c0_424 = arith.constant 0 : index
    %387 = arith.index_cast %386 : i32 to index
    %c1_425 = arith.constant 1 : index
    %c0_426 = arith.constant 0 : index
    %388 = vector.load %arg2[%c0_424, %387, %c1_425, %c0_426] : memref<1x34x34x3xbf16, #tpu.memory_space<vmem>>, vector<1x1x32x3xbf16>
    %389 = vector.shape_cast %388 : vector<1x1x32x3xbf16> to vector<32x3xbf16>
    %c224_427 = arith.constant 224 : index
    %c3_428 = arith.constant 3 : index
    %390 = vector.load %arg6[%c224_427, %c3_428] : memref<256x27xbf16, #tpu.memory_space<vmem>>, vector<32x3xbf16>
    tpu.vector_store %arg6[%c224_427, %c3_428], %389 {strides = array<i32>} : memref<256x27xbf16, #tpu.memory_space<vmem>>, vector<32x3xbf16>,
    %c7_i32_429 = arith.constant 7 : i32
    %391 = arith.addi %0, %c7_i32_429 : i32
    %c0_i32_430 = arith.constant 0 : i32
    %392 = arith.addi %391, %c0_i32_430 : i32
    %c0_431 = arith.constant 0 : index
    %393 = arith.index_cast %392 : i32 to index
    %c2_432 = arith.constant 2 : index
    %c0_433 = arith.constant 0 : index
    %394 = vector.load %arg2[%c0_431, %393, %c2_432, %c0_433] : memref<1x34x34x3xbf16, #tpu.memory_space<vmem>>, vector<1x1x32x3xbf16>
    %395 = vector.shape_cast %394 : vector<1x1x32x3xbf16> to vector<32x3xbf16>
    %c224_434 = arith.constant 224 : index
    %c6_435 = arith.constant 6 : index
    %396 = vector.load %arg6[%c224_434, %c6_435] : memref<256x27xbf16, #tpu.memory_space<vmem>>, vector<32x3xbf16>
    tpu.vector_store %arg6[%c224_434, %c6_435], %395 {strides = array<i32>} : memref<256x27xbf16, #tpu.memory_space<vmem>>, vector<32x3xbf16>,
    %c7_i32_436 = arith.constant 7 : i32
    %397 = arith.addi %0, %c7_i32_436 : i32
    %c1_i32_437 = arith.constant 1 : i32
    %398 = arith.addi %397, %c1_i32_437 : i32
    %c0_438 = arith.constant 0 : index
    %399 = arith.index_cast %398 : i32 to index
    %c0_439 = arith.constant 0 : index
    %c0_440 = arith.constant 0 : index
    %400 = vector.load %arg2[%c0_438, %399, %c0_439, %c0_440] : memref<1x34x34x3xbf16, #tpu.memory_space<vmem>>, vector<1x1x32x3xbf16>
    %401 = vector.shape_cast %400 : vector<1x1x32x3xbf16> to vector<32x3xbf16>
    %c224_441 = arith.constant 224 : index
    %c9_442 = arith.constant 9 : index
    %402 = vector.load %arg6[%c224_441, %c9_442] : memref<256x27xbf16, #tpu.memory_space<vmem>>, vector<32x3xbf16>
    tpu.vector_store %arg6[%c224_441, %c9_442], %401 {strides = array<i32>} : memref<256x27xbf16, #tpu.memory_space<vmem>>, vector<32x3xbf16>,
    %c7_i32_443 = arith.constant 7 : i32
    %403 = arith.addi %0, %c7_i32_443 : i32
    %c1_i32_444 = arith.constant 1 : i32
    %404 = arith.addi %403, %c1_i32_444 : i32
    %c0_445 = arith.constant 0 : index
    %405 = arith.index_cast %404 : i32 to index
    %c1_446 = arith.constant 1 : index
    %c0_447 = arith.constant 0 : index
    %406 = vector.load %arg2[%c0_445, %405, %c1_446, %c0_447] : memref<1x34x34x3xbf16, #tpu.memory_space<vmem>>, vector<1x1x32x3xbf16>
    %407 = vector.shape_cast %406 : vector<1x1x32x3xbf16> to vector<32x3xbf16>
    %c224_448 = arith.constant 224 : index
    %c12_449 = arith.constant 12 : index
    %408 = vector.load %arg6[%c224_448, %c12_449] : memref<256x27xbf16, #tpu.memory_space<vmem>>, vector<32x3xbf16>
    tpu.vector_store %arg6[%c224_448, %c12_449], %407 {strides = array<i32>} : memref<256x27xbf16, #tpu.memory_space<vmem>>, vector<32x3xbf16>,
    %c7_i32_450 = arith.constant 7 : i32
    %409 = arith.addi %0, %c7_i32_450 : i32
    %c1_i32_451 = arith.constant 1 : i32
    %410 = arith.addi %409, %c1_i32_451 : i32
    %c0_452 = arith.constant 0 : index
    %411 = arith.index_cast %410 : i32 to index
    %c2_453 = arith.constant 2 : index
    %c0_454 = arith.constant 0 : index
    %412 = vector.load %arg2[%c0_452, %411, %c2_453, %c0_454] : memref<1x34x34x3xbf16, #tpu.memory_space<vmem>>, vector<1x1x32x3xbf16>
    %413 = vector.shape_cast %412 : vector<1x1x32x3xbf16> to vector<32x3xbf16>
    %c224_455 = arith.constant 224 : index
    %c15_456 = arith.constant 15 : index
    %414 = vector.load %arg6[%c224_455, %c15_456] : memref<256x27xbf16, #tpu.memory_space<vmem>>, vector<32x3xbf16>
    tpu.vector_store %arg6[%c224_455, %c15_456], %413 {strides = array<i32>} : memref<256x27xbf16, #tpu.memory_space<vmem>>, vector<32x3xbf16>,
    %c7_i32_457 = arith.constant 7 : i32
    %415 = arith.addi %0, %c7_i32_457 : i32
    %c2_i32_458 = arith.constant 2 : i32
    %416 = arith.addi %415, %c2_i32_458 : i32
    %c0_459 = arith.constant 0 : index
    %417 = arith.index_cast %416 : i32 to index
    %c0_460 = arith.constant 0 : index
    %c0_461 = arith.constant 0 : index
    %418 = vector.load %arg2[%c0_459, %417, %c0_460, %c0_461] : memref<1x34x34x3xbf16, #tpu.memory_space<vmem>>, vector<1x1x32x3xbf16>
    %419 = vector.shape_cast %418 : vector<1x1x32x3xbf16> to vector<32x3xbf16>
    %c224_462 = arith.constant 224 : index
    %c18_463 = arith.constant 18 : index
    %420 = vector.load %arg6[%c224_462, %c18_463] : memref<256x27xbf16, #tpu.memory_space<vmem>>, vector<32x3xbf16>
    tpu.vector_store %arg6[%c224_462, %c18_463], %419 {strides = array<i32>} : memref<256x27xbf16, #tpu.memory_space<vmem>>, vector<32x3xbf16>,
    %c7_i32_464 = arith.constant 7 : i32
    %421 = arith.addi %0, %c7_i32_464 : i32
    %c2_i32_465 = arith.constant 2 : i32
    %422 = arith.addi %421, %c2_i32_465 : i32
    %c0_466 = arith.constant 0 : index
    %423 = arith.index_cast %422 : i32 to index
    %c1_467 = arith.constant 1 : index
    %c0_468 = arith.constant 0 : index
    %424 = vector.load %arg2[%c0_466, %423, %c1_467, %c0_468] : memref<1x34x34x3xbf16, #tpu.memory_space<vmem>>, vector<1x1x32x3xbf16>
    %425 = vector.shape_cast %424 : vector<1x1x32x3xbf16> to vector<32x3xbf16>
    %c224_469 = arith.constant 224 : index
    %c21_470 = arith.constant 21 : index
    %426 = vector.load %arg6[%c224_469, %c21_470] : memref<256x27xbf16, #tpu.memory_space<vmem>>, vector<32x3xbf16>
    tpu.vector_store %arg6[%c224_469, %c21_470], %425 {strides = array<i32>} : memref<256x27xbf16, #tpu.memory_space<vmem>>, vector<32x3xbf16>,
    %c7_i32_471 = arith.constant 7 : i32
    %427 = arith.addi %0, %c7_i32_471 : i32
    %c2_i32_472 = arith.constant 2 : i32
    %428 = arith.addi %427, %c2_i32_472 : i32
    %c0_473 = arith.constant 0 : index
    %429 = arith.index_cast %428 : i32 to index
    %c2_474 = arith.constant 2 : index
    %c0_475 = arith.constant 0 : index
    %430 = vector.load %arg2[%c0_473, %429, %c2_474, %c0_475] : memref<1x34x34x3xbf16, #tpu.memory_space<vmem>>, vector<1x1x32x3xbf16>
    %431 = vector.shape_cast %430 : vector<1x1x32x3xbf16> to vector<32x3xbf16>
    %c224_476 = arith.constant 224 : index
    %c24_477 = arith.constant 24 : index
    %432 = vector.load %arg6[%c224_476, %c24_477] : memref<256x27xbf16, #tpu.memory_space<vmem>>, vector<32x3xbf16>
    tpu.vector_store %arg6[%c224_476, %c24_477], %431 {strides = array<i32>} : memref<256x27xbf16, #tpu.memory_space<vmem>>, vector<32x3xbf16>,
    %c0_478 = arith.constant 0 : index
    %c0_479 = arith.constant 0 : index
    %433 = vector.load %arg6[%c0_478, %c0_479] : memref<256x27xbf16, #tpu.memory_space<vmem>>, vector<256x27xbf16>
    %c0_480 = arith.constant 0 : index
    %c0_481 = arith.constant 0 : index
    %434 = vector.load %arg3[%c0_480, %c0_481] : memref<27x64xbf16, #tpu.memory_space<vmem>>, vector<27x64xbf16>
    %cst = arith.constant dense<0.000000e+00> : vector<256x64xf32>
    %435 = tpu.matmul %433, %434, %cst {dimension_numbers = #tpu.dot_dimension_numbers<[1], [0], [0], [1], [0, 0, 1, 1], [], []>} : vector<256x27xbf16>, vector<27x64xbf16>, vector<256x64xf32> -> vector<256x64xf32>
    %c0_482 = arith.constant 0 : index
    %c0_483 = arith.constant 0 : index
    %436 = vector.load %arg4[%c0_482, %c0_483] : memref<1x64xf32, #tpu.memory_space<vmem>>, vector<1x64xf32>
    %437 = vector.broadcast %436 : vector<1x64xf32> to vector<256x64xf32>
    %438 = arith.addf %435, %437 : vector<256x64xf32>
    %cst_484 = arith.constant 0.000000e+00 : f32
    %439 = vector.broadcast %cst_484 : f32 to vector<256x64xf32>
    %440 = arith.maximumf %438, %439 : vector<256x64xf32>
    %441 = arith.truncf %440 : vector<256x64xf32> to vector<256x64xbf16>
    %c0_485 = arith.constant 0 : index
    %c0_486 = arith.constant 0 : index
    %c0_487 = arith.constant 0 : index
    %442 = vector.load %arg5[%c0_485, %c0_486, %c0_487] : memref<1x256x64xbf16, #tpu.memory_space<vmem>>, vector<1x256x64xbf16>
    %443 = vector.shape_cast %442 : vector<1x256x64xbf16> to vector<256x64xbf16>
    %444 = vector.shape_cast %441 : vector<256x64xbf16> to vector<1x256x64xbf16>
    tpu.vector_store %arg5[%c0_485, %c0_486, %c0_487], %444 {strides = array<i32>} : memref<1x256x64xbf16, #tpu.memory_space<vmem>>, vector<1x256x64xbf16>,
    return
  }
  func.func @transform_0(%arg0: i32, %arg1: i32) -> (i32, i32, i32, i32) {
    %c0_i32 = arith.constant 0 : i32
    %c0_i32_0 = arith.constant 0 : i32
    %c0_i32_1 = arith.constant 0 : i32
    %c0_i32_2 = arith.constant 0 : i32
    return %arg0, %c0_i32, %c0_i32_0, %c0_i32_1 : i32, i32, i32, i32
  }
  func.func @transform_1(%arg0: i32, %arg1: i32) -> (i32, i32) {
    %c0_i32 = arith.constant 0 : i32
    %c0_i32_0 = arith.constant 0 : i32
    %c0_i32_1 = arith.constant 0 : i32
    return %c0_i32, %c0_i32_0 : i32, i32
  }
  func.func @transform_2(%arg0: i32, %arg1: i32) -> (i32, i32) {
    %c0_i32 = arith.constant 0 : i32
    %c0_i32_0 = arith.constant 0 : i32
    %c0_i32_1 = arith.constant 0 : i32
    return %c0_i32, %c0_i32_0 : i32, i32
  }
  func.func @transform_3(%arg0: i32, %arg1: i32) -> (i32, i32, i32) {
    %c0_i32 = arith.constant 0 : i32
    %c0_i32_0 = arith.constant 0 : i32
    return %arg0, %arg1, %c0_i32 : i32, i32, i32
  }
}

</mosaic_0001>

<llo_original>
// kernel: tpu_custom_call.1
$region0: #{tpu_custom_call.1}
  #allocation0 [shape = 'u32[]', space=smem, size = 0x4, offset = 0x4, fixed_abs, tag = 'smem constant byte address 0x4 - core index']
  #allocation1 [shape = 'u32[144,128]{1,0:T(1,128)}', space=vmem, size = 0x12000, scoped, tag = 'internal scratch']
  #allocation2 [shape = 'bf16[256,27]{1,0:T(8,128)(2,1)}', space=vmem, size = 0x10000, scoped, tag = 'scratch operand']
  %s0 = inlined_call_operand.vmem [shape: bf16[2,34,34,3], index: 0, kind: input, shape index: {}]
  %s1 = inlined_call_operand.vmem [shape: bf16[27,64], index: 1, kind: input, shape index: {}]
  %s2 = inlined_call_operand.vmem [shape: f32[1,64], index: 2, kind: input, shape index: {}]
  %s3 = inlined_call_operand.vmem [shape: bf16[2,1024,64], index: 3, kind: output, shape index: {}]
  %s4 = sld [smem:[#allocation0]]
  $region45: #{tpu_custom_call.1} parent=0
    _
  %s6 = ssub.s32 1, %s4
  %s7 = scalar_select 0, %s6, %s4
  loop: start=0, step=1, limit=10
  $region2: #{tpu_custom_call.1} parent=0 // loop_pre_header
    _
  $region3: #{tpu_custom_call.1} parent=0 // loop_header
    %s9 = sphi 0, %s13
    %p10 = scmp.ge.s32.totalorder %s9, 10
    %s16 = sphi 0, %s28
    %s17 = sphi 0, %s24
    %s18 = sphi 0, %s16
    %s19 = sphi 0, %s17
    %s20 = sphi 0, %s18
    %s21 = sphi 0, %s19
    %s31 = sphi 0, %s33
    %s34 = sphi 0, %s31
    %s35 = sphi 0, %s34
    %s51 = sphi 0, %s35
    %s55 = sphi 0, %s55
    %s57 = sphi 0, %s55
    %s58 = sphi 0, %s57
    %s72 = sphi 0, %s58
    %s76 = sphi 0, %s76
    %s78 = sphi 0, %s76
    %s79 = sphi 0, %s78
    %s93 = sphi 0, %s79
    %s101 = sphi 0, %s103
    %s104 = sphi 0, %s101
    %s105 = sphi 0, %s104
    %s121 = sphi 0, %s105
  $region4: #{tpu_custom_call.1} parent=0 // loop_header_branch
    %12 = sbr.rel (%p10) target = $region8
  $region5: #{tpu_custom_call.1} parent=0 // loop_body
    %s14 = ssub.s32 %s9, 1
    %s15 = ssub.s32 %s9, 2
    %s22 = sadd.s32 1, %s17
    %p23 = scmp.ge.s32.totalorder %s22, 4
    %s24 = scalar_select %p23, 0, %s22
    %s25 = sadd.s32 1, %s16
    %s26 = scalar_select %p23, %s25, %s16
    %p27 = scmp.ge.s32.totalorder %s26, 2
    %s28 = scalar_select %p27, 0, %s26
    %s29 = ssub.s32 %s16, %s28
    %p30 = scmp.eq.s32.totalorder %s29, 0
    %s32 = sadd.s32 %s31, 1
    %s33 = scalar_select %p30, %s31, %s32
    %p36 = pneg %p30
    %p37 = scmp.eq.s32.totalorder %s9, 7
    %p38 = por %p36, %p37
    %p39 = scmp.ne.s32.totalorder %s31, %s34
    %p40 = scmp.eq.s32.totalorder %s9, 0
    %p41 = por %p39, %p40
    %p42 = scmp.ne.s32.totalorder %s31, %s34
    %p43 = scmp.eq.s32.totalorder %s14, 7
    %p44 = por %p42, %p43
    %p45 = scmp.ne.s32.totalorder %s34, %s35
    %p46 = scmp.eq.s32.totalorder %s14, 0
    %p47 = por %p45, %p46
    %p48 = scmp.ne.s32.totalorder %s34, %s35
    %p49 = scmp.eq.s32.totalorder %s15, 7
    %p50 = por %p48, %p49
    %p52 = scmp.ne.s32.totalorder %s35, %s51
    %p53 = scmp.eq.s32.totalorder %s15, 0
    %p54 = por %p52, %p53
    %s56 = sadd.s32 %s55, 1
    %p59 = scmp.eq.s32.totalorder %s9, 7
    %p60 = scmp.ne.s32.totalorder %s55, %s57
    %p61 = scmp.eq.s32.totalorder %s9, 0
    %p62 = por %p60, %p61
    %p63 = scmp.ne.s32.totalorder %s55, %s57
    %p64 = scmp.eq.s32.totalorder %s14, 7
    %p65 = por %p63, %p64
    %p66 = scmp.ne.s32.totalorder %s57, %s58
    %p67 = scmp.eq.s32.totalorder %s14, 0
    %p68 = por %p66, %p67
    %p69 = scmp.ne.s32.totalorder %s57, %s58
    %p70 = scmp.eq.s32.totalorder %s15, 7
    %p71 = por %p69, %p70
    %p73 = scmp.ne.s32.totalorder %s58, %s72
    %p74 = scmp.eq.s32.totalorder %s15, 0
    %p75 = por %p73, %p74
    %s77 = sadd.s32 %s76, 1
    %p80 = scmp.eq.s32.totalorder %s9, 7
    %p81 = scmp.ne.s32.totalorder %s76, %s78
    %p82 = scmp.eq.s32.totalorder %s9, 0
    %p83 = por %p81, %p82
    %p84 = scmp.ne.s32.totalorder %s76, %s78
    %p85 = scmp.eq.s32.totalorder %s14, 7
    %p86 = por %p84, %p85
    %p87 = scmp.ne.s32.totalorder %s78, %s79
    %p88 = scmp.eq.s32.totalorder %s14, 0
    %p89 = por %p87, %p88
    %p90 = scmp.ne.s32.totalorder %s78, %s79
    %p91 = scmp.eq.s32.totalorder %s15, 7
    %p92 = por %p90, %p91
    %p94 = scmp.ne.s32.totalorder %s79, %s93
    %p95 = scmp.eq.s32.totalorder %s15, 0
    %p96 = por %p94, %p95
    %s97 = ssub.s32 %s16, %s28
    %s98 = ssub.s32 %s17, %s24
    %s99 = sor.u32 %s97, %s98
    %p100 = scmp.eq.s32.totalorder %s99, 0
    %s102 = sadd.s32 %s101, 1
    %s103 = scalar_select %p100, %s101, %s102
    %p106 = pneg %p100
    %p107 = scmp.eq.s32.totalorder %s9, 7
    %p108 = por %p106, %p107
    %p109 = scmp.ne.s32.totalorder %s101, %s104
    %p110 = scmp.eq.s32.totalorder %s9, 0
    %p111 = por %p109, %p110
    %p112 = scmp.ne.s32.totalorder %s101, %s104
    %p113 = scmp.eq.s32.totalorder %s14, 7
    %p114 = por %p112, %p113
    %p115 = scmp.ne.s32.totalorder %s104, %s105
    %p116 = scmp.eq.s32.totalorder %s14, 0
    %p117 = por %p115, %p116
    %p118 = scmp.ne.s32.totalorder %s104, %s105
    %p119 = scmp.eq.s32.totalorder %s15, 7
    %p120 = por %p118, %p119
    %p122 = scmp.ne.s32.totalorder %s105, %s121
    %p123 = scmp.eq.s32.totalorder %s15, 0
    %p124 = por %p122, %p123
    %p125 = scmp.le.s32.totalorder 1, %s9
    %p126 = scmp.lt.s32.totalorder %s9, 9
    %p127 = pnand %p125, %p126
    %p128 = pneg %p127
    // Predicated region
    $region9: #{tpu_custom_call.1} parent=5 // pred_check
      _
    $region10: #{tpu_custom_call.1} parent=5 // pred_check_branch
      %130 = sbr.rel (%p127) target = $region12
    $region11: #{tpu_custom_call.1} parent=5 // pred_region
      %s131 = ssub.s32 %s9, 1
      // Predicated region
      $region13: #{tpu_custom_call.1} parent=11 // pred_check
        %p132 = pneg %p68
      $region14: #{tpu_custom_call.1} parent=11 // pred_check_branch
        %134 = sbr.rel (%p132) target = $region16
      $region15: #{tpu_custom_call.1} parent=11 // pred_region
        _
      $region16: #{tpu_custom_call.1} parent=11 // pred_fallthru
        _
      // Predicated region
      $region17: #{tpu_custom_call.1} parent=11 // pred_check
        %p135 = pneg %p89
      $region18: #{tpu_custom_call.1} parent=11 // pred_check_branch
        %137 = sbr.rel (%p135) target = $region20
      $region19: #{tpu_custom_call.1} parent=11 // pred_region
        _
      $region20: #{tpu_custom_call.1} parent=11 // pred_fallthru
        _
    $region12: #{tpu_custom_call.1} parent=5 // pred_fallthru
      _
    %p138 = scmp.lt.s32.totalorder %s9, 8
    // Predicated region
    $region21: #{tpu_custom_call.1} parent=5 // pred_check
      %p139 = pneg %p138
    $region22: #{tpu_custom_call.1} parent=5 // pred_check_branch
      %141 = sbr.rel (%p139) target = $region24
    $region23: #{tpu_custom_call.1} parent=5 // pred_region
      // Predicated region
      $region25: #{tpu_custom_call.1} parent=23 // pred_check
        %p142 = pneg %p41
      $region26: #{tpu_custom_call.1} parent=23 // pred_check_branch
        %144 = sbr.rel (%p142) target = $region28
      $region27: #{tpu_custom_call.1} parent=23 // pred_region
        %p145 = scmp.lt.s32.totalorder %s16, 1
        %s146 = scalar_select %p145, %s16, 1
        %s147 = smul.addr %s146, 170
        %s148 = smul.addr %s147, 4
        %s149 = scalar_lea.vmem %s0, %s148
      $region28: #{tpu_custom_call.1} parent=23 // pred_fallthru
        _
    $region24: #{tpu_custom_call.1} parent=5 // pred_fallthru
      _
    %p150 = scmp.le.s32.totalorder 1, %s9
    %p151 = scmp.lt.s32.totalorder %s9, 9
    %p152 = pnand %p150, %p151
    %p153 = pneg %p152
    // Predicated region
    $region29: #{tpu_custom_call.1} parent=5 // pred_check
      _
    $region30: #{tpu_custom_call.1} parent=5 // pred_check_branch
      %155 = sbr.rel (%p152) target = $region32
    $region31: #{tpu_custom_call.1} parent=5 // pred_region
      %s156 = ssub.s32 %s9, 1
      %p157 = scmp.lt.s32.totalorder %s18, 1
      %s158 = scalar_select %p157, %s18, 1
      %s159 = smul.addr %s158, 170
      %s160 = smul.addr %s159, 4
      %s161 = scalar_lea.vmem %s0, %s160
      %p162 = pneg %p47
      %p163 = pneg %p44
      %p164 = pneg %p68
      %p165 = pneg %p65
      %p166 = pneg %p89
      %p167 = pneg %p86
      %p168 = pneg %p117
      %p169 = pneg %p114
      %s170 = smul.u32 32, %s19
      %p171 = scmp.lt.s32.totalorder %s18, 1
      %s172 = scalar_select %p171, %s18, 1
      %p173 = scmp.lt.s32.totalorder %s170, 127
      %s174 = scalar_select %p173, %s170, 127
      %s175 = smul.addr %s172, 128
      %s176 = sadd.s32 %s174, %s175
      %s177 = smul.addr %s176, 4
      %s178 = scalar_lea.vmem %s3, %s177
      %p179 = scmp.lt.s32.totalorder %s18, 1
      %s180 = scalar_select %p179, %s18, 1
      %s181 = smul.addr %s180, 170
      %s182 = smul.addr %s181, 4
      %s183 = scalar_lea.vmem %s0, %s182
      %s184 = smul.u32 32, %s19
      %p185 = scmp.lt.s32.totalorder %s18, 1
      %s186 = scalar_select %p185, %s18, 1
      %p187 = scmp.lt.s32.totalorder %s184, 127
      %s188 = scalar_select %p187, %s184, 127
      %s189 = smul.addr %s186, 128
      %s190 = sadd.s32 %s188, %s189
      %s191 = smul.addr %s190, 4
      %s192 = scalar_lea.vmem %s3, %s191
      %s193 = smul.u32 32, %s19
      %s195 = smul.u32 %s19, 8
      %s196 = smul.u32 %s195, 5
      %s197 = smul.addr %s196, 4
      %s198 = scalar_lea.vmem %s183, %s197
      %v199 = vld [vmem:[%s198] sm:$0xf]
      %v200 = vld [vmem:[%s198 + $0x4] sm:$0xf]
      %v201 = vld [vmem:[%s198 + $0x8] sm:$0xf]
      %v202 = vld [vmem:[%s198 + $0xc] sm:$0xf]
      %vm203 = vcmask 19456
      %204 = vst.msk [vmem:[#allocation2] sm:$0xf] %vm203, %v199
      %205 = vst.msk [vmem:[#allocation2 + $0x4] sm:$0xf] %vm203, %v200
      %206 = vst.msk [vmem:[#allocation2 + $0x8] sm:$0xf] %vm203, %v201
      %207 = vst.msk [vmem:[#allocation2 + $0xc] sm:$0xf] %vm203, %v202
      %v208 = vld [vmem:[%s198] sm:$0xf]
      %v209 = vld [vmem:[%s198 + $0x4] sm:$0xf]
      %v210 = vld [vmem:[%s198 + $0x8] sm:$0xf]
      %v211 = vld [vmem:[%s198 + $0xc] sm:$0xf]
      %v212 = vld [vmem:[%s198 + $0x10] sm:$0x1]
      %vm213 = vsmask.f32 3328
      %vm214 = vsmask.f32 7440
      %vm215 = vmor %vm213, %vm214
      %v217 = vshrl.u32 %v208, 16
      %v219 = vrot.slane %v217, 4
      %v220 = vshll.u32 %v208, 16
      %v222 = vrot.slane %v220, 5
      %v223 = vor.u32 %v219, %v222
      %v224 = vrot.slane %v223, 4
      %v226 = vshll.u32 %v209, 16
      %v228 = vrot.slane %v226, 5
      %v229 = vsel %vm215, %v224, %v228
      %v230 = vshrl.u32 %v209, 16
      %v232 = vrot.slane %v230, 4
      %v233 = vor.u32 %v232, %v228
      %v234 = vrot.slane %v233, 4
      %v236 = vshll.u32 %v210, 16
      %v238 = vrot.slane %v236, 5
      %v239 = vsel %vm215, %v234, %v238
      %v240 = vshrl.u32 %v210, 16
      %v242 = vrot.slane %v240, 4
      %v243 = vor.u32 %v242, %v238
      %v244 = vrot.slane %v243, 4
      %v246 = vshll.u32 %v211, 16
      %v248 = vrot.slane %v246, 5
      %v249 = vsel %vm215, %v244, %v248
      %v250 = vshrl.u32 %v211, 16
      %v252 = vrot.slane %v250, 4
      %v253 = vor.u32 %v252, %v248
      %v254 = vrot.slane %v253, 4
      %v256 = vshll.u32 %v212, 16
      %v258 = vrot.slane %v256, 5
      %v259 = vsel %vm215, %v254, %v258
      %260 = vrot.lane.b32.xlu0 %v229, 3
      %v261 = vpop.permute.xlu0 %260
      %262 = vrot.lane.b32.xlu0 %v239, 3
      %v263 = vpop.permute.xlu0 %262
      %264 = vrot.lane.b32.xlu0 %v249, 3
      %v265 = vpop.permute.xlu0 %264
      %266 = vrot.lane.b32.xlu0 %v259, 3
      %v267 = vpop.permute.xlu0 %266
      %vm272 = vcmask 44056
      %273 = vst.msk [vmem:[#allocation2] sm:$0xf] %vm272, %v261
      %274 = vst.msk [vmem:[#allocation2 + $0x4] sm:$0xf] %vm272, %v263
      %275 = vst.msk [vmem:[#allocation2 + $0x8] sm:$0xf] %vm272, %v265
      %276 = vst.msk [vmem:[#allocation2 + $0xc] sm:$0xf] %vm272, %v267
      %v277 = vld [vmem:[%s198] sm:$0xe]
      %v278 = vld [vmem:[%s198 + $0x4] sm:$0xf]
      %v279 = vld [vmem:[%s198 + $0x8] sm:$0xf]
      %v280 = vld [vmem:[%s198 + $0xc] sm:$0xf]
      %v281 = vld [vmem:[%s198 + $0x10] sm:$0x1]
      %vm287 = vcmask 1042432
      %vm288 = vcmask 1046532
      %vm289 = vmor %vm287, %vm288
      %v290 = vrot.slane %v277, 5
      %v291 = vrot.slane %v290, 4
      %v292 = vrot.slane %v278, 5
      %v293 = vsel %vm289, %v291, %v292
      %v294 = vrot.slane %v292, 4
      %v295 = vrot.slane %v279, 5
      %v296 = vsel %vm289, %v294, %v295
      %v297 = vrot.slane %v295, 4
      %v298 = vrot.slane %v280, 5
      %v299 = vsel %vm289, %v297, %v298
      %v300 = vrot.slane %v298, 4
      %v301 = vrot.slane %v281, 5
      %v302 = vsel %vm289, %v300, %v301
      %303 = vrot.lane.b32.xlu0 %v293, 6
      %v304 = vpop.permute.xlu0 %303
      %305 = vrot.lane.b32.xlu0 %v296, 6
      %v306 = vpop.permute.xlu0 %305
      %307 = vrot.lane.b32.xlu0 %v299, 6
      %v308 = vpop.permute.xlu0 %307
      %309 = vrot.lane.b32.xlu0 %v302, 6
      %v310 = vpop.permute.xlu0 %309
      %vm315 = vcmask 68656
      %316 = vst.msk [vmem:[#allocation2] sm:$0xf] %vm315, %v304
      %317 = vst.msk [vmem:[#allocation2 + $0x4] sm:$0xf] %vm315, %v306
      %318 = vst.msk [vmem:[#allocation2 + $0x8] sm:$0xf] %vm315, %v308
      %319 = vst.msk [vmem:[#allocation2 + $0xc] sm:$0xf] %vm315, %v310
      %s320 = sadd.s32 %s195, 1
      %s321 = smul.u32 %s320, 5
      %s322 = smul.addr %s321, 4
      %s323 = scalar_lea.vmem %s183, %s322
      %v324 = vld [vmem:[%s323] sm:$0xf]
      %v325 = vld [vmem:[%s323 + $0x4] sm:$0xf]
      %v326 = vld [vmem:[%s323 + $0x8] sm:$0xf]
      %v327 = vld [vmem:[%s323 + $0xc] sm:$0xf]
      %332 = vrot.lane.b32.xlu0 %v324, 9
      %v333 = vpop.permute.xlu0 %332
      %334 = vrot.lane.b32.xlu0 %v325, 9
      %v335 = vpop.permute.xlu0 %334
      %336 = vrot.lane.b32.xlu0 %v326, 9
      %v337 = vpop.permute.xlu0 %336
      %338 = vrot.lane.b32.xlu0 %v327, 9
      %v339 = vpop.permute.xlu0 %338
      %vm344 = vcmask 93256
      %345 = vst.msk [vmem:[#allocation2] sm:$0xf] %vm344, %v333
      %346 = vst.msk [vmem:[#allocation2 + $0x4] sm:$0xf] %vm344, %v335
      %347 = vst.msk [vmem:[#allocation2 + $0x8] sm:$0xf] %vm344, %v337
      %348 = vst.msk [vmem:[#allocation2 + $0xc] sm:$0xf] %vm344, %v339
      %v349 = vld [vmem:[%s323] sm:$0xf]
      %v350 = vld [vmem:[%s323 + $0x4] sm:$0xf]
      %v351 = vld [vmem:[%s323 + $0x8] sm:$0xf]
      %v352 = vld [vmem:[%s323 + $0xc] sm:$0xf]
      %v353 = vld [vmem:[%s323 + $0x10] sm:$0x1]
      %v355 = vshrl.u32 %v349, 16
      %v357 = vrot.slane %v355, 4
      %v358 = vshll.u32 %v349, 16
      %v360 = vrot.slane %v358, 5
      %v361 = vor.u32 %v357, %v360
      %v362 = vrot.slane %v361, 4
      %v364 = vshll.u32 %v350, 16
      %v366 = vrot.slane %v364, 5
      %v367 = vsel %vm215, %v362, %v366
      %v368 = vshrl.u32 %v350, 16
      %v370 = vrot.slane %v368, 4
      %v371 = vor.u32 %v370, %v366
      %v372 = vrot.slane %v371, 4
      %v374 = vshll.u32 %v351, 16
      %v376 = vrot.slane %v374, 5
      %v377 = vsel %vm215, %v372, %v376
      %v378 = vshrl.u32 %v351, 16
      %v380 = vrot.slane %v378, 4
      %v381 = vor.u32 %v380, %v376
      %v382 = vrot.slane %v381, 4
      %v384 = vshll.u32 %v352, 16
      %v386 = vrot.slane %v384, 5
      %v387 = vsel %vm215, %v382, %v386
      %v388 = vshrl.u32 %v352, 16
      %v390 = vrot.slane %v388, 4
      %v391 = vor.u32 %v390, %v386
      %v392 = vrot.slane %v391, 4
      %v394 = vshll.u32 %v353, 16
      %v396 = vrot.slane %v394, 5
      %v397 = vsel %vm215, %v392, %v396
      %398 = vrot.lane.b32.xlu0 %v367, 12
      %v399 = vpop.permute.xlu0 %398
      %400 = vrot.lane.b32.xlu0 %v377, 12
      %v401 = vpop.permute.xlu0 %400
      %402 = vrot.lane.b32.xlu0 %v387, 12
      %v403 = vpop.permute.xlu0 %402
      %404 = vrot.lane.b32.xlu0 %v397, 12
      %v405 = vpop.permute.xlu0 %404
      %vm410 = vcmask 117856
      %411 = vst.msk [vmem:[#allocation2] sm:$0xf] %vm410, %v399
      %412 = vst.msk [vmem:[#allocation2 + $0x4] sm:$0xf] %vm410, %v401
      %413 = vst.msk [vmem:[#allocation2 + $0x8] sm:$0xf] %vm410, %v403
      %414 = vst.msk [vmem:[#allocation2 + $0xc] sm:$0xf] %vm410, %v405
      %v415 = vld [vmem:[%s323] sm:$0xe]
      %v416 = vld [vmem:[%s323 + $0x4] sm:$0xf]
      %v417 = vld [vmem:[%s323 + $0x8] sm:$0xf]
      %v418 = vld [vmem:[%s323 + $0xc] sm:$0xf]
      %v419 = vld [vmem:[%s323 + $0x10] sm:$0x1]
      %v425 = vrot.slane %v415, 5
      %v426 = vrot.slane %v425, 4
      %v427 = vrot.slane %v416, 5
      %v428 = vsel %vm289, %v426, %v427
      %v429 = vrot.slane %v427, 4
      %v430 = vrot.slane %v417, 5
      %v431 = vsel %vm289, %v429, %v430
      %v432 = vrot.slane %v430, 4
      %v433 = vrot.slane %v418, 5
      %v434 = vsel %vm289, %v432, %v433
      %v435 = vrot.slane %v433, 4
      %v436 = vrot.slane %v419, 5
      %v437 = vsel %vm289, %v435, %v436
      %438 = vrot.lane.b32.xlu0 %v428, 15
      %v439 = vpop.permute.xlu0 %438
      %440 = vrot.lane.b32.xlu0 %v431, 15
      %v441 = vpop.permute.xlu0 %440
      %442 = vrot.lane.b32.xlu0 %v434, 15
      %v443 = vpop.permute.xlu0 %442
      %444 = vrot.lane.b32.xlu0 %v437, 15
      %v445 = vpop.permute.xlu0 %444
      %vm450 = vcmask 142456
      %451 = vst.msk [vmem:[#allocation2] sm:$0xf] %vm450, %v439
      %452 = vst.msk [vmem:[#allocation2 + $0x4] sm:$0xf] %vm450, %v441
      %453 = vst.msk [vmem:[#allocation2 + $0x8] sm:$0xf] %vm450, %v443
      %454 = vst.msk [vmem:[#allocation2 + $0xc] sm:$0xf] %vm450, %v445
      %s455 = sadd.s32 %s195, 2
      %s456 = smul.u32 %s455, 5
      %s457 = smul.addr %s456, 4
      %s458 = scalar_lea.vmem %s183, %s457
      %v459 = vld [vmem:[%s458] sm:$0xf]
      %v460 = vld [vmem:[%s458 + $0x4] sm:$0xf]
      %v461 = vld [vmem:[%s458 + $0x8] sm:$0xf]
      %v462 = vld [vmem:[%s458 + $0xc] sm:$0xf]
      %467 = vrot.lane.b32.xlu0 %v459, 18
      %v468 = vpop.permute.xlu0 %467
      %469 = vrot.lane.b32.xlu0 %v460, 18
      %v470 = vpop.permute.xlu0 %469
      %471 = vrot.lane.b32.xlu0 %v461, 18
      %v472 = vpop.permute.xlu0 %471
      %473 = vrot.lane.b32.xlu0 %v462, 18
      %v474 = vpop.permute.xlu0 %473
      %vm479 = vcmask 167056
      %480 = vst.msk [vmem:[#allocation2] sm:$0xf] %vm479, %v468
      %481 = vst.msk [vmem:[#allocation2 + $0x4] sm:$0xf] %vm479, %v470
      %482 = vst.msk [vmem:[#allocation2 + $0x8] sm:$0xf] %vm479, %v472
      %483 = vst.msk [vmem:[#allocation2 + $0xc] sm:$0xf] %vm479, %v474
      %v484 = vld [vmem:[%s458] sm:$0xf]
      %v485 = vld [vmem:[%s458 + $0x4] sm:$0xf]
      %v486 = vld [vmem:[%s458 + $0x8] sm:$0xf]
      %v487 = vld [vmem:[%s458 + $0xc] sm:$0xf]
      %v488 = vld [vmem:[%s458 + $0x10] sm:$0x1]
      %v490 = vshrl.u32 %v484, 16
      %v492 = vrot.slane %v490, 4
      %v493 = vshll.u32 %v484, 16
      %v495 = vrot.slane %v493, 5
      %v496 = vor.u32 %v492, %v495
      %v497 = vrot.slane %v496, 4
      %v499 = vshll.u32 %v485, 16
      %v501 = vrot.slane %v499, 5
      %v502 = vsel %vm215, %v497, %v501
      %v503 = vshrl.u32 %v485, 16
      %v505 = vrot.slane %v503, 4
      %v506 = vor.u32 %v505, %v501
      %v507 = vrot.slane %v506, 4
      %v509 = vshll.u32 %v486, 16
      %v511 = vrot.slane %v509, 5
      %v512 = vsel %vm215, %v507, %v511
      %v513 = vshrl.u32 %v486, 16
      %v515 = vrot.slane %v513, 4
      %v516 = vor.u32 %v515, %v511
      %v517 = vrot.slane %v516, 4
      %v519 = vshll.u32 %v487, 16
      %v521 = vrot.slane %v519, 5
      %v522 = vsel %vm215, %v517, %v521
      %v523 = vshrl.u32 %v487, 16
      %v525 = vrot.slane %v523, 4
      %v526 = vor.u32 %v525, %v521
      %v527 = vrot.slane %v526, 4
      %v529 = vshll.u32 %v488, 16
      %v531 = vrot.slane %v529, 5
      %v532 = vsel %vm215, %v527, %v531
      %533 = vrot.lane.b32.xlu0 %v502, 21
      %v534 = vpop.permute.xlu0 %533
      %535 = vrot.lane.b32.xlu0 %v512, 21
      %v536 = vpop.permute.xlu0 %535
      %537 = vrot.lane.b32.xlu0 %v522, 21
      %v538 = vpop.permute.xlu0 %537
      %539 = vrot.lane.b32.xlu0 %v532, 21
      %v540 = vpop.permute.xlu0 %539
      %vm545 = vcmask 191656
      %546 = vst.msk [vmem:[#allocation2] sm:$0xf] %vm545, %v534
      %547 = vst.msk [vmem:[#allocation2 + $0x4] sm:$0xf] %vm545, %v536
      %548 = vst.msk [vmem:[#allocation2 + $0x8] sm:$0xf] %vm545, %v538
      %549 = vst.msk [vmem:[#allocation2 + $0xc] sm:$0xf] %vm545, %v540
      %v550 = vld [vmem:[%s458] sm:$0xe]
      %v551 = vld [vmem:[%s458 + $0x4] sm:$0xf]
      %v552 = vld [vmem:[%s458 + $0x8] sm:$0xf]
      %v553 = vld [vmem:[%s458 + $0xc] sm:$0xf]
      %v554 = vld [vmem:[%s458 + $0x10] sm:$0x1]
      %v560 = vrot.slane %v550, 5
      %v561 = vrot.slane %v560, 4
      %v562 = vrot.slane %v551, 5
      %v563 = vsel %vm289, %v561, %v562
      %v564 = vrot.slane %v562, 4
      %v565 = vrot.slane %v552, 5
      %v566 = vsel %vm289, %v564, %v565
      %v567 = vrot.slane %v565, 4
      %v568 = vrot.slane %v553, 5
      %v569 = vsel %vm289, %v567, %v568
      %v570 = vrot.slane %v568, 4
      %v571 = vrot.slane %v554, 5
      %v572 = vsel %vm289, %v570, %v571
      %573 = vrot.lane.b32.xlu0 %v563, 24
      %v574 = vpop.permute.xlu0 %573
      %575 = vrot.lane.b32.xlu0 %v566, 24
      %v576 = vpop.permute.xlu0 %575
      %577 = vrot.lane.b32.xlu0 %v569, 24
      %v578 = vpop.permute.xlu0 %577
      %579 = vrot.lane.b32.xlu0 %v572, 24
      %v580 = vpop.permute.xlu0 %579
      %vm585 = vcmask 216256
      %586 = vst.msk [vmem:[#allocation2] sm:$0xf] %vm585, %v574
      %587 = vst.msk [vmem:[#allocation2 + $0x4] sm:$0xf] %vm585, %v576
      %588 = vst.msk [vmem:[#allocation2 + $0x8] sm:$0xf] %vm585, %v578
      %589 = vst.msk [vmem:[#allocation2 + $0xc] sm:$0xf] %vm585, %v580
      %v590 = vld [vmem:[%s323] sm:$0xf]
      %v591 = vld [vmem:[%s323 + $0x4] sm:$0xf]
      %v592 = vld [vmem:[%s323 + $0x8] sm:$0xf]
      %v593 = vld [vmem:[%s323 + $0xc] sm:$0xf]
      %594 = vst.msk [vmem:[#allocation2 + $0x10] sm:$0xf] %vm203, %v590
      %595 = vst.msk [vmem:[#allocation2 + $0x14] sm:$0xf] %vm203, %v591
      %596 = vst.msk [vmem:[#allocation2 + $0x18] sm:$0xf] %vm203, %v592
      %597 = vst.msk [vmem:[#allocation2 + $0x1c] sm:$0xf] %vm203, %v593
      %v598 = vld [vmem:[%s323] sm:$0xf]
      %v599 = vld [vmem:[%s323 + $0x4] sm:$0xf]
      %v600 = vld [vmem:[%s323 + $0x8] sm:$0xf]
      %v601 = vld [vmem:[%s323 + $0xc] sm:$0xf]
      %v602 = vld [vmem:[%s323 + $0x10] sm:$0x1]
      %v604 = vshrl.u32 %v598, 16
      %v606 = vrot.slane %v604, 4
      %v607 = vshll.u32 %v598, 16
      %v609 = vrot.slane %v607, 5
      %v610 = vor.u32 %v606, %v609
      %v611 = vrot.slane %v610, 4
      %v613 = vshll.u32 %v599, 16
      %v615 = vrot.slane %v613, 5
      %v616 = vsel %vm215, %v611, %v615
      %v617 = vshrl.u32 %v599, 16
      %v619 = vrot.slane %v617, 4
      %v620 = vor.u32 %v619, %v615
      %v621 = vrot.slane %v620, 4
      %v623 = vshll.u32 %v600, 16
      %v625 = vrot.slane %v623, 5
      %v626 = vsel %vm215, %v621, %v625
      %v627 = vshrl.u32 %v600, 16
      %v629 = vrot.slane %v627, 4
      %v630 = vor.u32 %v629, %v625
      %v631 = vrot.slane %v630, 4
      %v633 = vshll.u32 %v601, 16
      %v635 = vrot.slane %v633, 5
      %v636 = vsel %vm215, %v631, %v635
      %v637 = vshrl.u32 %v601, 16
      %v639 = vrot.slane %v637, 4
      %v640 = vor.u32 %v639, %v635
      %v641 = vrot.slane %v640, 4
      %v643 = vshll.u32 %v602, 16
      %v645 = vrot.slane %v643, 5
      %v646 = vsel %vm215, %v641, %v645
      %647 = vrot.lane.b32.xlu0 %v616, 3
      %v648 = vpop.permute.xlu0 %647
      %649 = vrot.lane.b32.xlu0 %v626, 3
      %v650 = vpop.permute.xlu0 %649
      %651 = vrot.lane.b32.xlu0 %v636, 3
      %v652 = vpop.permute.xlu0 %651
      %653 = vrot.lane.b32.xlu0 %v646, 3
      %v654 = vpop.permute.xlu0 %653
      %659 = vst.msk [vmem:[#allocation2 + $0x10] sm:$0xf] %vm272, %v648
      %660 = vst.msk [vmem:[#allocation2 + $0x14] sm:$0xf] %vm272, %v650
      %661 = vst.msk [vmem:[#allocation2 + $0x18] sm:$0xf] %vm272, %v652
      %662 = vst.msk [vmem:[#allocation2 + $0x1c] sm:$0xf] %vm272, %v654
      %v663 = vld [vmem:[%s323] sm:$0xe]
      %v664 = vld [vmem:[%s323 + $0x4] sm:$0xf]
      %v665 = vld [vmem:[%s323 + $0x8] sm:$0xf]
      %v666 = vld [vmem:[%s323 + $0xc] sm:$0xf]
      %v667 = vld [vmem:[%s323 + $0x10] sm:$0x1]
      %v673 = vrot.slane %v663, 5
      %v674 = vrot.slane %v673, 4
      %v675 = vrot.slane %v664, 5
      %v676 = vsel %vm289, %v674, %v675
      %v677 = vrot.slane %v675, 4
      %v678 = vrot.slane %v665, 5
      %v679 = vsel %vm289, %v677, %v678
      %v680 = vrot.slane %v678, 4
      %v681 = vrot.slane %v666, 5
      %v682 = vsel %vm289, %v680, %v681
      %v683 = vrot.slane %v681, 4
      %v684 = vrot.slane %v667, 5
      %v685 = vsel %vm289, %v683, %v684
      %686 = vrot.lane.b32.xlu0 %v676, 6
      %v687 = vpop.permute.xlu0 %686
      %688 = vrot.lane.b32.xlu0 %v679, 6
      %v689 = vpop.permute.xlu0 %688
      %690 = vrot.lane.b32.xlu0 %v682, 6
      %v691 = vpop.permute.xlu0 %690
      %692 = vrot.lane.b32.xlu0 %v685, 6
      %v693 = vpop.permute.xlu0 %692
      %698 = vst.msk [vmem:[#allocation2 + $0x10] sm:$0xf] %vm315, %v687
      %699 = vst.msk [vmem:[#allocation2 + $0x14] sm:$0xf] %vm315, %v689
      %700 = vst.msk [vmem:[#allocation2 + $0x18] sm:$0xf] %vm315, %v691
      %701 = vst.msk [vmem:[#allocation2 + $0x1c] sm:$0xf] %vm315, %v693
      %v702 = vld [vmem:[%s458] sm:$0xf]
      %v703 = vld [vmem:[%s458 + $0x4] sm:$0xf]
      %v704 = vld [vmem:[%s458 + $0x8] sm:$0xf]
      %v705 = vld [vmem:[%s458 + $0xc] sm:$0xf]
      %710 = vrot.lane.b32.xlu0 %v702, 9
      %v711 = vpop.permute.xlu0 %710
      %712 = vrot.lane.b32.xlu0 %v703, 9
      %v713 = vpop.permute.xlu0 %712
      %714 = vrot.lane.b32.xlu0 %v704, 9
      %v715 = vpop.permute.xlu0 %714
      %716 = vrot.lane.b32.xlu0 %v705, 9
      %v717 = vpop.permute.xlu0 %716
      %722 = vst.msk [vmem:[#allocation2 + $0x10] sm:$0xf] %vm344, %v711
      %723 = vst.msk [vmem:[#allocation2 + $0x14] sm:$0xf] %vm344, %v713
      %724 = vst.msk [vmem:[#allocation2 + $0x18] sm:$0xf] %vm344, %v715
      %725 = vst.msk [vmem:[#allocation2 + $0x1c] sm:$0xf] %vm344, %v717
      %v726 = vld [vmem:[%s458] sm:$0xf]
      %v727 = vld [vmem:[%s458 + $0x4] sm:$0xf]
      %v728 = vld [vmem:[%s458 + $0x8] sm:$0xf]
      %v729 = vld [vmem:[%s458 + $0xc] sm:$0xf]
      %v730 = vld [vmem:[%s458 + $0x10] sm:$0x1]
      %v732 = vshrl.u32 %v726, 16
      %v734 = vrot.slane %v732, 4
      %v735 = vshll.u32 %v726, 16
      %v737 = vrot.slane %v735, 5
      %v738 = vor.u32 %v734, %v737
      %v739 = vrot.slane %v738, 4
      %v741 = vshll.u32 %v727, 16
      %v743 = vrot.slane %v741, 5
      %v744 = vsel %vm215, %v739, %v743
      %v745 = vshrl.u32 %v727, 16
      %v747 = vrot.slane %v745, 4
      %v748 = vor.u32 %v747, %v743
      %v749 = vrot.slane %v748, 4
      %v751 = vshll.u32 %v728, 16
      %v753 = vrot.slane %v751, 5
      %v754 = vsel %vm215, %v749, %v753
      %v755 = vshrl.u32 %v728, 16
      %v757 = vrot.slane %v755, 4
      %v758 = vor.u32 %v757, %v753
      %v759 = vrot.slane %v758, 4
      %v761 = vshll.u32 %v729, 16
      %v763 = vrot.slane %v761, 5
      %v764 = vsel %vm215, %v759, %v763
      %v765 = vshrl.u32 %v729, 16
      %v767 = vrot.slane %v765, 4
      %v768 = vor.u32 %v767, %v763
      %v769 = vrot.slane %v768, 4
      %v771 = vshll.u32 %v730, 16
      %v773 = vrot.slane %v771, 5
      %v774 = vsel %vm215, %v769, %v773
      %775 = vrot.lane.b32.xlu0 %v744, 12
      %v776 = vpop.permute.xlu0 %775
      %777 = vrot.lane.b32.xlu0 %v754, 12
      %v778 = vpop.permute.xlu0 %777
      %779 = vrot.lane.b32.xlu0 %v764, 12
      %v780 = vpop.permute.xlu0 %779
      %781 = vrot.lane.b32.xlu0 %v774, 12
      %v782 = vpop.permute.xlu0 %781
      %787 = vst.msk [vmem:[#allocation2 + $0x10] sm:$0xf] %vm410, %v776
      %788 = vst.msk [vmem:[#allocation2 + $0x14] sm:$0xf] %vm410, %v778
      %789 = vst.msk [vmem:[#allocation2 + $0x18] sm:$0xf] %vm410, %v780
      %790 = vst.msk [vmem:[#allocation2 + $0x1c] sm:$0xf] %vm410, %v782
      %v791 = vld [vmem:[%s458] sm:$0xe]
      %v792 = vld [vmem:[%s458 + $0x4] sm:$0xf]
      %v793 = vld [vmem:[%s458 + $0x8] sm:$0xf]
      %v794 = vld [vmem:[%s458 + $0xc] sm:$0xf]
      %v795 = vld [vmem:[%s458 + $0x10] sm:$0x1]
      %v801 = vrot.slane %v791, 5
      %v802 = vrot.slane %v801, 4
      %v803 = vrot.slane %v792, 5
      %v804 = vsel %vm289, %v802, %v803
      %v805 = vrot.slane %v803, 4
      %v806 = vrot.slane %v793, 5
      %v807 = vsel %vm289, %v805, %v806
      %v808 = vrot.slane %v806, 4
      %v809 = vrot.slane %v794, 5
      %v810 = vsel %vm289, %v808, %v809
      %v811 = vrot.slane %v809, 4
      %v812 = vrot.slane %v795, 5
      %v813 = vsel %vm289, %v811, %v812
      %814 = vrot.lane.b32.xlu0 %v804, 15
      %v815 = vpop.permute.xlu0 %814
      %816 = vrot.lane.b32.xlu0 %v807, 15
      %v817 = vpop.permute.xlu0 %816
      %818 = vrot.lane.b32.xlu0 %v810, 15
      %v819 = vpop.permute.xlu0 %818
      %820 = vrot.lane.b32.xlu0 %v813, 15
      %v821 = vpop.permute.xlu0 %820
      %826 = vst.msk [vmem:[#allocation2 + $0x10] sm:$0xf] %vm450, %v815
      %827 = vst.msk [vmem:[#allocation2 + $0x14] sm:$0xf] %vm450, %v817
      %828 = vst.msk [vmem:[#allocation2 + $0x18] sm:$0xf] %vm450, %v819
      %829 = vst.msk [vmem:[#allocation2 + $0x1c] sm:$0xf] %vm450, %v821
      %s830 = sadd.s32 %s195, 3
      %s831 = smul.u32 %s830, 5
      %s832 = smul.addr %s831, 4
      %s833 = scalar_lea.vmem %s183, %s832
      %v834 = vld [vmem:[%s833] sm:$0xf]
      %v835 = vld [vmem:[%s833 + $0x4] sm:$0xf]
      %v836 = vld [vmem:[%s833 + $0x8] sm:$0xf]
      %v837 = vld [vmem:[%s833 + $0xc] sm:$0xf]
      %842 = vrot.lane.b32.xlu0 %v834, 18
      %v843 = vpop.permute.xlu0 %842
      %844 = vrot.lane.b32.xlu0 %v835, 18
      %v845 = vpop.permute.xlu0 %844
      %846 = vrot.lane.b32.xlu0 %v836, 18
      %v847 = vpop.permute.xlu0 %846
      %848 = vrot.lane.b32.xlu0 %v837, 18
      %v849 = vpop.permute.xlu0 %848
      %854 = vst.msk [vmem:[#allocation2 + $0x10] sm:$0xf] %vm479, %v843
      %855 = vst.msk [vmem:[#allocation2 + $0x14] sm:$0xf] %vm479, %v845
      %856 = vst.msk [vmem:[#allocation2 + $0x18] sm:$0xf] %vm479, %v847
      %857 = vst.msk [vmem:[#allocation2 + $0x1c] sm:$0xf] %vm479, %v849
      %v858 = vld [vmem:[%s833] sm:$0xf]
      %v859 = vld [vmem:[%s833 + $0x4] sm:$0xf]
      %v860 = vld [vmem:[%s833 + $0x8] sm:$0xf]
      %v861 = vld [vmem:[%s833 + $0xc] sm:$0xf]
      %v862 = vld [vmem:[%s833 + $0x10] sm:$0x1]
      %v864 = vshrl.u32 %v858, 16
      %v866 = vrot.slane %v864, 4
      %v867 = vshll.u32 %v858, 16
      %v869 = vrot.slane %v867, 5
      %v870 = vor.u32 %v866, %v869
      %v871 = vrot.slane %v870, 4
      %v873 = vshll.u32 %v859, 16
      %v875 = vrot.slane %v873, 5
      %v876 = vsel %vm215, %v871, %v875
      %v877 = vshrl.u32 %v859, 16
      %v879 = vrot.slane %v877, 4
      %v880 = vor.u32 %v879, %v875
      %v881 = vrot.slane %v880, 4
      %v883 = vshll.u32 %v860, 16
      %v885 = vrot.slane %v883, 5
      %v886 = vsel %vm215, %v881, %v885
      %v887 = vshrl.u32 %v860, 16
      %v889 = vrot.slane %v887, 4
      %v890 = vor.u32 %v889, %v885
      %v891 = vrot.slane %v890, 4
      %v893 = vshll.u32 %v861, 16
      %v895 = vrot.slane %v893, 5
      %v896 = vsel %vm215, %v891, %v895
      %v897 = vshrl.u32 %v861, 16
      %v899 = vrot.slane %v897, 4
      %v900 = vor.u32 %v899, %v895
      %v901 = vrot.slane %v900, 4
      %v903 = vshll.u32 %v862, 16
      %v905 = vrot.slane %v903, 5
      %v906 = vsel %vm215, %v901, %v905
      %907 = vrot.lane.b32.xlu0 %v876, 21
      %v908 = vpop.permute.xlu0 %907
      %909 = vrot.lane.b32.xlu0 %v886, 21
      %v910 = vpop.permute.xlu0 %909
      %911 = vrot.lane.b32.xlu0 %v896, 21
      %v912 = vpop.permute.xlu0 %911
      %913 = vrot.lane.b32.xlu0 %v906, 21
      %v914 = vpop.permute.xlu0 %913
      %919 = vst.msk [vmem:[#allocation2 + $0x10] sm:$0xf] %vm545, %v908
      %920 = vst.msk [vmem:[#allocation2 + $0x14] sm:$0xf] %vm545, %v910
      %921 = vst.msk [vmem:[#allocation2 + $0x18] sm:$0xf] %vm545, %v912
      %922 = vst.msk [vmem:[#allocation2 + $0x1c] sm:$0xf] %vm545, %v914
      %v923 = vld [vmem:[%s833] sm:$0xe]
      %v924 = vld [vmem:[%s833 + $0x4] sm:$0xf]
      %v925 = vld [vmem:[%s833 + $0x8] sm:$0xf]
      %v926 = vld [vmem:[%s833 + $0xc] sm:$0xf]
      %v927 = vld [vmem:[%s833 + $0x10] sm:$0x1]
      %v933 = vrot.slane %v923, 5
      %v934 = vrot.slane %v933, 4
      %v935 = vrot.slane %v924, 5
      %v936 = vsel %vm289, %v934, %v935
      %v937 = vrot.slane %v935, 4
      %v938 = vrot.slane %v925, 5
      %v939 = vsel %vm289, %v937, %v938
      %v940 = vrot.slane %v938, 4
      %v941 = vrot.slane %v926, 5
      %v942 = vsel %vm289, %v940, %v941
      %v943 = vrot.slane %v941, 4
      %v944 = vrot.slane %v927, 5
      %v945 = vsel %vm289, %v943, %v944
      %946 = vrot.lane.b32.xlu0 %v936, 24
      %v947 = vpop.permute.xlu0 %946
      %948 = vrot.lane.b32.xlu0 %v939, 24
      %v949 = vpop.permute.xlu0 %948
      %950 = vrot.lane.b32.xlu0 %v942, 24
      %v951 = vpop.permute.xlu0 %950
      %952 = vrot.lane.b32.xlu0 %v945, 24
      %v953 = vpop.permute.xlu0 %952
      %958 = vst.msk [vmem:[#allocation2 + $0x10] sm:$0xf] %vm585, %v947
      %959 = vst.msk [vmem:[#allocation2 + $0x14] sm:$0xf] %vm585, %v949
      %960 = vst.msk [vmem:[#allocation2 + $0x18] sm:$0xf] %vm585, %v951
      %961 = vst.msk [vmem:[#allocation2 + $0x1c] sm:$0xf] %vm585, %v953
      %v962 = vld [vmem:[%s458] sm:$0xf]
      %v963 = vld [vmem:[%s458 + $0x4] sm:$0xf]
      %v964 = vld [vmem:[%s458 + $0x8] sm:$0xf]
      %v965 = vld [vmem:[%s458 + $0xc] sm:$0xf]
      %966 = vst.msk [vmem:[#allocation2 + $0x20] sm:$0xf] %vm203, %v962
      %967 = vst.msk [vmem:[#allocation2 + $0x24] sm:$0xf] %vm203, %v963
      %968 = vst.msk [vmem:[#allocation2 + $0x28] sm:$0xf] %vm203, %v964
      %969 = vst.msk [vmem:[#allocation2 + $0x2c] sm:$0xf] %vm203, %v965
      %v970 = vld [vmem:[%s458] sm:$0xf]
      %v971 = vld [vmem:[%s458 + $0x4] sm:$0xf]
      %v972 = vld [vmem:[%s458 + $0x8] sm:$0xf]
      %v973 = vld [vmem:[%s458 + $0xc] sm:$0xf]
      %v974 = vld [vmem:[%s458 + $0x10] sm:$0x1]
      %v976 = vshrl.u32 %v970, 16
      %v978 = vrot.slane %v976, 4
      %v979 = vshll.u32 %v970, 16
      %v981 = vrot.slane %v979, 5
      %v982 = vor.u32 %v978, %v981
      %v983 = vrot.slane %v982, 4
      %v985 = vshll.u32 %v971, 16
      %v987 = vrot.slane %v985, 5
      %v988 = vsel %vm215, %v983, %v987
      %v989 = vshrl.u32 %v971, 16
      %v991 = vrot.slane %v989, 4
      %v992 = vor.u32 %v991, %v987
      %v993 = vrot.slane %v992, 4
      %v995 = vshll.u32 %v972, 16
      %v997 = vrot.slane %v995, 5
      %v998 = vsel %vm215, %v993, %v997
      %v999 = vshrl.u32 %v972, 16
      %v1001 = vrot.slane %v999, 4
      %v1002 = vor.u32 %v1001, %v997
      %v1003 = vrot.slane %v1002, 4
      %v1005 = vshll.u32 %v973, 16
      %v1007 = vrot.slane %v1005, 5
      %v1008 = vsel %vm215, %v1003, %v1007
      %v1009 = vshrl.u32 %v973, 16
      %v1011 = vrot.slane %v1009, 4
      %v1012 = vor.u32 %v1011, %v1007
      %v1013 = vrot.slane %v1012, 4
      %v1015 = vshll.u32 %v974, 16
      %v1017 = vrot.slane %v1015, 5
      %v1018 = vsel %vm215, %v1013, %v1017
      %1019 = vrot.lane.b32.xlu0 %v988, 3
      %v1020 = vpop.permute.xlu0 %1019
      %1021 = vrot.lane.b32.xlu0 %v998, 3
      %v1022 = vpop.permute.xlu0 %1021
      %1023 = vrot.lane.b32.xlu0 %v1008, 3
      %v1024 = vpop.permute.xlu0 %1023
      %1025 = vrot.lane.b32.xlu0 %v1018, 3
      %v1026 = vpop.permute.xlu0 %1025
      %1031 = vst.msk [vmem:[#allocation2 + $0x20] sm:$0xf] %vm272, %v1020
      %1032 = vst.msk [vmem:[#allocation2 + $0x24] sm:$0xf] %vm272, %v1022
      %1033 = vst.msk [vmem:[#allocation2 + $0x28] sm:$0xf] %vm272, %v1024
      %1034 = vst.msk [vmem:[#allocation2 + $0x2c] sm:$0xf] %vm272, %v1026
      %v1035 = vld [vmem:[%s458] sm:$0xe]
      %v1036 = vld [vmem:[%s458 + $0x4] sm:$0xf]
      %v1037 = vld [vmem:[%s458 + $0x8] sm:$0xf]
      %v1038 = vld [vmem:[%s458 + $0xc] sm:$0xf]
      %v1039 = vld [vmem:[%s458 + $0x10] sm:$0x1]
      %v1045 = vrot.slane %v1035, 5
      %v1046 = vrot.slane %v1045, 4
      %v1047 = vrot.slane %v1036, 5
      %v1048 = vsel %vm289, %v1046, %v1047
      %v1049 = vrot.slane %v1047, 4
      %v1050 = vrot.slane %v1037, 5
      %v1051 = vsel %vm289, %v1049, %v1050
      %v1052 = vrot.slane %v1050, 4
      %v1053 = vrot.slane %v1038, 5
      %v1054 = vsel %vm289, %v1052, %v1053
      %v1055 = vrot.slane %v1053, 4
      %v1056 = vrot.slane %v1039, 5
      %v1057 = vsel %vm289, %v1055, %v1056
      %1058 = vrot.lane.b32.xlu0 %v1048, 6
      %v1059 = vpop.permute.xlu0 %1058
      %1060 = vrot.lane.b32.xlu0 %v1051, 6
      %v1061 = vpop.permute.xlu0 %1060
      %1062 = vrot.lane.b32.xlu0 %v1054, 6
      %v1063 = vpop.permute.xlu0 %1062
      %1064 = vrot.lane.b32.xlu0 %v1057, 6
      %v1065 = vpop.permute.xlu0 %1064
      %1070 = vst.msk [vmem:[#allocation2 + $0x20] sm:$0xf] %vm315, %v1059
      %1071 = vst.msk [vmem:[#allocation2 + $0x24] sm:$0xf] %vm315, %v1061
      %1072 = vst.msk [vmem:[#allocation2 + $0x28] sm:$0xf] %vm315, %v1063
      %1073 = vst.msk [vmem:[#allocation2 + $0x2c] sm:$0xf] %vm315, %v1065
      %v1074 = vld [vmem:[%s833] sm:$0xf]
      %v1075 = vld [vmem:[%s833 + $0x4] sm:$0xf]
      %v1076 = vld [vmem:[%s833 + $0x8] sm:$0xf]
      %v1077 = vld [vmem:[%s833 + $0xc] sm:$0xf]
      %1082 = vrot.lane.b32.xlu0 %v1074, 9
      %v1083 = vpop.permute.xlu0 %1082
      %1084 = vrot.lane.b32.xlu0 %v1075, 9
      %v1085 = vpop.permute.xlu0 %1084
      %1086 = vrot.lane.b32.xlu0 %v1076, 9
      %v1087 = vpop.permute.xlu0 %1086
      %1088 = vrot.lane.b32.xlu0 %v1077, 9
      %v1089 = vpop.permute.xlu0 %1088
      %1094 = vst.msk [vmem:[#allocation2 + $0x20] sm:$0xf] %vm344, %v1083
      %1095 = vst.msk [vmem:[#allocation2 + $0x24] sm:$0xf] %vm344, %v1085
      %1096 = vst.msk [vmem:[#allocation2 + $0x28] sm:$0xf] %vm344, %v1087
      %1097 = vst.msk [vmem:[#allocation2 + $0x2c] sm:$0xf] %vm344, %v1089
      %v1098 = vld [vmem:[%s833] sm:$0xf]
      %v1099 = vld [vmem:[%s833 + $0x4] sm:$0xf]
      %v1100 = vld [vmem:[%s833 + $0x8] sm:$0xf]
      %v1101 = vld [vmem:[%s833 + $0xc] sm:$0xf]
      %v1102 = vld [vmem:[%s833 + $0x10] sm:$0x1]
      %v1104 = vshrl.u32 %v1098, 16
      %v1106 = vrot.slane %v1104, 4
      %v1107 = vshll.u32 %v1098, 16
      %v1109 = vrot.slane %v1107, 5
      %v1110 = vor.u32 %v1106, %v1109
      %v1111 = vrot.slane %v1110, 4
      %v1113 = vshll.u32 %v1099, 16
      %v1115 = vrot.slane %v1113, 5
      %v1116 = vsel %vm215, %v1111, %v1115
      %v1117 = vshrl.u32 %v1099, 16
      %v1119 = vrot.slane %v1117, 4
      %v1120 = vor.u32 %v1119, %v1115
      %v1121 = vrot.slane %v1120, 4
      %v1123 = vshll.u32 %v1100, 16
      %v1125 = vrot.slane %v1123, 5
      %v1126 = vsel %vm215, %v1121, %v1125
      %v1127 = vshrl.u32 %v1100, 16
      %v1129 = vrot.slane %v1127, 4
      %v1130 = vor.u32 %v1129, %v1125
      %v1131 = vrot.slane %v1130, 4
      %v1133 = vshll.u32 %v1101, 16
      %v1135 = vrot.slane %v1133, 5
      %v1136 = vsel %vm215, %v1131, %v1135
      %v1137 = vshrl.u32 %v1101, 16
      %v1139 = vrot.slane %v1137, 4
      %v1140 = vor.u32 %v1139, %v1135
      %v1141 = vrot.slane %v1140, 4
      %v1143 = vshll.u32 %v1102, 16
      %v1145 = vrot.slane %v1143, 5
      %v1146 = vsel %vm215, %v1141, %v1145
      %1147 = vrot.lane.b32.xlu0 %v1116, 12
      %v1148 = vpop.permute.xlu0 %1147
      %1149 = vrot.lane.b32.xlu0 %v1126, 12
      %v1150 = vpop.permute.xlu0 %1149
      %1151 = vrot.lane.b32.xlu0 %v1136, 12
      %v1152 = vpop.permute.xlu0 %1151
      %1153 = vrot.lane.b32.xlu0 %v1146, 12
      %v1154 = vpop.permute.xlu0 %1153
      %1159 = vst.msk [vmem:[#allocation2 + $0x20] sm:$0xf] %vm410, %v1148
      %1160 = vst.msk [vmem:[#allocation2 + $0x24] sm:$0xf] %vm410, %v1150
      %1161 = vst.msk [vmem:[#allocation2 + $0x28] sm:$0xf] %vm410, %v1152
      %1162 = vst.msk [vmem:[#allocation2 + $0x2c] sm:$0xf] %vm410, %v1154
      %v1163 = vld [vmem:[%s833] sm:$0xe]
      %v1164 = vld [vmem:[%s833 + $0x4] sm:$0xf]
      %v1165 = vld [vmem:[%s833 + $0x8] sm:$0xf]
      %v1166 = vld [vmem:[%s833 + $0xc] sm:$0xf]
      %v1167 = vld [vmem:[%s833 + $0x10] sm:$0x1]
      %v1173 = vrot.slane %v1163, 5
      %v1174 = vrot.slane %v1173, 4
      %v1175 = vrot.slane %v1164, 5
      %v1176 = vsel %vm289, %v1174, %v1175
      %v1177 = vrot.slane %v1175, 4
      %v1178 = vrot.slane %v1165, 5
      %v1179 = vsel %vm289, %v1177, %v1178
      %v1180 = vrot.slane %v1178, 4
      %v1181 = vrot.slane %v1166, 5
      %v1182 = vsel %vm289, %v1180, %v1181
      %v1183 = vrot.slane %v1181, 4
      %v1184 = vrot.slane %v1167, 5
      %v1185 = vsel %vm289, %v1183, %v1184
      %1186 = vrot.lane.b32.xlu0 %v1176, 15
      %v1187 = vpop.permute.xlu0 %1186
      %1188 = vrot.lane.b32.xlu0 %v1179, 15
      %v1189 = vpop.permute.xlu0 %1188
      %1190 = vrot.lane.b32.xlu0 %v1182, 15
      %v1191 = vpop.permute.xlu0 %1190
      %1192 = vrot.lane.b32.xlu0 %v1185, 15
      %v1193 = vpop.permute.xlu0 %1192
      %1198 = vst.msk [vmem:[#allocation2 + $0x20] sm:$0xf] %vm450, %v1187
      %1199 = vst.msk [vmem:[#allocation2 + $0x24] sm:$0xf] %vm450, %v1189
      %1200 = vst.msk [vmem:[#allocation2 + $0x28] sm:$0xf] %vm450, %v1191
      %1201 = vst.msk [vmem:[#allocation2 + $0x2c] sm:$0xf] %vm450, %v1193
      %s1202 = sadd.s32 %s195, 4
      %s1203 = smul.u32 %s1202, 5
      %s1204 = smul.addr %s1203, 4
      %s1205 = scalar_lea.vmem %s183, %s1204
      %v1206 = vld [vmem:[%s1205] sm:$0xf]
      %v1207 = vld [vmem:[%s1205 + $0x4] sm:$0xf]
      %v1208 = vld [vmem:[%s1205 + $0x8] sm:$0xf]
      %v1209 = vld [vmem:[%s1205 + $0xc] sm:$0xf]
      %1214 = vrot.lane.b32.xlu0 %v1206, 18
      %v1215 = vpop.permute.xlu0 %1214
      %1216 = vrot.lane.b32.xlu0 %v1207, 18
      %v1217 = vpop.permute.xlu0 %1216
      %1218 = vrot.lane.b32.xlu0 %v1208, 18
      %v1219 = vpop.permute.xlu0 %1218
      %1220 = vrot.lane.b32.xlu0 %v1209, 18
      %v1221 = vpop.permute.xlu0 %1220
      %1226 = vst.msk [vmem:[#allocation2 + $0x20] sm:$0xf] %vm479, %v1215
      %1227 = vst.msk [vmem:[#allocation2 + $0x24] sm:$0xf] %vm479, %v1217
      %1228 = vst.msk [vmem:[#allocation2 + $0x28] sm:$0xf] %vm479, %v1219
      %1229 = vst.msk [vmem:[#allocation2 + $0x2c] sm:$0xf] %vm479, %v1221
      %v1230 = vld [vmem:[%s1205] sm:$0xf]
      %v1231 = vld [vmem:[%s1205 + $0x4] sm:$0xf]
      %v1232 = vld [vmem:[%s1205 + $0x8] sm:$0xf]
      %v1233 = vld [vmem:[%s1205 + $0xc] sm:$0xf]
      %v1234 = vld [vmem:[%s1205 + $0x10] sm:$0x1]
      %v1236 = vshrl.u32 %v1230, 16
      %v1238 = vrot.slane %v1236, 4
      %v1239 = vshll.u32 %v1230, 16
      %v1241 = vrot.slane %v1239, 5
      %v1242 = vor.u32 %v1238, %v1241
      %v1243 = vrot.slane %v1242, 4
      %v1245 = vshll.u32 %v1231, 16
      %v1247 = vrot.slane %v1245, 5
      %v1248 = vsel %vm215, %v1243, %v1247
      %v1249 = vshrl.u32 %v1231, 16
      %v1251 = vrot.slane %v1249, 4
      %v1252 = vor.u32 %v1251, %v1247
      %v1253 = vrot.slane %v1252, 4
      %v1255 = vshll.u32 %v1232, 16
      %v1257 = vrot.slane %v1255, 5
      %v1258 = vsel %vm215, %v1253, %v1257
      %v1259 = vshrl.u32 %v1232, 16
      %v1261 = vrot.slane %v1259, 4
      %v1262 = vor.u32 %v1261, %v1257
      %v1263 = vrot.slane %v1262, 4
      %v1265 = vshll.u32 %v1233, 16
      %v1267 = vrot.slane %v1265, 5
      %v1268 = vsel %vm215, %v1263, %v1267
      %v1269 = vshrl.u32 %v1233, 16
      %v1271 = vrot.slane %v1269, 4
      %v1272 = vor.u32 %v1271, %v1267
      %v1273 = vrot.slane %v1272, 4
      %v1275 = vshll.u32 %v1234, 16
      %v1277 = vrot.slane %v1275, 5
      %v1278 = vsel %vm215, %v1273, %v1277
      %1279 = vrot.lane.b32.xlu0 %v1248, 21
      %v1280 = vpop.permute.xlu0 %1279
      %1281 = vrot.lane.b32.xlu0 %v1258, 21
      %v1282 = vpop.permute.xlu0 %1281
      %1283 = vrot.lane.b32.xlu0 %v1268, 21
      %v1284 = vpop.permute.xlu0 %1283
      %1285 = vrot.lane.b32.xlu0 %v1278, 21
      %v1286 = vpop.permute.xlu0 %1285
      %1291 = vst.msk [vmem:[#allocation2 + $0x20] sm:$0xf] %vm545, %v1280
      %1292 = vst.msk [vmem:[#allocation2 + $0x24] sm:$0xf] %vm545, %v1282
      %1293 = vst.msk [vmem:[#allocation2 + $0x28] sm:$0xf] %vm545, %v1284
      %1294 = vst.msk [vmem:[#allocation2 + $0x2c] sm:$0xf] %vm545, %v1286
      %v1295 = vld [vmem:[%s1205] sm:$0xe]
      %v1296 = vld [vmem:[%s1205 + $0x4] sm:$0xf]
      %v1297 = vld [vmem:[%s1205 + $0x8] sm:$0xf]
      %v1298 = vld [vmem:[%s1205 + $0xc] sm:$0xf]
      %v1299 = vld [vmem:[%s1205 + $0x10] sm:$0x1]
      %v1305 = vrot.slane %v1295, 5
      %v1306 = vrot.slane %v1305, 4
      %v1307 = vrot.slane %v1296, 5
      %v1308 = vsel %vm289, %v1306, %v1307
      %v1309 = vrot.slane %v1307, 4
      %v1310 = vrot.slane %v1297, 5
      %v1311 = vsel %vm289, %v1309, %v1310
      %v1312 = vrot.slane %v1310, 4
      %v1313 = vrot.slane %v1298, 5
      %v1314 = vsel %vm289, %v1312, %v1313
      %v1315 = vrot.slane %v1313, 4
      %v1316 = vrot.slane %v1299, 5
      %v1317 = vsel %vm289, %v1315, %v1316
      %1318 = vrot.lane.b32.xlu0 %v1308, 24
      %v1319 = vpop.permute.xlu0 %1318
      %1320 = vrot.lane.b32.xlu0 %v1311, 24
      %v1321 = vpop.permute.xlu0 %1320
      %1322 = vrot.lane.b32.xlu0 %v1314, 24
      %v1323 = vpop.permute.xlu0 %1322
      %1324 = vrot.lane.b32.xlu0 %v1317, 24
      %v1325 = vpop.permute.xlu0 %1324
      %1330 = vst.msk [vmem:[#allocation2 + $0x20] sm:$0xf] %vm585, %v1319
      %1331 = vst.msk [vmem:[#allocation2 + $0x24] sm:$0xf] %vm585, %v1321
      %1332 = vst.msk [vmem:[#allocation2 + $0x28] sm:$0xf] %vm585, %v1323
      %1333 = vst.msk [vmem:[#allocation2 + $0x2c] sm:$0xf] %vm585, %v1325
      %v1334 = vld [vmem:[%s833] sm:$0xf]
      %v1335 = vld [vmem:[%s833 + $0x4] sm:$0xf]
      %v1336 = vld [vmem:[%s833 + $0x8] sm:$0xf]
      %v1337 = vld [vmem:[%s833 + $0xc] sm:$0xf]
      %1338 = vst.msk [vmem:[#allocation2 + $0x30] sm:$0xf] %vm203, %v1334
      %1339 = vst.msk [vmem:[#allocation2 + $0x34] sm:$0xf] %vm203, %v1335
      %1340 = vst.msk [vmem:[#allocation2 + $0x38] sm:$0xf] %vm203, %v1336
      %1341 = vst.msk [vmem:[#allocation2 + $0x3c] sm:$0xf] %vm203, %v1337
      %v1342 = vld [vmem:[%s833] sm:$0xf]
      %v1343 = vld [vmem:[%s833 + $0x4] sm:$0xf]
      %v1344 = vld [vmem:[%s833 + $0x8] sm:$0xf]
      %v1345 = vld [vmem:[%s833 + $0xc] sm:$0xf]
      %v1346 = vld [vmem:[%s833 + $0x10] sm:$0x1]
      %v1348 = vshrl.u32 %v1342, 16
      %v1350 = vrot.slane %v1348, 4
      %v1351 = vshll.u32 %v1342, 16
      %v1353 = vrot.slane %v1351, 5
      %v1354 = vor.u32 %v1350, %v1353
      %v1355 = vrot.slane %v1354, 4
      %v1357 = vshll.u32 %v1343, 16
      %v1359 = vrot.slane %v1357, 5
      %v1360 = vsel %vm215, %v1355, %v1359
      %v1361 = vshrl.u32 %v1343, 16
      %v1363 = vrot.slane %v1361, 4
      %v1364 = vor.u32 %v1363, %v1359
      %v1365 = vrot.slane %v1364, 4
      %v1367 = vshll.u32 %v1344, 16
      %v1369 = vrot.slane %v1367, 5
      %v1370 = vsel %vm215, %v1365, %v1369
      %v1371 = vshrl.u32 %v1344, 16
      %v1373 = vrot.slane %v1371, 4
      %v1374 = vor.u32 %v1373, %v1369
      %v1375 = vrot.slane %v1374, 4
      %v1377 = vshll.u32 %v1345, 16
      %v1379 = vrot.slane %v1377, 5
      %v1380 = vsel %vm215, %v1375, %v1379
      %v1381 = vshrl.u32 %v1345, 16
      %v1383 = vrot.slane %v1381, 4
      %v1384 = vor.u32 %v1383, %v1379
      %v1385 = vrot.slane %v1384, 4
      %v1387 = vshll.u32 %v1346, 16
      %v1389 = vrot.slane %v1387, 5
      %v1390 = vsel %vm215, %v1385, %v1389
      %1391 = vrot.lane.b32.xlu0 %v1360, 3
      %v1392 = vpop.permute.xlu0 %1391
      %1393 = vrot.lane.b32.xlu0 %v1370, 3
      %v1394 = vpop.permute.xlu0 %1393
      %1395 = vrot.lane.b32.xlu0 %v1380, 3
      %v1396 = vpop.permute.xlu0 %1395
      %1397 = vrot.lane.b32.xlu0 %v1390, 3
      %v1398 = vpop.permute.xlu0 %1397
      %1403 = vst.msk [vmem:[#allocation2 + $0x30] sm:$0xf] %vm272, %v1392
      %1404 = vst.msk [vmem:[#allocation2 + $0x34] sm:$0xf] %vm272, %v1394
      %1405 = vst.msk [vmem:[#allocation2 + $0x38] sm:$0xf] %vm272, %v1396
      %1406 = vst.msk [vmem:[#allocation2 + $0x3c] sm:$0xf] %vm272, %v1398
      %v1407 = vld [vmem:[%s833] sm:$0xe]
      %v1408 = vld [vmem:[%s833 + $0x4] sm:$0xf]
      %v1409 = vld [vmem:[%s833 + $0x8] sm:$0xf]
      %v1410 = vld [vmem:[%s833 + $0xc] sm:$0xf]
      %v1411 = vld [vmem:[%s833 + $0x10] sm:$0x1]
      %v1417 = vrot.slane %v1407, 5
      %v1418 = vrot.slane %v1417, 4
      %v1419 = vrot.slane %v1408, 5
      %v1420 = vsel %vm289, %v1418, %v1419
      %v1421 = vrot.slane %v1419, 4
      %v1422 = vrot.slane %v1409, 5
      %v1423 = vsel %vm289, %v1421, %v1422
      %v1424 = vrot.slane %v1422, 4
      %v1425 = vrot.slane %v1410, 5
      %v1426 = vsel %vm289, %v1424, %v1425
      %v1427 = vrot.slane %v1425, 4
      %v1428 = vrot.slane %v1411, 5
      %v1429 = vsel %vm289, %v1427, %v1428
      %1430 = vrot.lane.b32.xlu0 %v1420, 6
      %v1431 = vpop.permute.xlu0 %1430
      %1432 = vrot.lane.b32.xlu0 %v1423, 6
      %v1433 = vpop.permute.xlu0 %1432
      %1434 = vrot.lane.b32.xlu0 %v1426, 6
      %v1435 = vpop.permute.xlu0 %1434
      %1436 = vrot.lane.b32.xlu0 %v1429, 6
      %v1437 = vpop.permute.xlu0 %1436
      %1442 = vst.msk [vmem:[#allocation2 + $0x30] sm:$0xf] %vm315, %v1431
      %1443 = vst.msk [vmem:[#allocation2 + $0x34] sm:$0xf] %vm315, %v1433
      %1444 = vst.msk [vmem:[#allocation2 + $0x38] sm:$0xf] %vm315, %v1435
      %1445 = vst.msk [vmem:[#allocation2 + $0x3c] sm:$0xf] %vm315, %v1437
      %v1446 = vld [vmem:[%s1205] sm:$0xf]
      %v1447 = vld [vmem:[%s1205 + $0x4] sm:$0xf]
      %v1448 = vld [vmem:[%s1205 + $0x8] sm:$0xf]
      %v1449 = vld [vmem:[%s1205 + $0xc] sm:$0xf]
      %1454 = vrot.lane.b32.xlu0 %v1446, 9
      %v1455 = vpop.permute.xlu0 %1454
      %1456 = vrot.lane.b32.xlu0 %v1447, 9
      %v1457 = vpop.permute.xlu0 %1456
      %1458 = vrot.lane.b32.xlu0 %v1448, 9
      %v1459 = vpop.permute.xlu0 %1458
      %1460 = vrot.lane.b32.xlu0 %v1449, 9
      %v1461 = vpop.permute.xlu0 %1460
      %1466 = vst.msk [vmem:[#allocation2 + $0x30] sm:$0xf] %vm344, %v1455
      %1467 = vst.msk [vmem:[#allocation2 + $0x34] sm:$0xf] %vm344, %v1457
      %1468 = vst.msk [vmem:[#allocation2 + $0x38] sm:$0xf] %vm344, %v1459
      %1469 = vst.msk [vmem:[#allocation2 + $0x3c] sm:$0xf] %vm344, %v1461
      %v1470 = vld [vmem:[%s1205] sm:$0xf]
      %v1471 = vld [vmem:[%s1205 + $0x4] sm:$0xf]
      %v1472 = vld [vmem:[%s1205 + $0x8] sm:$0xf]
      %v1473 = vld [vmem:[%s1205 + $0xc] sm:$0xf]
      %v1474 = vld [vmem:[%s1205 + $0x10] sm:$0x1]
      %v1476 = vshrl.u32 %v1470, 16
      %v1478 = vrot.slane %v1476, 4
      %v1479 = vshll.u32 %v1470, 16
      %v1481 = vrot.slane %v1479, 5
      %v1482 = vor.u32 %v1478, %v1481
      %v1483 = vrot.slane %v1482, 4
      %v1485 = vshll.u32 %v1471, 16
      %v1487 = vrot.slane %v1485, 5
      %v1488 = vsel %vm215, %v1483, %v1487
      %v1489 = vshrl.u32 %v1471, 16
      %v1491 = vrot.slane %v1489, 4
      %v1492 = vor.u32 %v1491, %v1487
      %v1493 = vrot.slane %v1492, 4
      %v1495 = vshll.u32 %v1472, 16
      %v1497 = vrot.slane %v1495, 5
      %v1498 = vsel %vm215, %v1493, %v1497
      %v1499 = vshrl.u32 %v1472, 16
      %v1501 = vrot.slane %v1499, 4
      %v1502 = vor.u32 %v1501, %v1497
      %v1503 = vrot.slane %v1502, 4
      %v1505 = vshll.u32 %v1473, 16
      %v1507 = vrot.slane %v1505, 5
      %v1508 = vsel %vm215, %v1503, %v1507
      %v1509 = vshrl.u32 %v1473, 16
      %v1511 = vrot.slane %v1509, 4
      %v1512 = vor.u32 %v1511, %v1507
      %v1513 = vrot.slane %v1512, 4
      %v1515 = vshll.u32 %v1474, 16
      %v1517 = vrot.slane %v1515, 5
      %v1518 = vsel %vm215, %v1513, %v1517
      %1519 = vrot.lane.b32.xlu0 %v1488, 12
      %v1520 = vpop.permute.xlu0 %1519
      %1521 = vrot.lane.b32.xlu0 %v1498, 12
      %v1522 = vpop.permute.xlu0 %1521
      %1523 = vrot.lane.b32.xlu0 %v1508, 12
      %v1524 = vpop.permute.xlu0 %1523
      %1525 = vrot.lane.b32.xlu0 %v1518, 12
      %v1526 = vpop.permute.xlu0 %1525
      %1531 = vst.msk [vmem:[#allocation2 + $0x30] sm:$0xf] %vm410, %v1520
      %1532 = vst.msk [vmem:[#allocation2 + $0x34] sm:$0xf] %vm410, %v1522
      %1533 = vst.msk [vmem:[#allocation2 + $0x38] sm:$0xf] %vm410, %v1524
      %1534 = vst.msk [vmem:[#allocation2 + $0x3c] sm:$0xf] %vm410, %v1526
      %v1535 = vld [vmem:[%s1205] sm:$0xe]
      %v1536 = vld [vmem:[%s1205 + $0x4] sm:$0xf]
      %v1537 = vld [vmem:[%s1205 + $0x8] sm:$0xf]
      %v1538 = vld [vmem:[%s1205 + $0xc] sm:$0xf]
      %v1539 = vld [vmem:[%s1205 + $0x10] sm:$0x1]
      %v1545 = vrot.slane %v1535, 5
      %v1546 = vrot.slane %v1545, 4
      %v1547 = vrot.slane %v1536, 5
      %v1548 = vsel %vm289, %v1546, %v1547
      %v1549 = vrot.slane %v1547, 4
      %v1550 = vrot.slane %v1537, 5
      %v1551 = vsel %vm289, %v1549, %v1550
      %v1552 = vrot.slane %v1550, 4
      %v1553 = vrot.slane %v1538, 5
      %v1554 = vsel %vm289, %v1552, %v1553
      %v1555 = vrot.slane %v1553, 4
      %v1556 = vrot.slane %v1539, 5
      %v1557 = vsel %vm289, %v1555, %v1556
      %1558 = vrot.lane.b32.xlu0 %v1548, 15
      %v1559 = vpop.permute.xlu0 %1558
      %1560 = vrot.lane.b32.xlu0 %v1551, 15
      %v1561 = vpop.permute.xlu0 %1560
      %1562 = vrot.lane.b32.xlu0 %v1554, 15
      %v1563 = vpop.permute.xlu0 %1562
      %1564 = vrot.lane.b32.xlu0 %v1557, 15
      %v1565 = vpop.permute.xlu0 %1564
      %1570 = vst.msk [vmem:[#allocation2 + $0x30] sm:$0xf] %vm450, %v1559
      %1571 = vst.msk [vmem:[#allocation2 + $0x34] sm:$0xf] %vm450, %v1561
      %1572 = vst.msk [vmem:[#allocation2 + $0x38] sm:$0xf] %vm450, %v1563
      %1573 = vst.msk [vmem:[#allocation2 + $0x3c] sm:$0xf] %vm450, %v1565
      %s1574 = sadd.s32 %s195, 5
      %s1575 = smul.u32 %s1574, 5
      %s1576 = smul.addr %s1575, 4
      %s1577 = scalar_lea.vmem %s183, %s1576
      %v1578 = vld [vmem:[%s1577] sm:$0xf]
      %v1579 = vld [vmem:[%s1577 + $0x4] sm:$0xf]
      %v1580 = vld [vmem:[%s1577 + $0x8] sm:$0xf]
      %v1581 = vld [vmem:[%s1577 + $0xc] sm:$0xf]
      %1586 = vrot.lane.b32.xlu0 %v1578, 18
      %v1587 = vpop.permute.xlu0 %1586
      %1588 = vrot.lane.b32.xlu0 %v1579, 18
      %v1589 = vpop.permute.xlu0 %1588
      %1590 = vrot.lane.b32.xlu0 %v1580, 18
      %v1591 = vpop.permute.xlu0 %1590
      %1592 = vrot.lane.b32.xlu0 %v1581, 18
      %v1593 = vpop.permute.xlu0 %1592
      %1598 = vst.msk [vmem:[#allocation2 + $0x30] sm:$0xf] %vm479, %v1587
      %1599 = vst.msk [vmem:[#allocation2 + $0x34] sm:$0xf] %vm479, %v1589
      %1600 = vst.msk [vmem:[#allocation2 + $0x38] sm:$0xf] %vm479, %v1591
      %1601 = vst.msk [vmem:[#allocation2 + $0x3c] sm:$0xf] %vm479, %v1593
      %v1602 = vld [vmem:[%s1577] sm:$0xf]
      %v1603 = vld [vmem:[%s1577 + $0x4] sm:$0xf]
      %v1604 = vld [vmem:[%s1577 + $0x8] sm:$0xf]
      %v1605 = vld [vmem:[%s1577 + $0xc] sm:$0xf]
      %v1606 = vld [vmem:[%s1577 + $0x10] sm:$0x1]
      %v1608 = vshrl.u32 %v1602, 16
      %v1610 = vrot.slane %v1608, 4
      %v1611 = vshll.u32 %v1602, 16
      %v1613 = vrot.slane %v1611, 5
      %v1614 = vor.u32 %v1610, %v1613
      %v1615 = vrot.slane %v1614, 4
      %v1617 = vshll.u32 %v1603, 16
      %v1619 = vrot.slane %v1617, 5
      %v1620 = vsel %vm215, %v1615, %v1619
      %v1621 = vshrl.u32 %v1603, 16
      %v1623 = vrot.slane %v1621, 4
      %v1624 = vor.u32 %v1623, %v1619
      %v1625 = vrot.slane %v1624, 4
      %v1627 = vshll.u32 %v1604, 16
      %v1629 = vrot.slane %v1627, 5
      %v1630 = vsel %vm215, %v1625, %v1629
      %v1631 = vshrl.u32 %v1604, 16
      %v1633 = vrot.slane %v1631, 4
      %v1634 = vor.u32 %v1633, %v1629
      %v1635 = vrot.slane %v1634, 4
      %v1637 = vshll.u32 %v1605, 16
      %v1639 = vrot.slane %v1637, 5
      %v1640 = vsel %vm215, %v1635, %v1639
      %v1641 = vshrl.u32 %v1605, 16
      %v1643 = vrot.slane %v1641, 4
      %v1644 = vor.u32 %v1643, %v1639
      %v1645 = vrot.slane %v1644, 4
      %v1647 = vshll.u32 %v1606, 16
      %v1649 = vrot.slane %v1647, 5
      %v1650 = vsel %vm215, %v1645, %v1649
      %1651 = vrot.lane.b32.xlu0 %v1620, 21
      %v1652 = vpop.permute.xlu0 %1651
      %1653 = vrot.lane.b32.xlu0 %v1630, 21
      %v1654 = vpop.permute.xlu0 %1653
      %1655 = vrot.lane.b32.xlu0 %v1640, 21
      %v1656 = vpop.permute.xlu0 %1655
      %1657 = vrot.lane.b32.xlu0 %v1650, 21
      %v1658 = vpop.permute.xlu0 %1657
      %1663 = vst.msk [vmem:[#allocation2 + $0x30] sm:$0xf] %vm545, %v1652
      %1664 = vst.msk [vmem:[#allocation2 + $0x34] sm:$0xf] %vm545, %v1654
      %1665 = vst.msk [vmem:[#allocation2 + $0x38] sm:$0xf] %vm545, %v1656
      %1666 = vst.msk [vmem:[#allocation2 + $0x3c] sm:$0xf] %vm545, %v1658
      %v1667 = vld [vmem:[%s1577] sm:$0xe]
      %v1668 = vld [vmem:[%s1577 + $0x4] sm:$0xf]
      %v1669 = vld [vmem:[%s1577 + $0x8] sm:$0xf]
      %v1670 = vld [vmem:[%s1577 + $0xc] sm:$0xf]
      %v1671 = vld [vmem:[%s1577 + $0x10] sm:$0x1]
      %v1677 = vrot.slane %v1667, 5
      %v1678 = vrot.slane %v1677, 4
      %v1679 = vrot.slane %v1668, 5
      %v1680 = vsel %vm289, %v1678, %v1679
      %v1681 = vrot.slane %v1679, 4
      %v1682 = vrot.slane %v1669, 5
      %v1683 = vsel %vm289, %v1681, %v1682
      %v1684 = vrot.slane %v1682, 4
      %v1685 = vrot.slane %v1670, 5
      %v1686 = vsel %vm289, %v1684, %v1685
      %v1687 = vrot.slane %v1685, 4
      %v1688 = vrot.slane %v1671, 5
      %v1689 = vsel %vm289, %v1687, %v1688
      %1690 = vrot.lane.b32.xlu0 %v1680, 24
      %v1691 = vpop.permute.xlu0 %1690
      %1692 = vrot.lane.b32.xlu0 %v1683, 24
      %v1693 = vpop.permute.xlu0 %1692
      %1694 = vrot.lane.b32.xlu0 %v1686, 24
      %v1695 = vpop.permute.xlu0 %1694
      %1696 = vrot.lane.b32.xlu0 %v1689, 24
      %v1697 = vpop.permute.xlu0 %1696
      %1702 = vst.msk [vmem:[#allocation2 + $0x30] sm:$0xf] %vm585, %v1691
      %1703 = vst.msk [vmem:[#allocation2 + $0x34] sm:$0xf] %vm585, %v1693
      %1704 = vst.msk [vmem:[#allocation2 + $0x38] sm:$0xf] %vm585, %v1695
      %1705 = vst.msk [vmem:[#allocation2 + $0x3c] sm:$0xf] %vm585, %v1697
      %v1706 = vld [vmem:[%s1205] sm:$0xf]
      %v1707 = vld [vmem:[%s1205 + $0x4] sm:$0xf]
      %v1708 = vld [vmem:[%s1205 + $0x8] sm:$0xf]
      %v1709 = vld [vmem:[%s1205 + $0xc] sm:$0xf]
      %1710 = vst.msk [vmem:[#allocation2 + $0x40] sm:$0xf] %vm203, %v1706
      %1711 = vst.msk [vmem:[#allocation2 + $0x44] sm:$0xf] %vm203, %v1707
      %1712 = vst.msk [vmem:[#allocation2 + $0x48] sm:$0xf] %vm203, %v1708
      %1713 = vst.msk [vmem:[#allocation2 + $0x4c] sm:$0xf] %vm203, %v1709
      %v1714 = vld [vmem:[%s1205] sm:$0xf]
      %v1715 = vld [vmem:[%s1205 + $0x4] sm:$0xf]
      %v1716 = vld [vmem:[%s1205 + $0x8] sm:$0xf]
      %v1717 = vld [vmem:[%s1205 + $0xc] sm:$0xf]
      %v1718 = vld [vmem:[%s1205 + $0x10] sm:$0x1]
      %v1720 = vshrl.u32 %v1714, 16
      %v1722 = vrot.slane %v1720, 4
      %v1723 = vshll.u32 %v1714, 16
      %v1725 = vrot.slane %v1723, 5
      %v1726 = vor.u32 %v1722, %v1725
      %v1727 = vrot.slane %v1726, 4
      %v1729 = vshll.u32 %v1715, 16
      %v1731 = vrot.slane %v1729, 5
      %v1732 = vsel %vm215, %v1727, %v1731
      %v1733 = vshrl.u32 %v1715, 16
      %v1735 = vrot.slane %v1733, 4
      %v1736 = vor.u32 %v1735, %v1731
      %v1737 = vrot.slane %v1736, 4
      %v1739 = vshll.u32 %v1716, 16
      %v1741 = vrot.slane %v1739, 5
      %v1742 = vsel %vm215, %v1737, %v1741
      %v1743 = vshrl.u32 %v1716, 16
      %v1745 = vrot.slane %v1743, 4
      %v1746 = vor.u32 %v1745, %v1741
      %v1747 = vrot.slane %v1746, 4
      %v1749 = vshll.u32 %v1717, 16
      %v1751 = vrot.slane %v1749, 5
      %v1752 = vsel %vm215, %v1747, %v1751
      %v1753 = vshrl.u32 %v1717, 16
      %v1755 = vrot.slane %v1753, 4
      %v1756 = vor.u32 %v1755, %v1751
      %v1757 = vrot.slane %v1756, 4
      %v1759 = vshll.u32 %v1718, 16
      %v1761 = vrot.slane %v1759, 5
      %v1762 = vsel %vm215, %v1757, %v1761
      %1763 = vrot.lane.b32.xlu0 %v1732, 3
      %v1764 = vpop.permute.xlu0 %1763
      %1765 = vrot.lane.b32.xlu0 %v1742, 3
      %v1766 = vpop.permute.xlu0 %1765
      %1767 = vrot.lane.b32.xlu0 %v1752, 3
      %v1768 = vpop.permute.xlu0 %1767
      %1769 = vrot.lane.b32.xlu0 %v1762, 3
      %v1770 = vpop.permute.xlu0 %1769
      %1775 = vst.msk [vmem:[#allocation2 + $0x40] sm:$0xf] %vm272, %v1764
      %1776 = vst.msk [vmem:[#allocation2 + $0x44] sm:$0xf] %vm272, %v1766
      %1777 = vst.msk [vmem:[#allocation2 + $0x48] sm:$0xf] %vm272, %v1768
      %1778 = vst.msk [vmem:[#allocation2 + $0x4c] sm:$0xf] %vm272, %v1770
      %v1779 = vld [vmem:[%s1205] sm:$0xe]
      %v1780 = vld [vmem:[%s1205 + $0x4] sm:$0xf]
      %v1781 = vld [vmem:[%s1205 + $0x8] sm:$0xf]
      %v1782 = vld [vmem:[%s1205 + $0xc] sm:$0xf]
      %v1783 = vld [vmem:[%s1205 + $0x10] sm:$0x1]
      %v1789 = vrot.slane %v1779, 5
      %v1790 = vrot.slane %v1789, 4
      %v1791 = vrot.slane %v1780, 5
      %v1792 = vsel %vm289, %v1790, %v1791
      %v1793 = vrot.slane %v1791, 4
      %v1794 = vrot.slane %v1781, 5
      %v1795 = vsel %vm289, %v1793, %v1794
      %v1796 = vrot.slane %v1794, 4
      %v1797 = vrot.slane %v1782, 5
      %v1798 = vsel %vm289, %v1796, %v1797
      %v1799 = vrot.slane %v1797, 4
      %v1800 = vrot.slane %v1783, 5
      %v1801 = vsel %vm289, %v1799, %v1800
      %1802 = vrot.lane.b32.xlu0 %v1792, 6
      %v1803 = vpop.permute.xlu0 %1802
      %1804 = vrot.lane.b32.xlu0 %v1795, 6
      %v1805 = vpop.permute.xlu0 %1804
      %1806 = vrot.lane.b32.xlu0 %v1798, 6
      %v1807 = vpop.permute.xlu0 %1806
      %1808 = vrot.lane.b32.xlu0 %v1801, 6
      %v1809 = vpop.permute.xlu0 %1808
      %1814 = vst.msk [vmem:[#allocation2 + $0x40] sm:$0xf] %vm315, %v1803
      %1815 = vst.msk [vmem:[#allocation2 + $0x44] sm:$0xf] %vm315, %v1805
      %1816 = vst.msk [vmem:[#allocation2 + $0x48] sm:$0xf] %vm315, %v1807
      %1817 = vst.msk [vmem:[#allocation2 + $0x4c] sm:$0xf] %vm315, %v1809
      %v1818 = vld [vmem:[%s1577] sm:$0xf]
      %v1819 = vld [vmem:[%s1577 + $0x4] sm:$0xf]
      %v1820 = vld [vmem:[%s1577 + $0x8] sm:$0xf]
      %v1821 = vld [vmem:[%s1577 + $0xc] sm:$0xf]
      %1826 = vrot.lane.b32.xlu0 %v1818, 9
      %v1827 = vpop.permute.xlu0 %1826
      %1828 = vrot.lane.b32.xlu0 %v1819, 9
      %v1829 = vpop.permute.xlu0 %1828
      %1830 = vrot.lane.b32.xlu0 %v1820, 9
      %v1831 = vpop.permute.xlu0 %1830
      %1832 = vrot.lane.b32.xlu0 %v1821, 9
      %v1833 = vpop.permute.xlu0 %1832
      %1838 = vst.msk [vmem:[#allocation2 + $0x40] sm:$0xf] %vm344, %v1827
      %1839 = vst.msk [vmem:[#allocation2 + $0x44] sm:$0xf] %vm344, %v1829
      %1840 = vst.msk [vmem:[#allocation2 + $0x48] sm:$0xf] %vm344, %v1831
      %1841 = vst.msk [vmem:[#allocation2 + $0x4c] sm:$0xf] %vm344, %v1833
      %v1842 = vld [vmem:[%s1577] sm:$0xf]
      %v1843 = vld [vmem:[%s1577 + $0x4] sm:$0xf]
      %v1844 = vld [vmem:[%s1577 + $0x8] sm:$0xf]
      %v1845 = vld [vmem:[%s1577 + $0xc] sm:$0xf]
      %v1846 = vld [vmem:[%s1577 + $0x10] sm:$0x1]
      %v1848 = vshrl.u32 %v1842, 16
      %v1850 = vrot.slane %v1848, 4
      %v1851 = vshll.u32 %v1842, 16
      %v1853 = vrot.slane %v1851, 5
      %v1854 = vor.u32 %v1850, %v1853
      %v1855 = vrot.slane %v1854, 4
      %v1857 = vshll.u32 %v1843, 16
      %v1859 = vrot.slane %v1857, 5
      %v1860 = vsel %vm215, %v1855, %v1859
      %v1861 = vshrl.u32 %v1843, 16
      %v1863 = vrot.slane %v1861, 4
      %v1864 = vor.u32 %v1863, %v1859
      %v1865 = vrot.slane %v1864, 4
      %v1867 = vshll.u32 %v1844, 16
      %v1869 = vrot.slane %v1867, 5
      %v1870 = vsel %vm215, %v1865, %v1869
      %v1871 = vshrl.u32 %v1844, 16
      %v1873 = vrot.slane %v1871, 4
      %v1874 = vor.u32 %v1873, %v1869
      %v1875 = vrot.slane %v1874, 4
      %v1877 = vshll.u32 %v1845, 16
      %v1879 = vrot.slane %v1877, 5
      %v1880 = vsel %vm215, %v1875, %v1879
      %v1881 = vshrl.u32 %v1845, 16
      %v1883 = vrot.slane %v1881, 4
      %v1884 = vor.u32 %v1883, %v1879
      %v1885 = vrot.slane %v1884, 4
      %v1887 = vshll.u32 %v1846, 16
      %v1889 = vrot.slane %v1887, 5
      %v1890 = vsel %vm215, %v1885, %v1889
      %1891 = vrot.lane.b32.xlu0 %v1860, 12
      %v1892 = vpop.permute.xlu0 %1891
      %1893 = vrot.lane.b32.xlu0 %v1870, 12
      %v1894 = vpop.permute.xlu0 %1893
      %1895 = vrot.lane.b32.xlu0 %v1880, 12
      %v1896 = vpop.permute.xlu0 %1895
      %1897 = vrot.lane.b32.xlu0 %v1890, 12
      %v1898 = vpop.permute.xlu0 %1897
      %1903 = vst.msk [vmem:[#allocation2 + $0x40] sm:$0xf] %vm410, %v1892
      %1904 = vst.msk [vmem:[#allocation2 + $0x44] sm:$0xf] %vm410, %v1894
      %1905 = vst.msk [vmem:[#allocation2 + $0x48] sm:$0xf] %vm410, %v1896
      %1906 = vst.msk [vmem:[#allocation2 + $0x4c] sm:$0xf] %vm410, %v1898
      %v1907 = vld [vmem:[%s1577] sm:$0xe]
      %v1908 = vld [vmem:[%s1577 + $0x4] sm:$0xf]
      %v1909 = vld [vmem:[%s1577 + $0x8] sm:$0xf]
      %v1910 = vld [vmem:[%s1577 + $0xc] sm:$0xf]
      %v1911 = vld [vmem:[%s1577 + $0x10] sm:$0x1]
      %v1917 = vrot.slane %v1907, 5
      %v1918 = vrot.slane %v1917, 4
      %v1919 = vrot.slane %v1908, 5
      %v1920 = vsel %vm289, %v1918, %v1919
      %v1921 = vrot.slane %v1919, 4
      %v1922 = vrot.slane %v1909, 5
      %v1923 = vsel %vm289, %v1921, %v1922
      %v1924 = vrot.slane %v1922, 4
      %v1925 = vrot.slane %v1910, 5
      %v1926 = vsel %vm289, %v1924, %v1925
      %v1927 = vrot.slane %v1925, 4
      %v1928 = vrot.slane %v1911, 5
      %v1929 = vsel %vm289, %v1927, %v1928
      %1930 = vrot.lane.b32.xlu0 %v1920, 15
      %v1931 = vpop.permute.xlu0 %1930
      %1932 = vrot.lane.b32.xlu0 %v1923, 15
      %v1933 = vpop.permute.xlu0 %1932
      %1934 = vrot.lane.b32.xlu0 %v1926, 15
      %v1935 = vpop.permute.xlu0 %1934
      %1936 = vrot.lane.b32.xlu0 %v1929, 15
      %v1937 = vpop.permute.xlu0 %1936
      %1942 = vst.msk [vmem:[#allocation2 + $0x40] sm:$0xf] %vm450, %v1931
      %1943 = vst.msk [vmem:[#allocation2 + $0x44] sm:$0xf] %vm450, %v1933
      %1944 = vst.msk [vmem:[#allocation2 + $0x48] sm:$0xf] %vm450, %v1935
      %1945 = vst.msk [vmem:[#allocation2 + $0x4c] sm:$0xf] %vm450, %v1937
      %s1946 = sadd.s32 %s195, 6
      %s1947 = smul.u32 %s1946, 5
      %s1948 = smul.addr %s1947, 4
      %s1949 = scalar_lea.vmem %s183, %s1948
      %v1950 = vld [vmem:[%s1949] sm:$0xf]
      %v1951 = vld [vmem:[%s1949 + $0x4] sm:$0xf]
      %v1952 = vld [vmem:[%s1949 + $0x8] sm:$0xf]
      %v1953 = vld [vmem:[%s1949 + $0xc] sm:$0xf]
      %1958 = vrot.lane.b32.xlu0 %v1950, 18
      %v1959 = vpop.permute.xlu0 %1958
      %1960 = vrot.lane.b32.xlu0 %v1951, 18
      %v1961 = vpop.permute.xlu0 %1960
      %1962 = vrot.lane.b32.xlu0 %v1952, 18
      %v1963 = vpop.permute.xlu0 %1962
      %1964 = vrot.lane.b32.xlu0 %v1953, 18
      %v1965 = vpop.permute.xlu0 %1964
      %1970 = vst.msk [vmem:[#allocation2 + $0x40] sm:$0xf] %vm479, %v1959
      %1971 = vst.msk [vmem:[#allocation2 + $0x44] sm:$0xf] %vm479, %v1961
      %1972 = vst.msk [vmem:[#allocation2 + $0x48] sm:$0xf] %vm479, %v1963
      %1973 = vst.msk [vmem:[#allocation2 + $0x4c] sm:$0xf] %vm479, %v1965
      %v1974 = vld [vmem:[%s1949] sm:$0xf]
      %v1975 = vld [vmem:[%s1949 + $0x4] sm:$0xf]
      %v1976 = vld [vmem:[%s1949 + $0x8] sm:$0xf]
      %v1977 = vld [vmem:[%s1949 + $0xc] sm:$0xf]
      %v1978 = vld [vmem:[%s1949 + $0x10] sm:$0x1]
      %v1980 = vshrl.u32 %v1974, 16
      %v1982 = vrot.slane %v1980, 4
      %v1983 = vshll.u32 %v1974, 16
      %v1985 = vrot.slane %v1983, 5
      %v1986 = vor.u32 %v1982, %v1985
      %v1987 = vrot.slane %v1986, 4
      %v1989 = vshll.u32 %v1975, 16
      %v1991 = vrot.slane %v1989, 5
      %v1992 = vsel %vm215, %v1987, %v1991
      %v1993 = vshrl.u32 %v1975, 16
      %v1995 = vrot.slane %v1993, 4
      %v1996 = vor.u32 %v1995, %v1991
      %v1997 = vrot.slane %v1996, 4
      %v1999 = vshll.u32 %v1976, 16
      %v2001 = vrot.slane %v1999, 5
      %v2002 = vsel %vm215, %v1997, %v2001
      %v2003 = vshrl.u32 %v1976, 16
      %v2005 = vrot.slane %v2003, 4
      %v2006 = vor.u32 %v2005, %v2001
      %v2007 = vrot.slane %v2006, 4
      %v2009 = vshll.u32 %v1977, 16
      %v2011 = vrot.slane %v2009, 5
      %v2012 = vsel %vm215, %v2007, %v2011
      %v2013 = vshrl.u32 %v1977, 16
      %v2015 = vrot.slane %v2013, 4
      %v2016 = vor.u32 %v2015, %v2011
      %v2017 = vrot.slane %v2016, 4
      %v2019 = vshll.u32 %v1978, 16
      %v2021 = vrot.slane %v2019, 5
      %v2022 = vsel %vm215, %v2017, %v2021
      %2023 = vrot.lane.b32.xlu0 %v1992, 21
      %v2024 = vpop.permute.xlu0 %2023
      %2025 = vrot.lane.b32.xlu0 %v2002, 21
      %v2026 = vpop.permute.xlu0 %2025
      %2027 = vrot.lane.b32.xlu0 %v2012, 21
      %v2028 = vpop.permute.xlu0 %2027
      %2029 = vrot.lane.b32.xlu0 %v2022, 21
      %v2030 = vpop.permute.xlu0 %2029
      %2035 = vst.msk [vmem:[#allocation2 + $0x40] sm:$0xf] %vm545, %v2024
      %2036 = vst.msk [vmem:[#allocation2 + $0x44] sm:$0xf] %vm545, %v2026
      %2037 = vst.msk [vmem:[#allocation2 + $0x48] sm:$0xf] %vm545, %v2028
      %2038 = vst.msk [vmem:[#allocation2 + $0x4c] sm:$0xf] %vm545, %v2030
      %v2039 = vld [vmem:[%s1949] sm:$0xe]
      %v2040 = vld [vmem:[%s1949 + $0x4] sm:$0xf]
      %v2041 = vld [vmem:[%s1949 + $0x8] sm:$0xf]
      %v2042 = vld [vmem:[%s1949 + $0xc] sm:$0xf]
      %v2043 = vld [vmem:[%s1949 + $0x10] sm:$0x1]
      %v2049 = vrot.slane %v2039, 5
      %v2050 = vrot.slane %v2049, 4
      %v2051 = vrot.slane %v2040, 5
      %v2052 = vsel %vm289, %v2050, %v2051
      %v2053 = vrot.slane %v2051, 4
      %v2054 = vrot.slane %v2041, 5
      %v2055 = vsel %vm289, %v2053, %v2054
      %v2056 = vrot.slane %v2054, 4
      %v2057 = vrot.slane %v2042, 5
      %v2058 = vsel %vm289, %v2056, %v2057
      %v2059 = vrot.slane %v2057, 4
      %v2060 = vrot.slane %v2043, 5
      %v2061 = vsel %vm289, %v2059, %v2060
      %2062 = vrot.lane.b32.xlu0 %v2052, 24
      %v2063 = vpop.permute.xlu0 %2062
      %2064 = vrot.lane.b32.xlu0 %v2055, 24
      %v2065 = vpop.permute.xlu0 %2064
      %2066 = vrot.lane.b32.xlu0 %v2058, 24
      %v2067 = vpop.permute.xlu0 %2066
      %2068 = vrot.lane.b32.xlu0 %v2061, 24
      %v2069 = vpop.permute.xlu0 %2068
      %2074 = vst.msk [vmem:[#allocation2 + $0x40] sm:$0xf] %vm585, %v2063
      %2075 = vst.msk [vmem:[#allocation2 + $0x44] sm:$0xf] %vm585, %v2065
      %2076 = vst.msk [vmem:[#allocation2 + $0x48] sm:$0xf] %vm585, %v2067
      %2077 = vst.msk [vmem:[#allocation2 + $0x4c] sm:$0xf] %vm585, %v2069
      %v2078 = vld [vmem:[%s1577] sm:$0xf]
      %v2079 = vld [vmem:[%s1577 + $0x4] sm:$0xf]
      %v2080 = vld [vmem:[%s1577 + $0x8] sm:$0xf]
      %v2081 = vld [vmem:[%s1577 + $0xc] sm:$0xf]
      %2082 = vst.msk [vmem:[#allocation2 + $0x50] sm:$0xf] %vm203, %v2078
      %2083 = vst.msk [vmem:[#allocation2 + $0x54] sm:$0xf] %vm203, %v2079
      %2084 = vst.msk [vmem:[#allocation2 + $0x58] sm:$0xf] %vm203, %v2080
      %2085 = vst.msk [vmem:[#allocation2 + $0x5c] sm:$0xf] %vm203, %v2081
      %v2086 = vld [vmem:[%s1577] sm:$0xf]
      %v2087 = vld [vmem:[%s1577 + $0x4] sm:$0xf]
      %v2088 = vld [vmem:[%s1577 + $0x8] sm:$0xf]
      %v2089 = vld [vmem:[%s1577 + $0xc] sm:$0xf]
      %v2090 = vld [vmem:[%s1577 + $0x10] sm:$0x1]
      %v2092 = vshrl.u32 %v2086, 16
      %v2094 = vrot.slane %v2092, 4
      %v2095 = vshll.u32 %v2086, 16
      %v2097 = vrot.slane %v2095, 5
      %v2098 = vor.u32 %v2094, %v2097
      %v2099 = vrot.slane %v2098, 4
      %v2101 = vshll.u32 %v2087, 16
      %v2103 = vrot.slane %v2101, 5
      %v2104 = vsel %vm215, %v2099, %v2103
      %v2105 = vshrl.u32 %v2087, 16
      %v2107 = vrot.slane %v2105, 4
      %v2108 = vor.u32 %v2107, %v2103
      %v2109 = vrot.slane %v2108, 4
      %v2111 = vshll.u32 %v2088, 16
      %v2113 = vrot.slane %v2111, 5
      %v2114 = vsel %vm215, %v2109, %v2113
      %v2115 = vshrl.u32 %v2088, 16
      %v2117 = vrot.slane %v2115, 4
      %v2118 = vor.u32 %v2117, %v2113
      %v2119 = vrot.slane %v2118, 4
      %v2121 = vshll.u32 %v2089, 16
      %v2123 = vrot.slane %v2121, 5
      %v2124 = vsel %vm215, %v2119, %v2123
      %v2125 = vshrl.u32 %v2089, 16
      %v2127 = vrot.slane %v2125, 4
      %v2128 = vor.u32 %v2127, %v2123
      %v2129 = vrot.slane %v2128, 4
      %v2131 = vshll.u32 %v2090, 16
      %v2133 = vrot.slane %v2131, 5
      %v2134 = vsel %vm215, %v2129, %v2133
      %2135 = vrot.lane.b32.xlu0 %v2104, 3
      %v2136 = vpop.permute.xlu0 %2135
      %2137 = vrot.lane.b32.xlu0 %v2114, 3
      %v2138 = vpop.permute.xlu0 %2137
      %2139 = vrot.lane.b32.xlu0 %v2124, 3
      %v2140 = vpop.permute.xlu0 %2139
      %2141 = vrot.lane.b32.xlu0 %v2134, 3
      %v2142 = vpop.permute.xlu0 %2141
      %2147 = vst.msk [vmem:[#allocation2 + $0x50] sm:$0xf] %vm272, %v2136
      %2148 = vst.msk [vmem:[#allocation2 + $0x54] sm:$0xf] %vm272, %v2138
      %2149 = vst.msk [vmem:[#allocation2 + $0x58] sm:$0xf] %vm272, %v2140
      %2150 = vst.msk [vmem:[#allocation2 + $0x5c] sm:$0xf] %vm272, %v2142
      %v2151 = vld [vmem:[%s1577] sm:$0xe]
      %v2152 = vld [vmem:[%s1577 + $0x4] sm:$0xf]
      %v2153 = vld [vmem:[%s1577 + $0x8] sm:$0xf]
      %v2154 = vld [vmem:[%s1577 + $0xc] sm:$0xf]
      %v2155 = vld [vmem:[%s1577 + $0x10] sm:$0x1]
      %v2161 = vrot.slane %v2151, 5
      %v2162 = vrot.slane %v2161, 4
      %v2163 = vrot.slane %v2152, 5
      %v2164 = vsel %vm289, %v2162, %v2163
      %v2165 = vrot.slane %v2163, 4
      %v2166 = vrot.slane %v2153, 5
      %v2167 = vsel %vm289, %v2165, %v2166
      %v2168 = vrot.slane %v2166, 4
      %v2169 = vrot.slane %v2154, 5
      %v2170 = vsel %vm289, %v2168, %v2169
      %v2171 = vrot.slane %v2169, 4
      %v2172 = vrot.slane %v2155, 5
      %v2173 = vsel %vm289, %v2171, %v2172
      %2174 = vrot.lane.b32.xlu0 %v2164, 6
      %v2175 = vpop.permute.xlu0 %2174
      %2176 = vrot.lane.b32.xlu0 %v2167, 6
      %v2177 = vpop.permute.xlu0 %2176
      %2178 = vrot.lane.b32.xlu0 %v2170, 6
      %v2179 = vpop.permute.xlu0 %2178
      %2180 = vrot.lane.b32.xlu0 %v2173, 6
      %v2181 = vpop.permute.xlu0 %2180
      %2186 = vst.msk [vmem:[#allocation2 + $0x50] sm:$0xf] %vm315, %v2175
      %2187 = vst.msk [vmem:[#allocation2 + $0x54] sm:$0xf] %vm315, %v2177
      %2188 = vst.msk [vmem:[#allocation2 + $0x58] sm:$0xf] %vm315, %v2179
      %2189 = vst.msk [vmem:[#allocation2 + $0x5c] sm:$0xf] %vm315, %v2181
      %v2190 = vld [vmem:[%s1949] sm:$0xf]
      %v2191 = vld [vmem:[%s1949 + $0x4] sm:$0xf]
      %v2192 = vld [vmem:[%s1949 + $0x8] sm:$0xf]
      %v2193 = vld [vmem:[%s1949 + $0xc] sm:$0xf]
      %2198 = vrot.lane.b32.xlu0 %v2190, 9
      %v2199 = vpop.permute.xlu0 %2198
      %2200 = vrot.lane.b32.xlu0 %v2191, 9
      %v2201 = vpop.permute.xlu0 %2200
      %2202 = vrot.lane.b32.xlu0 %v2192, 9
      %v2203 = vpop.permute.xlu0 %2202
      %2204 = vrot.lane.b32.xlu0 %v2193, 9
      %v2205 = vpop.permute.xlu0 %2204
      %2210 = vst.msk [vmem:[#allocation2 + $0x50] sm:$0xf] %vm344, %v2199
      %2211 = vst.msk [vmem:[#allocation2 + $0x54] sm:$0xf] %vm344, %v2201
      %2212 = vst.msk [vmem:[#allocation2 + $0x58] sm:$0xf] %vm344, %v2203
      %2213 = vst.msk [vmem:[#allocation2 + $0x5c] sm:$0xf] %vm344, %v2205
      %v2214 = vld [vmem:[%s1949] sm:$0xf]
      %v2215 = vld [vmem:[%s1949 + $0x4] sm:$0xf]
      %v2216 = vld [vmem:[%s1949 + $0x8] sm:$0xf]
      %v2217 = vld [vmem:[%s1949 + $0xc] sm:$0xf]
      %v2218 = vld [vmem:[%s1949 + $0x10] sm:$0x1]
      %v2220 = vshrl.u32 %v2214, 16
      %v2222 = vrot.slane %v2220, 4
      %v2223 = vshll.u32 %v2214, 16
      %v2225 = vrot.slane %v2223, 5
      %v2226 = vor.u32 %v2222, %v2225
      %v2227 = vrot.slane %v2226, 4
      %v2229 = vshll.u32 %v2215, 16
      %v2231 = vrot.slane %v2229, 5
      %v2232 = vsel %vm215, %v2227, %v2231
      %v2233 = vshrl.u32 %v2215, 16
      %v2235 = vrot.slane %v2233, 4
      %v2236 = vor.u32 %v2235, %v2231
      %v2237 = vrot.slane %v2236, 4
      %v2239 = vshll.u32 %v2216, 16
      %v2241 = vrot.slane %v2239, 5
      %v2242 = vsel %vm215, %v2237, %v2241
      %v2243 = vshrl.u32 %v2216, 16
      %v2245 = vrot.slane %v2243, 4
      %v2246 = vor.u32 %v2245, %v2241
      %v2247 = vrot.slane %v2246, 4
      %v2249 = vshll.u32 %v2217, 16
      %v2251 = vrot.slane %v2249, 5
      %v2252 = vsel %vm215, %v2247, %v2251
      %v2253 = vshrl.u32 %v2217, 16
      %v2255 = vrot.slane %v2253, 4
      %v2256 = vor.u32 %v2255, %v2251
      %v2257 = vrot.slane %v2256, 4
      %v2259 = vshll.u32 %v2218, 16
      %v2261 = vrot.slane %v2259, 5
      %v2262 = vsel %vm215, %v2257, %v2261
      %2263 = vrot.lane.b32.xlu0 %v2232, 12
      %v2264 = vpop.permute.xlu0 %2263
      %2265 = vrot.lane.b32.xlu0 %v2242, 12
      %v2266 = vpop.permute.xlu0 %2265
      %2267 = vrot.lane.b32.xlu0 %v2252, 12
      %v2268 = vpop.permute.xlu0 %2267
      %2269 = vrot.lane.b32.xlu0 %v2262, 12
      %v2270 = vpop.permute.xlu0 %2269
      %2275 = vst.msk [vmem:[#allocation2 + $0x50] sm:$0xf] %vm410, %v2264
      %2276 = vst.msk [vmem:[#allocation2 + $0x54] sm:$0xf] %vm410, %v2266
      %2277 = vst.msk [vmem:[#allocation2 + $0x58] sm:$0xf] %vm410, %v2268
      %2278 = vst.msk [vmem:[#allocation2 + $0x5c] sm:$0xf] %vm410, %v2270
      %v2279 = vld [vmem:[%s1949] sm:$0xe]
      %v2280 = vld [vmem:[%s1949 + $0x4] sm:$0xf]
      %v2281 = vld [vmem:[%s1949 + $0x8] sm:$0xf]
      %v2282 = vld [vmem:[%s1949 + $0xc] sm:$0xf]
      %v2283 = vld [vmem:[%s1949 + $0x10] sm:$0x1]
      %v2289 = vrot.slane %v2279, 5
      %v2290 = vrot.slane %v2289, 4
      %v2291 = vrot.slane %v2280, 5
      %v2292 = vsel %vm289, %v2290, %v2291
      %v2293 = vrot.slane %v2291, 4
      %v2294 = vrot.slane %v2281, 5
      %v2295 = vsel %vm289, %v2293, %v2294
      %v2296 = vrot.slane %v2294, 4
      %v2297 = vrot.slane %v2282, 5
      %v2298 = vsel %vm289, %v2296, %v2297
      %v2299 = vrot.slane %v2297, 4
      %v2300 = vrot.slane %v2283, 5
      %v2301 = vsel %vm289, %v2299, %v2300
      %2302 = vrot.lane.b32.xlu0 %v2292, 15
      %v2303 = vpop.permute.xlu0 %2302
      %2304 = vrot.lane.b32.xlu0 %v2295, 15
      %v2305 = vpop.permute.xlu0 %2304
      %2306 = vrot.lane.b32.xlu0 %v2298, 15
      %v2307 = vpop.permute.xlu0 %2306
      %2308 = vrot.lane.b32.xlu0 %v2301, 15
      %v2309 = vpop.permute.xlu0 %2308
      %2314 = vst.msk [vmem:[#allocation2 + $0x50] sm:$0xf] %vm450, %v2303
      %2315 = vst.msk [vmem:[#allocation2 + $0x54] sm:$0xf] %vm450, %v2305
      %2316 = vst.msk [vmem:[#allocation2 + $0x58] sm:$0xf] %vm450, %v2307
      %2317 = vst.msk [vmem:[#allocation2 + $0x5c] sm:$0xf] %vm450, %v2309
      %s2318 = sadd.s32 %s195, 7
      %s2319 = smul.u32 %s2318, 5
      %s2320 = smul.addr %s2319, 4
      %s2321 = scalar_lea.vmem %s183, %s2320
      %v2322 = vld [vmem:[%s2321] sm:$0xf]
      %v2323 = vld [vmem:[%s2321 + $0x4] sm:$0xf]
      %v2324 = vld [vmem:[%s2321 + $0x8] sm:$0xf]
      %v2325 = vld [vmem:[%s2321 + $0xc] sm:$0xf]
      %2330 = vrot.lane.b32.xlu0 %v2322, 18
      %v2331 = vpop.permute.xlu0 %2330
      %2332 = vrot.lane.b32.xlu0 %v2323, 18
      %v2333 = vpop.permute.xlu0 %2332
      %2334 = vrot.lane.b32.xlu0 %v2324, 18
      %v2335 = vpop.permute.xlu0 %2334
      %2336 = vrot.lane.b32.xlu0 %v2325, 18
      %v2337 = vpop.permute.xlu0 %2336
      %2342 = vst.msk [vmem:[#allocation2 + $0x50] sm:$0xf] %vm479, %v2331
      %2343 = vst.msk [vmem:[#allocation2 + $0x54] sm:$0xf] %vm479, %v2333
      %2344 = vst.msk [vmem:[#allocation2 + $0x58] sm:$0xf] %vm479, %v2335
      %2345 = vst.msk [vmem:[#allocation2 + $0x5c] sm:$0xf] %vm479, %v2337
      %v2346 = vld [vmem:[%s2321] sm:$0xf]
      %v2347 = vld [vmem:[%s2321 + $0x4] sm:$0xf]
      %v2348 = vld [vmem:[%s2321 + $0x8] sm:$0xf]
      %v2349 = vld [vmem:[%s2321 + $0xc] sm:$0xf]
      %v2350 = vld [vmem:[%s2321 + $0x10] sm:$0x1]
      %v2352 = vshrl.u32 %v2346, 16
      %v2354 = vrot.slane %v2352, 4
      %v2355 = vshll.u32 %v2346, 16
      %v2357 = vrot.slane %v2355, 5
      %v2358 = vor.u32 %v2354, %v2357
      %v2359 = vrot.slane %v2358, 4
      %v2361 = vshll.u32 %v2347, 16
      %v2363 = vrot.slane %v2361, 5
      %v2364 = vsel %vm215, %v2359, %v2363
      %v2365 = vshrl.u32 %v2347, 16
      %v2367 = vrot.slane %v2365, 4
      %v2368 = vor.u32 %v2367, %v2363
      %v2369 = vrot.slane %v2368, 4
      %v2371 = vshll.u32 %v2348, 16
      %v2373 = vrot.slane %v2371, 5
      %v2374 = vsel %vm215, %v2369, %v2373
      %v2375 = vshrl.u32 %v2348, 16
      %v2377 = vrot.slane %v2375, 4
      %v2378 = vor.u32 %v2377, %v2373
      %v2379 = vrot.slane %v2378, 4
      %v2381 = vshll.u32 %v2349, 16
      %v2383 = vrot.slane %v2381, 5
      %v2384 = vsel %vm215, %v2379, %v2383
      %v2385 = vshrl.u32 %v2349, 16
      %v2387 = vrot.slane %v2385, 4
      %v2388 = vor.u32 %v2387, %v2383
      %v2389 = vrot.slane %v2388, 4
      %v2391 = vshll.u32 %v2350, 16
      %v2393 = vrot.slane %v2391, 5
      %v2394 = vsel %vm215, %v2389, %v2393
      %2395 = vrot.lane.b32.xlu0 %v2364, 21
      %v2396 = vpop.permute.xlu0 %2395
      %2397 = vrot.lane.b32.xlu0 %v2374, 21
      %v2398 = vpop.permute.xlu0 %2397
      %2399 = vrot.lane.b32.xlu0 %v2384, 21
      %v2400 = vpop.permute.xlu0 %2399
      %2401 = vrot.lane.b32.xlu0 %v2394, 21
      %v2402 = vpop.permute.xlu0 %2401
      %2407 = vst.msk [vmem:[#allocation2 + $0x50] sm:$0xf] %vm545, %v2396
      %2408 = vst.msk [vmem:[#allocation2 + $0x54] sm:$0xf] %vm545, %v2398
      %2409 = vst.msk [vmem:[#allocation2 + $0x58] sm:$0xf] %vm545, %v2400
      %2410 = vst.msk [vmem:[#allocation2 + $0x5c] sm:$0xf] %vm545, %v2402
      %v2411 = vld [vmem:[%s2321] sm:$0xe]
      %v2412 = vld [vmem:[%s2321 + $0x4] sm:$0xf]
      %v2413 = vld [vmem:[%s2321 + $0x8] sm:$0xf]
      %v2414 = vld [vmem:[%s2321 + $0xc] sm:$0xf]
      %v2415 = vld [vmem:[%s2321 + $0x10] sm:$0x1]
      %v2421 = vrot.slane %v2411, 5
      %v2422 = vrot.slane %v2421, 4
      %v2423 = vrot.slane %v2412, 5
      %v2424 = vsel %vm289, %v2422, %v2423
      %v2425 = vrot.slane %v2423, 4
      %v2426 = vrot.slane %v2413, 5
      %v2427 = vsel %vm289, %v2425, %v2426
      %v2428 = vrot.slane %v2426, 4
      %v2429 = vrot.slane %v2414, 5
      %v2430 = vsel %vm289, %v2428, %v2429
      %v2431 = vrot.slane %v2429, 4
      %v2432 = vrot.slane %v2415, 5
      %v2433 = vsel %vm289, %v2431, %v2432
      %2434 = vrot.lane.b32.xlu0 %v2424, 24
      %v2435 = vpop.permute.xlu0 %2434
      %2436 = vrot.lane.b32.xlu0 %v2427, 24
      %v2437 = vpop.permute.xlu0 %2436
      %2438 = vrot.lane.b32.xlu0 %v2430, 24
      %v2439 = vpop.permute.xlu0 %2438
      %2440 = vrot.lane.b32.xlu0 %v2433, 24
      %v2441 = vpop.permute.xlu0 %2440
      %2446 = vst.msk [vmem:[#allocation2 + $0x50] sm:$0xf] %vm585, %v2435
      %2447 = vst.msk [vmem:[#allocation2 + $0x54] sm:$0xf] %vm585, %v2437
      %2448 = vst.msk [vmem:[#allocation2 + $0x58] sm:$0xf] %vm585, %v2439
      %2449 = vst.msk [vmem:[#allocation2 + $0x5c] sm:$0xf] %vm585, %v2441
      %v2450 = vld [vmem:[%s1949] sm:$0xf]
      %v2451 = vld [vmem:[%s1949 + $0x4] sm:$0xf]
      %v2452 = vld [vmem:[%s1949 + $0x8] sm:$0xf]
      %v2453 = vld [vmem:[%s1949 + $0xc] sm:$0xf]
      %2454 = vst.msk [vmem:[#allocation2 + $0x60] sm:$0xf] %vm203, %v2450
      %2455 = vst.msk [vmem:[#allocation2 + $0x64] sm:$0xf] %vm203, %v2451
      %2456 = vst.msk [vmem:[#allocation2 + $0x68] sm:$0xf] %vm203, %v2452
      %2457 = vst.msk [vmem:[#allocation2 + $0x6c] sm:$0xf] %vm203, %v2453
      %v2458 = vld [vmem:[%s1949] sm:$0xf]
      %v2459 = vld [vmem:[%s1949 + $0x4] sm:$0xf]
      %v2460 = vld [vmem:[%s1949 + $0x8] sm:$0xf]
      %v2461 = vld [vmem:[%s1949 + $0xc] sm:$0xf]
      %v2462 = vld [vmem:[%s1949 + $0x10] sm:$0x1]
      %v2464 = vshrl.u32 %v2458, 16
      %v2466 = vrot.slane %v2464, 4
      %v2467 = vshll.u32 %v2458, 16
      %v2469 = vrot.slane %v2467, 5
      %v2470 = vor.u32 %v2466, %v2469
      %v2471 = vrot.slane %v2470, 4
      %v2473 = vshll.u32 %v2459, 16
      %v2475 = vrot.slane %v2473, 5
      %v2476 = vsel %vm215, %v2471, %v2475
      %v2477 = vshrl.u32 %v2459, 16
      %v2479 = vrot.slane %v2477, 4
      %v2480 = vor.u32 %v2479, %v2475
      %v2481 = vrot.slane %v2480, 4
      %v2483 = vshll.u32 %v2460, 16
      %v2485 = vrot.slane %v2483, 5
      %v2486 = vsel %vm215, %v2481, %v2485
      %v2487 = vshrl.u32 %v2460, 16
      %v2489 = vrot.slane %v2487, 4
      %v2490 = vor.u32 %v2489, %v2485
      %v2491 = vrot.slane %v2490, 4
      %v2493 = vshll.u32 %v2461, 16
      %v2495 = vrot.slane %v2493, 5
      %v2496 = vsel %vm215, %v2491, %v2495
      %v2497 = vshrl.u32 %v2461, 16
      %v2499 = vrot.slane %v2497, 4
      %v2500 = vor.u32 %v2499, %v2495
      %v2501 = vrot.slane %v2500, 4
      %v2503 = vshll.u32 %v2462, 16
      %v2505 = vrot.slane %v2503, 5
      %v2506 = vsel %vm215, %v2501, %v2505
      %2507 = vrot.lane.b32.xlu0 %v2476, 3
      %v2508 = vpop.permute.xlu0 %2507
      %2509 = vrot.lane.b32.xlu0 %v2486, 3
      %v2510 = vpop.permute.xlu0 %2509
      %2511 = vrot.lane.b32.xlu0 %v2496, 3
      %v2512 = vpop.permute.xlu0 %2511
      %2513 = vrot.lane.b32.xlu0 %v2506, 3
      %v2514 = vpop.permute.xlu0 %2513
      %2519 = vst.msk [vmem:[#allocation2 + $0x60] sm:$0xf] %vm272, %v2508
      %2520 = vst.msk [vmem:[#allocation2 + $0x64] sm:$0xf] %vm272, %v2510
      %2521 = vst.msk [vmem:[#allocation2 + $0x68] sm:$0xf] %vm272, %v2512
      %2522 = vst.msk [vmem:[#allocation2 + $0x6c] sm:$0xf] %vm272, %v2514
      %v2523 = vld [vmem:[%s1949] sm:$0xe]
      %v2524 = vld [vmem:[%s1949 + $0x4] sm:$0xf]
      %v2525 = vld [vmem:[%s1949 + $0x8] sm:$0xf]
      %v2526 = vld [vmem:[%s1949 + $0xc] sm:$0xf]
      %v2527 = vld [vmem:[%s1949 + $0x10] sm:$0x1]
      %v2533 = vrot.slane %v2523, 5
      %v2534 = vrot.slane %v2533, 4
      %v2535 = vrot.slane %v2524, 5
      %v2536 = vsel %vm289, %v2534, %v2535
      %v2537 = vrot.slane %v2535, 4
      %v2538 = vrot.slane %v2525, 5
      %v2539 = vsel %vm289, %v2537, %v2538
      %v2540 = vrot.slane %v2538, 4
      %v2541 = vrot.slane %v2526, 5
      %v2542 = vsel %vm289, %v2540, %v2541
      %v2543 = vrot.slane %v2541, 4
      %v2544 = vrot.slane %v2527, 5
      %v2545 = vsel %vm289, %v2543, %v2544
      %2546 = vrot.lane.b32.xlu0 %v2536, 6
      %v2547 = vpop.permute.xlu0 %2546
      %2548 = vrot.lane.b32.xlu0 %v2539, 6
      %v2549 = vpop.permute.xlu0 %2548
      %2550 = vrot.lane.b32.xlu0 %v2542, 6
      %v2551 = vpop.permute.xlu0 %2550
      %2552 = vrot.lane.b32.xlu0 %v2545, 6
      %v2553 = vpop.permute.xlu0 %2552
      %2558 = vst.msk [vmem:[#allocation2 + $0x60] sm:$0xf] %vm315, %v2547
      %2559 = vst.msk [vmem:[#allocation2 + $0x64] sm:$0xf] %vm315, %v2549
      %2560 = vst.msk [vmem:[#allocation2 + $0x68] sm:$0xf] %vm315, %v2551
      %2561 = vst.msk [vmem:[#allocation2 + $0x6c] sm:$0xf] %vm315, %v2553
      %v2562 = vld [vmem:[%s2321] sm:$0xf]
      %v2563 = vld [vmem:[%s2321 + $0x4] sm:$0xf]
      %v2564 = vld [vmem:[%s2321 + $0x8] sm:$0xf]
      %v2565 = vld [vmem:[%s2321 + $0xc] sm:$0xf]
      %2570 = vrot.lane.b32.xlu0 %v2562, 9
      %v2571 = vpop.permute.xlu0 %2570
      %2572 = vrot.lane.b32.xlu0 %v2563, 9
      %v2573 = vpop.permute.xlu0 %2572
      %2574 = vrot.lane.b32.xlu0 %v2564, 9
      %v2575 = vpop.permute.xlu0 %2574
      %2576 = vrot.lane.b32.xlu0 %v2565, 9
      %v2577 = vpop.permute.xlu0 %2576
      %2582 = vst.msk [vmem:[#allocation2 + $0x60] sm:$0xf] %vm344, %v2571
      %2583 = vst.msk [vmem:[#allocation2 + $0x64] sm:$0xf] %vm344, %v2573
      %2584 = vst.msk [vmem:[#allocation2 + $0x68] sm:$0xf] %vm344, %v2575
      %2585 = vst.msk [vmem:[#allocation2 + $0x6c] sm:$0xf] %vm344, %v2577
      %v2586 = vld [vmem:[%s2321] sm:$0xf]
      %v2587 = vld [vmem:[%s2321 + $0x4] sm:$0xf]
      %v2588 = vld [vmem:[%s2321 + $0x8] sm:$0xf]
      %v2589 = vld [vmem:[%s2321 + $0xc] sm:$0xf]
      %v2590 = vld [vmem:[%s2321 + $0x10] sm:$0x1]
      %v2592 = vshrl.u32 %v2586, 16
      %v2594 = vrot.slane %v2592, 4
      %v2595 = vshll.u32 %v2586, 16
      %v2597 = vrot.slane %v2595, 5
      %v2598 = vor.u32 %v2594, %v2597
      %v2599 = vrot.slane %v2598, 4
      %v2601 = vshll.u32 %v2587, 16
      %v2603 = vrot.slane %v2601, 5
      %v2604 = vsel %vm215, %v2599, %v2603
      %v2605 = vshrl.u32 %v2587, 16
      %v2607 = vrot.slane %v2605, 4
      %v2608 = vor.u32 %v2607, %v2603
      %v2609 = vrot.slane %v2608, 4
      %v2611 = vshll.u32 %v2588, 16
      %v2613 = vrot.slane %v2611, 5
      %v2614 = vsel %vm215, %v2609, %v2613
      %v2615 = vshrl.u32 %v2588, 16
      %v2617 = vrot.slane %v2615, 4
      %v2618 = vor.u32 %v2617, %v2613
      %v2619 = vrot.slane %v2618, 4
      %v2621 = vshll.u32 %v2589, 16
      %v2623 = vrot.slane %v2621, 5
      %v2624 = vsel %vm215, %v2619, %v2623
      %v2625 = vshrl.u32 %v2589, 16
      %v2627 = vrot.slane %v2625, 4
      %v2628 = vor.u32 %v2627, %v2623
      %v2629 = vrot.slane %v2628, 4
      %v2631 = vshll.u32 %v2590, 16
      %v2633 = vrot.slane %v2631, 5
      %v2634 = vsel %vm215, %v2629, %v2633
      %2635 = vrot.lane.b32.xlu0 %v2604, 12
      %v2636 = vpop.permute.xlu0 %2635
      %2637 = vrot.lane.b32.xlu0 %v2614, 12
      %v2638 = vpop.permute.xlu0 %2637
      %2639 = vrot.lane.b32.xlu0 %v2624, 12
      %v2640 = vpop.permute.xlu0 %2639
      %2641 = vrot.lane.b32.xlu0 %v2634, 12
      %v2642 = vpop.permute.xlu0 %2641
      %2647 = vst.msk [vmem:[#allocation2 + $0x60] sm:$0xf] %vm410, %v2636
      %2648 = vst.msk [vmem:[#allocation2 + $0x64] sm:$0xf] %vm410, %v2638
      %2649 = vst.msk [vmem:[#allocation2 + $0x68] sm:$0xf] %vm410, %v2640
      %2650 = vst.msk [vmem:[#allocation2 + $0x6c] sm:$0xf] %vm410, %v2642
      %v2651 = vld [vmem:[%s2321] sm:$0xe]
      %v2652 = vld [vmem:[%s2321 + $0x4] sm:$0xf]
      %v2653 = vld [vmem:[%s2321 + $0x8] sm:$0xf]
      %v2654 = vld [vmem:[%s2321 + $0xc] sm:$0xf]
      %v2655 = vld [vmem:[%s2321 + $0x10] sm:$0x1]
      %v2661 = vrot.slane %v2651, 5
      %v2662 = vrot.slane %v2661, 4
      %v2663 = vrot.slane %v2652, 5
      %v2664 = vsel %vm289, %v2662, %v2663
      %v2665 = vrot.slane %v2663, 4
      %v2666 = vrot.slane %v2653, 5
      %v2667 = vsel %vm289, %v2665, %v2666
      %v2668 = vrot.slane %v2666, 4
      %v2669 = vrot.slane %v2654, 5
      %v2670 = vsel %vm289, %v2668, %v2669
      %v2671 = vrot.slane %v2669, 4
      %v2672 = vrot.slane %v2655, 5
      %v2673 = vsel %vm289, %v2671, %v2672
      %2674 = vrot.lane.b32.xlu0 %v2664, 15
      %v2675 = vpop.permute.xlu0 %2674
      %2676 = vrot.lane.b32.xlu0 %v2667, 15
      %v2677 = vpop.permute.xlu0 %2676
      %2678 = vrot.lane.b32.xlu0 %v2670, 15
      %v2679 = vpop.permute.xlu0 %2678
      %2680 = vrot.lane.b32.xlu0 %v2673, 15
      %v2681 = vpop.permute.xlu0 %2680
      %2686 = vst.msk [vmem:[#allocation2 + $0x60] sm:$0xf] %vm450, %v2675
      %2687 = vst.msk [vmem:[#allocation2 + $0x64] sm:$0xf] %vm450, %v2677
      %2688 = vst.msk [vmem:[#allocation2 + $0x68] sm:$0xf] %vm450, %v2679
      %2689 = vst.msk [vmem:[#allocation2 + $0x6c] sm:$0xf] %vm450, %v2681
      %s2690 = sadd.s32 %s195, 8
      %s2691 = smul.u32 %s2690, 5
      %s2692 = smul.addr %s2691, 4
      %s2693 = scalar_lea.vmem %s183, %s2692
      %v2694 = vld [vmem:[%s2693] sm:$0xf]
      %v2695 = vld [vmem:[%s2693 + $0x4] sm:$0xf]
      %v2696 = vld [vmem:[%s2693 + $0x8] sm:$0xf]
      %v2697 = vld [vmem:[%s2693 + $0xc] sm:$0xf]
      %2702 = vrot.lane.b32.xlu0 %v2694, 18
      %v2703 = vpop.permute.xlu0 %2702
      %2704 = vrot.lane.b32.xlu0 %v2695, 18
      %v2705 = vpop.permute.xlu0 %2704
      %2706 = vrot.lane.b32.xlu0 %v2696, 18
      %v2707 = vpop.permute.xlu0 %2706
      %2708 = vrot.lane.b32.xlu0 %v2697, 18
      %v2709 = vpop.permute.xlu0 %2708
      %2714 = vst.msk [vmem:[#allocation2 + $0x60] sm:$0xf] %vm479, %v2703
      %2715 = vst.msk [vmem:[#allocation2 + $0x64] sm:$0xf] %vm479, %v2705
      %2716 = vst.msk [vmem:[#allocation2 + $0x68] sm:$0xf] %vm479, %v2707
      %2717 = vst.msk [vmem:[#allocation2 + $0x6c] sm:$0xf] %vm479, %v2709
      %v2718 = vld [vmem:[%s2693] sm:$0xf]
      %v2719 = vld [vmem:[%s2693 + $0x4] sm:$0xf]
      %v2720 = vld [vmem:[%s2693 + $0x8] sm:$0xf]
      %v2721 = vld [vmem:[%s2693 + $0xc] sm:$0xf]
      %v2722 = vld [vmem:[%s2693 + $0x10] sm:$0x1]
      %v2724 = vshrl.u32 %v2718, 16
      %v2726 = vrot.slane %v2724, 4
      %v2727 = vshll.u32 %v2718, 16
      %v2729 = vrot.slane %v2727, 5
      %v2730 = vor.u32 %v2726, %v2729
      %v2731 = vrot.slane %v2730, 4
      %v2733 = vshll.u32 %v2719, 16
      %v2735 = vrot.slane %v2733, 5
      %v2736 = vsel %vm215, %v2731, %v2735
      %v2737 = vshrl.u32 %v2719, 16
      %v2739 = vrot.slane %v2737, 4
      %v2740 = vor.u32 %v2739, %v2735
      %v2741 = vrot.slane %v2740, 4
      %v2743 = vshll.u32 %v2720, 16
      %v2745 = vrot.slane %v2743, 5
      %v2746 = vsel %vm215, %v2741, %v2745
      %v2747 = vshrl.u32 %v2720, 16
      %v2749 = vrot.slane %v2747, 4
      %v2750 = vor.u32 %v2749, %v2745
      %v2751 = vrot.slane %v2750, 4
      %v2753 = vshll.u32 %v2721, 16
      %v2755 = vrot.slane %v2753, 5
      %v2756 = vsel %vm215, %v2751, %v2755
      %v2757 = vshrl.u32 %v2721, 16
      %v2759 = vrot.slane %v2757, 4
      %v2760 = vor.u32 %v2759, %v2755
      %v2761 = vrot.slane %v2760, 4
      %v2763 = vshll.u32 %v2722, 16
      %v2765 = vrot.slane %v2763, 5
      %v2766 = vsel %vm215, %v2761, %v2765
      %2767 = vrot.lane.b32.xlu0 %v2736, 21
      %v2768 = vpop.permute.xlu0 %2767
      %2769 = vrot.lane.b32.xlu0 %v2746, 21
      %v2770 = vpop.permute.xlu0 %2769
      %2771 = vrot.lane.b32.xlu0 %v2756, 21
      %v2772 = vpop.permute.xlu0 %2771
      %2773 = vrot.lane.b32.xlu0 %v2766, 21
      %v2774 = vpop.permute.xlu0 %2773
      %2779 = vst.msk [vmem:[#allocation2 + $0x60] sm:$0xf] %vm545, %v2768
      %2780 = vst.msk [vmem:[#allocation2 + $0x64] sm:$0xf] %vm545, %v2770
      %2781 = vst.msk [vmem:[#allocation2 + $0x68] sm:$0xf] %vm545, %v2772
      %2782 = vst.msk [vmem:[#allocation2 + $0x6c] sm:$0xf] %vm545, %v2774
      %v2783 = vld [vmem:[%s2693] sm:$0xe]
      %v2784 = vld [vmem:[%s2693 + $0x4] sm:$0xf]
      %v2785 = vld [vmem:[%s2693 + $0x8] sm:$0xf]
      %v2786 = vld [vmem:[%s2693 + $0xc] sm:$0xf]
      %v2787 = vld [vmem:[%s2693 + $0x10] sm:$0x1]
      %v2793 = vrot.slane %v2783, 5
      %v2794 = vrot.slane %v2793, 4
      %v2795 = vrot.slane %v2784, 5
      %v2796 = vsel %vm289, %v2794, %v2795
      %v2797 = vrot.slane %v2795, 4
      %v2798 = vrot.slane %v2785, 5
      %v2799 = vsel %vm289, %v2797, %v2798
      %v2800 = vrot.slane %v2798, 4
      %v2801 = vrot.slane %v2786, 5
      %v2802 = vsel %vm289, %v2800, %v2801
      %v2803 = vrot.slane %v2801, 4
      %v2804 = vrot.slane %v2787, 5
      %v2805 = vsel %vm289, %v2803, %v2804
      %2806 = vrot.lane.b32.xlu0 %v2796, 24
      %v2807 = vpop.permute.xlu0 %2806
      %2808 = vrot.lane.b32.xlu0 %v2799, 24
      %v2809 = vpop.permute.xlu0 %2808
      %2810 = vrot.lane.b32.xlu0 %v2802, 24
      %v2811 = vpop.permute.xlu0 %2810
      %2812 = vrot.lane.b32.xlu0 %v2805, 24
      %v2813 = vpop.permute.xlu0 %2812
      %2818 = vst.msk [vmem:[#allocation2 + $0x60] sm:$0xf] %vm585, %v2807
      %2819 = vst.msk [vmem:[#allocation2 + $0x64] sm:$0xf] %vm585, %v2809
      %2820 = vst.msk [vmem:[#allocation2 + $0x68] sm:$0xf] %vm585, %v2811
      %2821 = vst.msk [vmem:[#allocation2 + $0x6c] sm:$0xf] %vm585, %v2813
      %v2822 = vld [vmem:[%s2321] sm:$0xf]
      %v2823 = vld [vmem:[%s2321 + $0x4] sm:$0xf]
      %v2824 = vld [vmem:[%s2321 + $0x8] sm:$0xf]
      %v2825 = vld [vmem:[%s2321 + $0xc] sm:$0xf]
      %2826 = vst.msk [vmem:[#allocation2 + $0x70] sm:$0xf] %vm203, %v2822
      %2827 = vst.msk [vmem:[#allocation2 + $0x74] sm:$0xf] %vm203, %v2823
      %2828 = vst.msk [vmem:[#allocation2 + $0x78] sm:$0xf] %vm203, %v2824
      %2829 = vst.msk [vmem:[#allocation2 + $0x7c] sm:$0xf] %vm203, %v2825
      %v2830 = vld [vmem:[%s2321] sm:$0xf]
      %v2831 = vld [vmem:[%s2321 + $0x4] sm:$0xf]
      %v2832 = vld [vmem:[%s2321 + $0x8] sm:$0xf]
      %v2833 = vld [vmem:[%s2321 + $0xc] sm:$0xf]
      %v2834 = vld [vmem:[%s2321 + $0x10] sm:$0x1]
      %v2836 = vshrl.u32 %v2830, 16
      %v2838 = vrot.slane %v2836, 4
      %v2839 = vshll.u32 %v2830, 16
      %v2841 = vrot.slane %v2839, 5
      %v2842 = vor.u32 %v2838, %v2841
      %v2843 = vrot.slane %v2842, 4
      %v2845 = vshll.u32 %v2831, 16
      %v2847 = vrot.slane %v2845, 5
      %v2848 = vsel %vm215, %v2843, %v2847
      %v2849 = vshrl.u32 %v2831, 16
      %v2851 = vrot.slane %v2849, 4
      %v2852 = vor.u32 %v2851, %v2847
      %v2853 = vrot.slane %v2852, 4
      %v2855 = vshll.u32 %v2832, 16
      %v2857 = vrot.slane %v2855, 5
      %v2858 = vsel %vm215, %v2853, %v2857
      %v2859 = vshrl.u32 %v2832, 16
      %v2861 = vrot.slane %v2859, 4
      %v2862 = vor.u32 %v2861, %v2857
      %v2863 = vrot.slane %v2862, 4
      %v2865 = vshll.u32 %v2833, 16
      %v2867 = vrot.slane %v2865, 5
      %v2868 = vsel %vm215, %v2863, %v2867
      %v2869 = vshrl.u32 %v2833, 16
      %v2871 = vrot.slane %v2869, 4
      %v2872 = vor.u32 %v2871, %v2867
      %v2873 = vrot.slane %v2872, 4
      %v2875 = vshll.u32 %v2834, 16
      %v2877 = vrot.slane %v2875, 5
      %v2878 = vsel %vm215, %v2873, %v2877
      %2879 = vrot.lane.b32.xlu0 %v2848, 3
      %v2880 = vpop.permute.xlu0 %2879
      %2881 = vrot.lane.b32.xlu0 %v2858, 3
      %v2882 = vpop.permute.xlu0 %2881
      %2883 = vrot.lane.b32.xlu0 %v2868, 3
      %v2884 = vpop.permute.xlu0 %2883
      %2885 = vrot.lane.b32.xlu0 %v2878, 3
      %v2886 = vpop.permute.xlu0 %2885
      %2891 = vst.msk [vmem:[#allocation2 + $0x70] sm:$0xf] %vm272, %v2880
      %2892 = vst.msk [vmem:[#allocation2 + $0x74] sm:$0xf] %vm272, %v2882
      %2893 = vst.msk [vmem:[#allocation2 + $0x78] sm:$0xf] %vm272, %v2884
      %2894 = vst.msk [vmem:[#allocation2 + $0x7c] sm:$0xf] %vm272, %v2886
      %v2895 = vld [vmem:[%s2321] sm:$0xe]
      %v2896 = vld [vmem:[%s2321 + $0x4] sm:$0xf]
      %v2897 = vld [vmem:[%s2321 + $0x8] sm:$0xf]
      %v2898 = vld [vmem:[%s2321 + $0xc] sm:$0xf]
      %v2899 = vld [vmem:[%s2321 + $0x10] sm:$0x1]
      %v2905 = vrot.slane %v2895, 5
      %v2906 = vrot.slane %v2905, 4
      %v2907 = vrot.slane %v2896, 5
      %v2908 = vsel %vm289, %v2906, %v2907
      %v2909 = vrot.slane %v2907, 4
      %v2910 = vrot.slane %v2897, 5
      %v2911 = vsel %vm289, %v2909, %v2910
      %v2912 = vrot.slane %v2910, 4
      %v2913 = vrot.slane %v2898, 5
      %v2914 = vsel %vm289, %v2912, %v2913
      %v2915 = vrot.slane %v2913, 4
      %v2916 = vrot.slane %v2899, 5
      %v2917 = vsel %vm289, %v2915, %v2916
      %2918 = vrot.lane.b32.xlu0 %v2908, 6
      %v2919 = vpop.permute.xlu0 %2918
      %2920 = vrot.lane.b32.xlu0 %v2911, 6
      %v2921 = vpop.permute.xlu0 %2920
      %2922 = vrot.lane.b32.xlu0 %v2914, 6
      %v2923 = vpop.permute.xlu0 %2922
      %2924 = vrot.lane.b32.xlu0 %v2917, 6
      %v2925 = vpop.permute.xlu0 %2924
      %2930 = vst.msk [vmem:[#allocation2 + $0x70] sm:$0xf] %vm315, %v2919
      %2931 = vst.msk [vmem:[#allocation2 + $0x74] sm:$0xf] %vm315, %v2921
      %2932 = vst.msk [vmem:[#allocation2 + $0x78] sm:$0xf] %vm315, %v2923
      %2933 = vst.msk [vmem:[#allocation2 + $0x7c] sm:$0xf] %vm315, %v2925
      %v2934 = vld [vmem:[%s2693] sm:$0xf]
      %v2935 = vld [vmem:[%s2693 + $0x4] sm:$0xf]
      %v2936 = vld [vmem:[%s2693 + $0x8] sm:$0xf]
      %v2937 = vld [vmem:[%s2693 + $0xc] sm:$0xf]
      %2942 = vrot.lane.b32.xlu0 %v2934, 9
      %v2943 = vpop.permute.xlu0 %2942
      %2944 = vrot.lane.b32.xlu0 %v2935, 9
      %v2945 = vpop.permute.xlu0 %2944
      %2946 = vrot.lane.b32.xlu0 %v2936, 9
      %v2947 = vpop.permute.xlu0 %2946
      %2948 = vrot.lane.b32.xlu0 %v2937, 9
      %v2949 = vpop.permute.xlu0 %2948
      %2954 = vst.msk [vmem:[#allocation2 + $0x70] sm:$0xf] %vm344, %v2943
      %2955 = vst.msk [vmem:[#allocation2 + $0x74] sm:$0xf] %vm344, %v2945
      %2956 = vst.msk [vmem:[#allocation2 + $0x78] sm:$0xf] %vm344, %v2947
      %2957 = vst.msk [vmem:[#allocation2 + $0x7c] sm:$0xf] %vm344, %v2949
      %v2958 = vld [vmem:[%s2693] sm:$0xf]
      %v2959 = vld [vmem:[%s2693 + $0x4] sm:$0xf]
      %v2960 = vld [vmem:[%s2693 + $0x8] sm:$0xf]
      %v2961 = vld [vmem:[%s2693 + $0xc] sm:$0xf]
      %v2962 = vld [vmem:[%s2693 + $0x10] sm:$0x1]
      %v2964 = vshrl.u32 %v2958, 16
      %v2966 = vrot.slane %v2964, 4
      %v2967 = vshll.u32 %v2958, 16
      %v2969 = vrot.slane %v2967, 5
      %v2970 = vor.u32 %v2966, %v2969
      %v2971 = vrot.slane %v2970, 4
      %v2973 = vshll.u32 %v2959, 16
      %v2975 = vrot.slane %v2973, 5
      %v2976 = vsel %vm215, %v2971, %v2975
      %v2977 = vshrl.u32 %v2959, 16
      %v2979 = vrot.slane %v2977, 4
      %v2980 = vor.u32 %v2979, %v2975
      %v2981 = vrot.slane %v2980, 4
      %v2983 = vshll.u32 %v2960, 16
      %v2985 = vrot.slane %v2983, 5
      %v2986 = vsel %vm215, %v2981, %v2985
      %v2987 = vshrl.u32 %v2960, 16
      %v2989 = vrot.slane %v2987, 4
      %v2990 = vor.u32 %v2989, %v2985
      %v2991 = vrot.slane %v2990, 4
      %v2993 = vshll.u32 %v2961, 16
      %v2995 = vrot.slane %v2993, 5
      %v2996 = vsel %vm215, %v2991, %v2995
      %v2997 = vshrl.u32 %v2961, 16
      %v2999 = vrot.slane %v2997, 4
      %v3000 = vor.u32 %v2999, %v2995
      %v3001 = vrot.slane %v3000, 4
      %v3003 = vshll.u32 %v2962, 16
      %v3005 = vrot.slane %v3003, 5
      %v3006 = vsel %vm215, %v3001, %v3005
      %3007 = vrot.lane.b32.xlu0 %v2976, 12
      %v3008 = vpop.permute.xlu0 %3007
      %3009 = vrot.lane.b32.xlu0 %v2986, 12
      %v3010 = vpop.permute.xlu0 %3009
      %3011 = vrot.lane.b32.xlu0 %v2996, 12
      %v3012 = vpop.permute.xlu0 %3011
      %3013 = vrot.lane.b32.xlu0 %v3006, 12
      %v3014 = vpop.permute.xlu0 %3013
      %3019 = vst.msk [vmem:[#allocation2 + $0x70] sm:$0xf] %vm410, %v3008
      %3020 = vst.msk [vmem:[#allocation2 + $0x74] sm:$0xf] %vm410, %v3010
      %3021 = vst.msk [vmem:[#allocation2 + $0x78] sm:$0xf] %vm410, %v3012
      %3022 = vst.msk [vmem:[#allocation2 + $0x7c] sm:$0xf] %vm410, %v3014
      %v3023 = vld [vmem:[%s2693] sm:$0xe]
      %v3024 = vld [vmem:[%s2693 + $0x4] sm:$0xf]
      %v3025 = vld [vmem:[%s2693 + $0x8] sm:$0xf]
      %v3026 = vld [vmem:[%s2693 + $0xc] sm:$0xf]
      %v3027 = vld [vmem:[%s2693 + $0x10] sm:$0x1]
      %v3033 = vrot.slane %v3023, 5
      %v3034 = vrot.slane %v3033, 4
      %v3035 = vrot.slane %v3024, 5
      %v3036 = vsel %vm289, %v3034, %v3035
      %v3037 = vrot.slane %v3035, 4
      %v3038 = vrot.slane %v3025, 5
      %v3039 = vsel %vm289, %v3037, %v3038
      %v3040 = vrot.slane %v3038, 4
      %v3041 = vrot.slane %v3026, 5
      %v3042 = vsel %vm289, %v3040, %v3041
      %v3043 = vrot.slane %v3041, 4
      %v3044 = vrot.slane %v3027, 5
      %v3045 = vsel %vm289, %v3043, %v3044
      %3046 = vrot.lane.b32.xlu0 %v3036, 15
      %v3047 = vpop.permute.xlu0 %3046
      %3048 = vrot.lane.b32.xlu0 %v3039, 15
      %v3049 = vpop.permute.xlu0 %3048
      %3050 = vrot.lane.b32.xlu0 %v3042, 15
      %v3051 = vpop.permute.xlu0 %3050
      %3052 = vrot.lane.b32.xlu0 %v3045, 15
      %v3053 = vpop.permute.xlu0 %3052
      %3058 = vst.msk [vmem:[#allocation2 + $0x70] sm:$0xf] %vm450, %v3047
      %3059 = vst.msk [vmem:[#allocation2 + $0x74] sm:$0xf] %vm450, %v3049
      %3060 = vst.msk [vmem:[#allocation2 + $0x78] sm:$0xf] %vm450, %v3051
      %3061 = vst.msk [vmem:[#allocation2 + $0x7c] sm:$0xf] %vm450, %v3053
      %s3062 = sadd.s32 %s195, 9
      %s3063 = smul.u32 %s3062, 5
      %s3064 = smul.addr %s3063, 4
      %s3065 = scalar_lea.vmem %s183, %s3064
      %v3066 = vld [vmem:[%s3065] sm:$0xf]
      %v3067 = vld [vmem:[%s3065 + $0x4] sm:$0xf]
      %v3068 = vld [vmem:[%s3065 + $0x8] sm:$0xf]
      %v3069 = vld [vmem:[%s3065 + $0xc] sm:$0xf]
      %3074 = vrot.lane.b32.xlu0 %v3066, 18
      %v3075 = vpop.permute.xlu0 %3074
      %3076 = vrot.lane.b32.xlu0 %v3067, 18
      %v3077 = vpop.permute.xlu0 %3076
      %3078 = vrot.lane.b32.xlu0 %v3068, 18
      %v3079 = vpop.permute.xlu0 %3078
      %3080 = vrot.lane.b32.xlu0 %v3069, 18
      %v3081 = vpop.permute.xlu0 %3080
      %3086 = vst.msk [vmem:[#allocation2 + $0x70] sm:$0xf] %vm479, %v3075
      %3087 = vst.msk [vmem:[#allocation2 + $0x74] sm:$0xf] %vm479, %v3077
      %3088 = vst.msk [vmem:[#allocation2 + $0x78] sm:$0xf] %vm479, %v3079
      %3089 = vst.msk [vmem:[#allocation2 + $0x7c] sm:$0xf] %vm479, %v3081
      %v3090 = vld [vmem:[%s3065] sm:$0xf]
      %v3091 = vld [vmem:[%s3065 + $0x4] sm:$0xf]
      %v3092 = vld [vmem:[%s3065 + $0x8] sm:$0xf]
      %v3093 = vld [vmem:[%s3065 + $0xc] sm:$0xf]
      %v3094 = vld [vmem:[%s3065 + $0x10] sm:$0x1]
      %v3096 = vshrl.u32 %v3090, 16
      %v3098 = vrot.slane %v3096, 4
      %v3099 = vshll.u32 %v3090, 16
      %v3101 = vrot.slane %v3099, 5
      %v3102 = vor.u32 %v3098, %v3101
      %v3103 = vrot.slane %v3102, 4
      %v3105 = vshll.u32 %v3091, 16
      %v3107 = vrot.slane %v3105, 5
      %v3108 = vsel %vm215, %v3103, %v3107
      %v3109 = vshrl.u32 %v3091, 16
      %v3111 = vrot.slane %v3109, 4
      %v3112 = vor.u32 %v3111, %v3107
      %v3113 = vrot.slane %v3112, 4
      %v3115 = vshll.u32 %v3092, 16
      %v3117 = vrot.slane %v3115, 5
      %v3118 = vsel %vm215, %v3113, %v3117
      %v3119 = vshrl.u32 %v3092, 16
      %v3121 = vrot.slane %v3119, 4
      %v3122 = vor.u32 %v3121, %v3117
      %v3123 = vrot.slane %v3122, 4
      %v3125 = vshll.u32 %v3093, 16
      %v3127 = vrot.slane %v3125, 5
      %v3128 = vsel %vm215, %v3123, %v3127
      %v3129 = vshrl.u32 %v3093, 16
      %v3131 = vrot.slane %v3129, 4
      %v3132 = vor.u32 %v3131, %v3127
      %v3133 = vrot.slane %v3132, 4
      %v3135 = vshll.u32 %v3094, 16
      %v3137 = vrot.slane %v3135, 5
      %v3138 = vsel %vm215, %v3133, %v3137
      %3139 = vrot.lane.b32.xlu0 %v3108, 21
      %v3140 = vpop.permute.xlu0 %3139
      %3141 = vrot.lane.b32.xlu0 %v3118, 21
      %v3142 = vpop.permute.xlu0 %3141
      %3143 = vrot.lane.b32.xlu0 %v3128, 21
      %v3144 = vpop.permute.xlu0 %3143
      %3145 = vrot.lane.b32.xlu0 %v3138, 21
      %v3146 = vpop.permute.xlu0 %3145
      %3151 = vst.msk [vmem:[#allocation2 + $0x70] sm:$0xf] %vm545, %v3140
      %3152 = vst.msk [vmem:[#allocation2 + $0x74] sm:$0xf] %vm545, %v3142
      %3153 = vst.msk [vmem:[#allocation2 + $0x78] sm:$0xf] %vm545, %v3144
      %3154 = vst.msk [vmem:[#allocation2 + $0x7c] sm:$0xf] %vm545, %v3146
      %v3155 = vld [vmem:[%s3065] sm:$0xe]
      %v3156 = vld [vmem:[%s3065 + $0x4] sm:$0xf]
      %v3157 = vld [vmem:[%s3065 + $0x8] sm:$0xf]
      %v3158 = vld [vmem:[%s3065 + $0xc] sm:$0xf]
      %v3159 = vld [vmem:[%s3065 + $0x10] sm:$0x1]
      %v3165 = vrot.slane %v3155, 5
      %v3166 = vrot.slane %v3165, 4
      %v3167 = vrot.slane %v3156, 5
      %v3168 = vsel %vm289, %v3166, %v3167
      %v3169 = vrot.slane %v3167, 4
      %v3170 = vrot.slane %v3157, 5
      %v3171 = vsel %vm289, %v3169, %v3170
      %v3172 = vrot.slane %v3170, 4
      %v3173 = vrot.slane %v3158, 5
      %v3174 = vsel %vm289, %v3172, %v3173
      %v3175 = vrot.slane %v3173, 4
      %v3176 = vrot.slane %v3159, 5
      %v3177 = vsel %vm289, %v3175, %v3176
      %3178 = vrot.lane.b32.xlu0 %v3168, 24
      %v3179 = vpop.permute.xlu0 %3178
      %3180 = vrot.lane.b32.xlu0 %v3171, 24
      %v3181 = vpop.permute.xlu0 %3180
      %3182 = vrot.lane.b32.xlu0 %v3174, 24
      %v3183 = vpop.permute.xlu0 %3182
      %3184 = vrot.lane.b32.xlu0 %v3177, 24
      %v3185 = vpop.permute.xlu0 %3184
      %3190 = vst.msk [vmem:[#allocation2 + $0x70] sm:$0xf] %vm585, %v3179
      %3191 = vst.msk [vmem:[#allocation2 + $0x74] sm:$0xf] %vm585, %v3181
      %3192 = vst.msk [vmem:[#allocation2 + $0x78] sm:$0xf] %vm585, %v3183
      %3193 = vst.msk [vmem:[#allocation2 + $0x7c] sm:$0xf] %vm585, %v3185
      %v3194 = vld [vmem:[#allocation2] sm:$0xf]
      %v3195 = vld [vmem:[#allocation2 + $0x4] sm:$0xf]
      %v3196 = vld [vmem:[#allocation2 + $0x8] sm:$0xf]
      %v3197 = vld [vmem:[#allocation2 + $0xc] sm:$0xf]
      %v3198 = vld [vmem:[#allocation2 + $0x10] sm:$0xf]
      %v3199 = vld [vmem:[#allocation2 + $0x14] sm:$0xf]
      %v3200 = vld [vmem:[#allocation2 + $0x18] sm:$0xf]
      %v3201 = vld [vmem:[#allocation2 + $0x1c] sm:$0xf]
      %v3202 = vld [vmem:[#allocation2 + $0x20] sm:$0xf]
      %v3203 = vld [vmem:[#allocation2 + $0x24] sm:$0xf]
      %v3204 = vld [vmem:[#allocation2 + $0x28] sm:$0xf]
      %v3205 = vld [vmem:[#allocation2 + $0x2c] sm:$0xf]
      %v3206 = vld [vmem:[#allocation2 + $0x30] sm:$0xf]
      %v3207 = vld [vmem:[#allocation2 + $0x34] sm:$0xf]
      %v3208 = vld [vmem:[#allocation2 + $0x38] sm:$0xf]
      %v3209 = vld [vmem:[#allocation2 + $0x3c] sm:$0xf]
      %v3210 = vld [vmem:[#allocation2 + $0x40] sm:$0xf]
      %v3211 = vld [vmem:[#allocation2 + $0x44] sm:$0xf]
      %v3212 = vld [vmem:[#allocation2 + $0x48] sm:$0xf]
      %v3213 = vld [vmem:[#allocation2 + $0x4c] sm:$0xf]
      %v3214 = vld [vmem:[#allocation2 + $0x50] sm:$0xf]
      %v3215 = vld [vmem:[#allocation2 + $0x54] sm:$0xf]
      %v3216 = vld [vmem:[#allocation2 + $0x58] sm:$0xf]
      %v3217 = vld [vmem:[#allocation2 + $0x5c] sm:$0xf]
      %v3218 = vld [vmem:[#allocation2 + $0x60] sm:$0xf]
      %v3219 = vld [vmem:[#allocation2 + $0x64] sm:$0xf]
      %v3220 = vld [vmem:[#allocation2 + $0x68] sm:$0xf]
      %v3221 = vld [vmem:[#allocation2 + $0x6c] sm:$0xf]
      %v3222 = vld [vmem:[#allocation2 + $0x70] sm:$0xf]
      %v3223 = vld [vmem:[#allocation2 + $0x74] sm:$0xf]
      %v3224 = vld [vmem:[#allocation2 + $0x78] sm:$0xf]
      %v3225 = vld [vmem:[#allocation2 + $0x7c] sm:$0xf]
      %v3226 = vld [vmem:[%s1] sm:$0xf]
      %v3227 = vld [vmem:[%s1 + $0x4] sm:$0xf]
      %v3228 = vld [vmem:[%s1 + $0x8] sm:$0xf]
      %v3229 = vld [vmem:[%s1 + $0xc] sm:$0x3]
      %v3230 = vld [vmem:[%s2] sm:$0x1]
      %v3232 = vlaneseq
      %v3233 = vshrl.u32 %v3232, 7
      %v3234 = vsub.s32 0, %v3233
      %v3235 = vrot.slane %v3230, %v3234
      %v3269 = vunpack.c.l.b16 %v3194
      %v3270 = vunpack.c.l.b16 %v3195
      %v3271 = vunpack.c.l.b16 %v3196
      %v3272 = vunpack.c.l.b16 %v3197
      %v3273 = vunpack.c.l.b16 %v3198
      %v3274 = vunpack.c.l.b16 %v3199
      %v3275 = vunpack.c.l.b16 %v3200
      %v3276 = vunpack.c.l.b16 %v3201
      %v3277 = vunpack.c.l.b16 %v3202
      %v3278 = vunpack.c.l.b16 %v3203
      %v3279 = vunpack.c.l.b16 %v3204
      %v3280 = vunpack.c.l.b16 %v3205
      %v3281 = vunpack.c.l.b16 %v3206
      %v3282 = vunpack.c.l.b16 %v3207
      %v3283 = vunpack.c.l.b16 %v3208
      %v3284 = vunpack.c.l.b16 %v3209
      %v3285 = vunpack.c.l.b16 %v3210
      %v3286 = vunpack.c.l.b16 %v3211
      %v3287 = vunpack.c.l.b16 %v3212
      %v3288 = vunpack.c.l.b16 %v3213
      %v3289 = vunpack.c.l.b16 %v3214
      %v3290 = vunpack.c.l.b16 %v3215
      %v3291 = vunpack.c.l.b16 %v3216
      %v3292 = vunpack.c.l.b16 %v3217
      %v3293 = vunpack.c.l.b16 %v3218
      %v3294 = vunpack.c.l.b16 %v3219
      %v3295 = vunpack.c.l.b16 %v3220
      %v3296 = vunpack.c.l.b16 %v3221
      %v3297 = vunpack.c.l.b16 %v3222
      %v3298 = vunpack.c.l.b16 %v3223
      %v3299 = vunpack.c.l.b16 %v3224
      %v3300 = vunpack.c.l.b16 %v3225
      %v3301 = vpack.c.b16 %v3270, %v3269
      %v3302 = vpack.c.b16 %v3272, %v3271
      %v3303 = vpack.c.b16 %v3274, %v3273
      %v3304 = vpack.c.b16 %v3276, %v3275
      %v3305 = vpack.c.b16 %v3278, %v3277
      %v3306 = vpack.c.b16 %v3280, %v3279
      %v3307 = vpack.c.b16 %v3282, %v3281
      %v3308 = vpack.c.b16 %v3284, %v3283
      %v3309 = vpack.c.b16 %v3286, %v3285
      %v3310 = vpack.c.b16 %v3288, %v3287
      %v3311 = vpack.c.b16 %v3290, %v3289
      %v3312 = vpack.c.b16 %v3292, %v3291
      %v3313 = vpack.c.b16 %v3294, %v3293
      %v3314 = vpack.c.b16 %v3296, %v3295
      %v3315 = vpack.c.b16 %v3298, %v3297
      %v3316 = vpack.c.b16 %v3300, %v3299
      %v3321 = vunpack.c.l.b16 %v3226
      %v3322 = vunpack.c.l.b16 %v3227
      %v3323 = vunpack.c.l.b16 %v3228
      %v3324 = vunpack.c.l.b16 %v3229
      %v3325 = vpack.c.b16 %v3322, %v3321
      %v3326 = vpack.c.b16 %v3324, %v3323
      %vm3328 = vcmask 220160
      %v3330 = vsel %vm3328, %v3301, 0
      %v3333 = vsel %vm3328, %v3302, 0
      %v3336 = vsel %vm3328, %v3303, 0
      %v3339 = vsel %vm3328, %v3304, 0
      %v3342 = vsel %vm3328, %v3305, 0
      %v3345 = vsel %vm3328, %v3306, 0
      %v3348 = vsel %vm3328, %v3307, 0
      %v3351 = vsel %vm3328, %v3308, 0
      %v3354 = vsel %vm3328, %v3309, 0
      %v3357 = vsel %vm3328, %v3310, 0
      %v3360 = vsel %vm3328, %v3311, 0
      %v3363 = vsel %vm3328, %v3312, 0
      %v3366 = vsel %vm3328, %v3313, 0
      %v3369 = vsel %vm3328, %v3314, 0
      %v3372 = vsel %vm3328, %v3315, 0
      %v3375 = vsel %vm3328, %v3316, 0
      %vm3377 = vcmask 1044480
      %vm3378 = vcmask 1045504
      %v3379 = vsel %vm3377, 4294967295, 65535
      %v3380 = vsel %vm3378, %v3379, 0
      %v3382 = vand.u32 %v3326, %v3380
      %3384 = vmatprep.subr.bf16.mxu0 0
      %3385 = vmatpush1.bf16.msra.mxu0 0
      %3386 = vmatprep.subr.bf16.mxu0 0
      %3387 = vmatpush1.bf16.msra.mxu0 0
      %3388 = vmatprep.subr.bf16.mxu0 0
      %3389 = vmatpush1.bf16.msra.mxu0 0
      %3390 = vmatprep.subr.bf16.mxu0 0
      %3391 = vmatpush1.bf16.msra.mxu0 0
      %3392 = vmatprep.subr.bf16.mxu0 0
      %3393 = vmatpush1.bf16.msra.mxu0 0
      %3394 = vmatprep.subr.bf16.mxu0 0
      %3395 = vmatpush1.bf16.msra.mxu0 0
      %3396 = vmatprep.subr.bf16.mxu0 0
      %3397 = vmatpush1.bf16.msra.mxu0 %v3382
      %3398 = vmatprep.subr.bf16.mxu0 0
      %3399 = vmatpush1.bf16.msra.mxu0 %v3325
      %3400 = vmatprep.subr.bf16.mxu0 0
      %3401 = vmatpush2.bf16.msra.mxu0 0
      %3402 = vmatprep.subr.bf16.mxu0 0
      %3403 = vmatpush2.bf16.msra.mxu0 0
      %3404 = vmatprep.subr.bf16.mxu0 0
      %3405 = vmatpush2.bf16.msra.mxu0 0
      %3406 = vmatprep.subr.bf16.mxu0 0
      %3407 = vmatpush2.bf16.msra.mxu0 0
      %3408 = vmatprep.subr.bf16.mxu0 0
      %3409 = vmatpush2.bf16.msra.mxu0 0
      %3410 = vmatprep.subr.bf16.mxu0 0
      %3411 = vmatpush2.bf16.msra.mxu0 0
      %3412 = vmatprep.subr.bf16.mxu0 0
      %3413 = vmatpush2.bf16.msra.mxu0 0
      %3414 = vmatprep.subr.bf16.mxu0 0
      %3415 = vmatpush2.bf16.msra.mxu0 0
      %3416 = vmatprep.mubr.bf16.mxu0 0
      %3417 = vmatmul.mubr.bf16.gmra.mxu0 %v3330
      %v3418 = vpop.f32.mrf.mxu0
      %v3419 = vadd.f32 %v3235, %v3418
      %v3420 = vpop.f32.mrf.mxu0
      %v3421 = vpop.f32.mrf.mxu0
      %v3422 = vadd.f32 %v3235, %v3421
      %v3423 = vpop.f32.mrf.mxu0
      %3424 = vmatprep.mubr.bf16.mxu0 0
      %3425 = vmatmul.mubr.bf16.gmra.mxu0 %v3333
      %v3426 = vpop.f32.mrf.mxu0
      %v3427 = vadd.f32 %v3235, %v3426
      %v3428 = vpop.f32.mrf.mxu0
      %v3429 = vpop.f32.mrf.mxu0
      %v3430 = vadd.f32 %v3235, %v3429
      %v3431 = vpop.f32.mrf.mxu0
      %3432 = vmatprep.mubr.bf16.mxu0 0
      %3433 = vmatmul.mubr.bf16.gmra.mxu0 %v3336
      %v3434 = vpop.f32.mrf.mxu0
      %v3435 = vadd.f32 %v3235, %v3434
      %v3436 = vpop.f32.mrf.mxu0
      %v3437 = vpop.f32.mrf.mxu0
      %v3438 = vadd.f32 %v3235, %v3437
      %v3439 = vpop.f32.mrf.mxu0
      %3440 = vmatprep.mubr.bf16.mxu0 0
      %3441 = vmatmul.mubr.bf16.gmra.mxu0 %v3339
      %v3442 = vpop.f32.mrf.mxu0
      %v3443 = vadd.f32 %v3235, %v3442
      %v3444 = vpop.f32.mrf.mxu0
      %v3445 = vpop.f32.mrf.mxu0
      %v3446 = vadd.f32 %v3235, %v3445
      %v3447 = vpop.f32.mrf.mxu0
      %3448 = vmatprep.mubr.bf16.mxu0 0
      %3449 = vmatmul.mubr.bf16.gmra.mxu0 %v3342
      %v3450 = vpop.f32.mrf.mxu0
      %v3451 = vadd.f32 %v3235, %v3450
      %v3452 = vpop.f32.mrf.mxu0
      %v3453 = vpop.f32.mrf.mxu0
      %v3454 = vadd.f32 %v3235, %v3453
      %v3455 = vpop.f32.mrf.mxu0
      %3456 = vmatprep.mubr.bf16.mxu0 0
      %3457 = vmatmul.mubr.bf16.gmra.mxu0 %v3345
      %v3458 = vpop.f32.mrf.mxu0
      %v3459 = vadd.f32 %v3235, %v3458
      %v3460 = vpop.f32.mrf.mxu0
      %v3461 = vpop.f32.mrf.mxu0
      %v3462 = vadd.f32 %v3235, %v3461
      %v3463 = vpop.f32.mrf.mxu0
      %3464 = vmatprep.mubr.bf16.mxu0 0
      %3465 = vmatmul.mubr.bf16.gmra.mxu0 %v3348
      %v3466 = vpop.f32.mrf.mxu0
      %v3467 = vadd.f32 %v3235, %v3466
      %v3468 = vpop.f32.mrf.mxu0
      %v3469 = vpop.f32.mrf.mxu0
      %v3470 = vadd.f32 %v3235, %v3469
      %v3471 = vpop.f32.mrf.mxu0
      %3472 = vmatprep.mubr.bf16.mxu0 0
      %3473 = vmatmul.mubr.bf16.gmra.mxu0 %v3351
      %v3474 = vpop.f32.mrf.mxu0
      %v3475 = vadd.f32 %v3235, %v3474
      %v3476 = vpop.f32.mrf.mxu0
      %v3477 = vpop.f32.mrf.mxu0
      %v3478 = vadd.f32 %v3235, %v3477
      %v3479 = vpop.f32.mrf.mxu0
      %3480 = vmatprep.mubr.bf16.mxu0 0
      %3481 = vmatmul.mubr.bf16.gmra.mxu0 %v3354
      %v3482 = vpop.f32.mrf.mxu0
      %v3483 = vadd.f32 %v3235, %v3482
      %v3484 = vpop.f32.mrf.mxu0
      %v3485 = vpop.f32.mrf.mxu0
      %v3486 = vadd.f32 %v3235, %v3485
      %v3487 = vpop.f32.mrf.mxu0
      %3488 = vmatprep.mubr.bf16.mxu0 0
      %3489 = vmatmul.mubr.bf16.gmra.mxu0 %v3357
      %v3490 = vpop.f32.mrf.mxu0
      %v3491 = vadd.f32 %v3235, %v3490
      %v3492 = vpop.f32.mrf.mxu0
      %v3493 = vpop.f32.mrf.mxu0
      %v3494 = vadd.f32 %v3235, %v3493
      %v3495 = vpop.f32.mrf.mxu0
      %3496 = vmatprep.mubr.bf16.mxu0 0
      %3497 = vmatmul.mubr.bf16.gmra.mxu0 %v3360
      %v3498 = vpop.f32.mrf.mxu0
      %v3499 = vadd.f32 %v3235, %v3498
      %v3500 = vpop.f32.mrf.mxu0
      %v3501 = vpop.f32.mrf.mxu0
      %v3502 = vadd.f32 %v3235, %v3501
      %v3503 = vpop.f32.mrf.mxu0
      %3504 = vmatprep.mubr.bf16.mxu0 0
      %3505 = vmatmul.mubr.bf16.gmra.mxu0 %v3363
      %v3506 = vpop.f32.mrf.mxu0
      %v3507 = vadd.f32 %v3235, %v3506
      %v3508 = vpop.f32.mrf.mxu0
      %v3509 = vpop.f32.mrf.mxu0
      %v3510 = vadd.f32 %v3235, %v3509
      %v3511 = vpop.f32.mrf.mxu0
      %3512 = vmatprep.mubr.bf16.mxu0 0
      %3513 = vmatmul.mubr.bf16.gmra.mxu0 %v3366
      %v3514 = vpop.f32.mrf.mxu0
      %v3515 = vadd.f32 %v3235, %v3514
      %v3516 = vpop.f32.mrf.mxu0
      %v3517 = vpop.f32.mrf.mxu0
      %v3518 = vadd.f32 %v3235, %v3517
      %v3519 = vpop.f32.mrf.mxu0
      %3520 = vmatprep.mubr.bf16.mxu0 0
      %3521 = vmatmul.mubr.bf16.gmra.mxu0 %v3369
      %v3522 = vpop.f32.mrf.mxu0
      %v3523 = vadd.f32 %v3235, %v3522
      %v3524 = vpop.f32.mrf.mxu0
      %v3525 = vpop.f32.mrf.mxu0
      %v3526 = vadd.f32 %v3235, %v3525
      %v3527 = vpop.f32.mrf.mxu0
      %3528 = vmatprep.mubr.bf16.mxu0 0
      %3529 = vmatmul.mubr.bf16.gmra.mxu0 %v3372
      %v3530 = vpop.f32.mrf.mxu0
      %v3531 = vadd.f32 %v3235, %v3530
      %v3532 = vpop.f32.mrf.mxu0
      %v3533 = vpop.f32.mrf.mxu0
      %v3534 = vadd.f32 %v3235, %v3533
      %v3535 = vpop.f32.mrf.mxu0
      %3536 = vmatprep.mubr.bf16.mxu0 0
      %3537 = vmatmul.mubr.bf16.gmra.mxu0 %v3375
      %v3538 = vpop.f32.mrf.mxu0
      %v3539 = vadd.f32 %v3235, %v3538
      %v3540 = vpop.f32.mrf.mxu0
      %v3541 = vpop.f32.mrf.mxu0
      %v3542 = vadd.f32 %v3235, %v3541
      %v3543 = vpop.f32.mrf.mxu0
      %3544 = vdwg.mxu0
      %v3545 = vmax.f32 %v3419, 0.0
      %v3546 = vmax.f32 %v3422, 0.0
      %v3547 = vmax.f32 %v3427, 0.0
      %v3548 = vmax.f32 %v3430, 0.0
      %v3549 = vmax.f32 %v3435, 0.0
      %v3550 = vmax.f32 %v3438, 0.0
      %v3551 = vmax.f32 %v3443, 0.0
      %v3552 = vmax.f32 %v3446, 0.0
      %v3553 = vmax.f32 %v3451, 0.0
      %v3554 = vmax.f32 %v3454, 0.0
      %v3555 = vmax.f32 %v3459, 0.0
      %v3556 = vmax.f32 %v3462, 0.0
      %v3557 = vmax.f32 %v3467, 0.0
      %v3558 = vmax.f32 %v3470, 0.0
      %v3559 = vmax.f32 %v3475, 0.0
      %v3560 = vmax.f32 %v3478, 0.0
      %v3561 = vmax.f32 %v3483, 0.0
      %v3562 = vmax.f32 %v3486, 0.0
      %v3563 = vmax.f32 %v3491, 0.0
      %v3564 = vmax.f32 %v3494, 0.0
      %v3565 = vmax.f32 %v3499, 0.0
      %v3566 = vmax.f32 %v3502, 0.0
      %v3567 = vmax.f32 %v3507, 0.0
      %v3568 = vmax.f32 %v3510, 0.0
      %v3569 = vmax.f32 %v3515, 0.0
      %v3570 = vmax.f32 %v3518, 0.0
      %v3571 = vmax.f32 %v3523, 0.0
      %v3572 = vmax.f32 %v3526, 0.0
      %v3573 = vmax.f32 %v3531, 0.0
      %v3574 = vmax.f32 %v3534, 0.0
      %v3575 = vmax.f32 %v3539, 0.0
      %v3576 = vmax.f32 %v3542, 0.0
      %v3577 = vpack.c.bf16 %v3546, %v3545
      %v3578 = vpack.c.bf16 %v3548, %v3547
      %v3579 = vpack.c.bf16 %v3550, %v3549
      %v3580 = vpack.c.bf16 %v3552, %v3551
      %v3581 = vpack.c.bf16 %v3554, %v3553
      %v3582 = vpack.c.bf16 %v3556, %v3555
      %v3583 = vpack.c.bf16 %v3558, %v3557
      %v3584 = vpack.c.bf16 %v3560, %v3559
      %v3585 = vpack.c.bf16 %v3562, %v3561
      %v3586 = vpack.c.bf16 %v3564, %v3563
      %v3587 = vpack.c.bf16 %v3566, %v3565
      %v3588 = vpack.c.bf16 %v3568, %v3567
      %v3589 = vpack.c.bf16 %v3570, %v3569
      %v3590 = vpack.c.bf16 %v3572, %v3571
      %v3591 = vpack.c.bf16 %v3574, %v3573
      %v3592 = vpack.c.bf16 %v3576, %v3575
      %v3609 = vunpack.c.l.b16 %v3577
      %v3610 = vunpack.c.h.b16 %v3577
      %v3611 = vunpack.c.l.b16 %v3578
      %v3612 = vunpack.c.h.b16 %v3578
      %v3613 = vunpack.c.l.b16 %v3579
      %v3614 = vunpack.c.h.b16 %v3579
      %v3615 = vunpack.c.l.b16 %v3580
      %v3616 = vunpack.c.h.b16 %v3580
      %v3617 = vunpack.c.l.b16 %v3581
      %v3618 = vunpack.c.h.b16 %v3581
      %v3619 = vunpack.c.l.b16 %v3582
      %v3620 = vunpack.c.h.b16 %v3582
      %v3621 = vunpack.c.l.b16 %v3583
      %v3622 = vunpack.c.h.b16 %v3583
      %v3623 = vunpack.c.l.b16 %v3584
      %v3624 = vunpack.c.h.b16 %v3584
      %v3625 = vunpack.c.l.b16 %v3585
      %v3626 = vunpack.c.h.b16 %v3585
      %v3627 = vunpack.c.l.b16 %v3586
      %v3628 = vunpack.c.h.b16 %v3586
      %v3629 = vunpack.c.l.b16 %v3587
      %v3630 = vunpack.c.h.b16 %v3587
      %v3631 = vunpack.c.l.b16 %v3588
      %v3632 = vunpack.c.h.b16 %v3588
      %v3633 = vunpack.c.l.b16 %v3589
      %v3634 = vunpack.c.h.b16 %v3589
      %v3635 = vunpack.c.l.b16 %v3590
      %v3636 = vunpack.c.h.b16 %v3590
      %v3637 = vunpack.c.l.b16 %v3591
      %v3638 = vunpack.c.h.b16 %v3591
      %v3639 = vunpack.c.l.b16 %v3592
      %v3640 = vunpack.c.h.b16 %v3592
      %v3641 = vpack.c.b16 %v3609, %v3609
      %v3642 = vpack.c.b16 %v3610, %v3610
      %v3643 = vpack.c.b16 %v3611, %v3611
      %v3644 = vpack.c.b16 %v3612, %v3612
      %v3645 = vpack.c.b16 %v3613, %v3613
      %v3646 = vpack.c.b16 %v3614, %v3614
      %v3647 = vpack.c.b16 %v3615, %v3615
      %v3648 = vpack.c.b16 %v3616, %v3616
      %v3649 = vpack.c.b16 %v3617, %v3617
      %v3650 = vpack.c.b16 %v3618, %v3618
      %v3651 = vpack.c.b16 %v3619, %v3619
      %v3652 = vpack.c.b16 %v3620, %v3620
      %v3653 = vpack.c.b16 %v3621, %v3621
      %v3654 = vpack.c.b16 %v3622, %v3622
      %v3655 = vpack.c.b16 %v3623, %v3623
      %v3656 = vpack.c.b16 %v3624, %v3624
      %v3657 = vpack.c.b16 %v3625, %v3625
      %v3658 = vpack.c.b16 %v3626, %v3626
      %v3659 = vpack.c.b16 %v3627, %v3627
      %v3660 = vpack.c.b16 %v3628, %v3628
      %v3661 = vpack.c.b16 %v3629, %v3629
      %v3662 = vpack.c.b16 %v3630, %v3630
      %v3663 = vpack.c.b16 %v3631, %v3631
      %v3664 = vpack.c.b16 %v3632, %v3632
      %v3665 = vpack.c.b16 %v3633, %v3633
      %v3666 = vpack.c.b16 %v3634, %v3634
      %v3667 = vpack.c.b16 %v3635, %v3635
      %v3668 = vpack.c.b16 %v3636, %v3636
      %v3669 = vpack.c.b16 %v3637, %v3637
      %v3670 = vpack.c.b16 %v3638, %v3638
      %v3671 = vpack.c.b16 %v3639, %v3639
      %v3672 = vpack.c.b16 %v3640, %v3640
      %vm3705 = vcmask 519168
      %3706 = vst.msk [vmem:[%s192] sm:$0xf] %vm3705, %v3641
      %3707 = vst.msk [vmem:[%s192 + $0x4] sm:$0xf] %vm3705, %v3642
      %3708 = vst.msk [vmem:[%s192 + $0x8] sm:$0xf] %vm3705, %v3643
      %3709 = vst.msk [vmem:[%s192 + $0xc] sm:$0xf] %vm3705, %v3644
      %3710 = vst.msk [vmem:[%s192 + $0x10] sm:$0xf] %vm3705, %v3645
      %3711 = vst.msk [vmem:[%s192 + $0x14] sm:$0xf] %vm3705, %v3646
      %3712 = vst.msk [vmem:[%s192 + $0x18] sm:$0xf] %vm3705, %v3647
      %3713 = vst.msk [vmem:[%s192 + $0x1c] sm:$0xf] %vm3705, %v3648
      %3714 = vst.msk [vmem:[%s192 + $0x20] sm:$0xf] %vm3705, %v3649
      %3715 = vst.msk [vmem:[%s192 + $0x24] sm:$0xf] %vm3705, %v3650
      %3716 = vst.msk [vmem:[%s192 + $0x28] sm:$0xf] %vm3705, %v3651
      %3717 = vst.msk [vmem:[%s192 + $0x2c] sm:$0xf] %vm3705, %v3652
      %3718 = vst.msk [vmem:[%s192 + $0x30] sm:$0xf] %vm3705, %v3653
      %3719 = vst.msk [vmem:[%s192 + $0x34] sm:$0xf] %vm3705, %v3654
      %3720 = vst.msk [vmem:[%s192 + $0x38] sm:$0xf] %vm3705, %v3655
      %3721 = vst.msk [vmem:[%s192 + $0x3c] sm:$0xf] %vm3705, %v3656
      %3722 = vst.msk [vmem:[%s192 + $0x40] sm:$0xf] %vm3705, %v3657
      %3723 = vst.msk [vmem:[%s192 + $0x44] sm:$0xf] %vm3705, %v3658
      %3724 = vst.msk [vmem:[%s192 + $0x48] sm:$0xf] %vm3705, %v3659
      %3725 = vst.msk [vmem:[%s192 + $0x4c] sm:$0xf] %vm3705, %v3660
      %3726 = vst.msk [vmem:[%s192 + $0x50] sm:$0xf] %vm3705, %v3661
      %3727 = vst.msk [vmem:[%s192 + $0x54] sm:$0xf] %vm3705, %v3662
      %3728 = vst.msk [vmem:[%s192 + $0x58] sm:$0xf] %vm3705, %v3663
      %3729 = vst.msk [vmem:[%s192 + $0x5c] sm:$0xf] %vm3705, %v3664
      %3730 = vst.msk [vmem:[%s192 + $0x60] sm:$0xf] %vm3705, %v3665
      %3731 = vst.msk [vmem:[%s192 + $0x64] sm:$0xf] %vm3705, %v3666
      %3732 = vst.msk [vmem:[%s192 + $0x68] sm:$0xf] %vm3705, %v3667
      %3733 = vst.msk [vmem:[%s192 + $0x6c] sm:$0xf] %vm3705, %v3668
      %3734 = vst.msk [vmem:[%s192 + $0x70] sm:$0xf] %vm3705, %v3669
      %3735 = vst.msk [vmem:[%s192 + $0x74] sm:$0xf] %vm3705, %v3670
      %3736 = vst.msk [vmem:[%s192 + $0x78] sm:$0xf] %vm3705, %v3671
      %3737 = vst.msk [vmem:[%s192 + $0x7c] sm:$0xf] %vm3705, %v3672
      %s3738 = smul.u32 32, %s19
      %p3739 = scmp.lt.s32.totalorder %s18, 1
      %s3740 = scalar_select %p3739, %s18, 1
      %p3741 = scmp.lt.s32.totalorder %s3738, 127
      %s3742 = scalar_select %p3741, %s3738, 127
      %s3743 = smul.addr %s3740, 128
      %s3744 = sadd.s32 %s3742, %s3743
      %s3745 = smul.addr %s3744, 4
      %s3746 = scalar_lea.vmem %s3, %s3745
      // Predicated region
      $region33: #{tpu_custom_call.1} parent=31 // pred_check
        %p3747 = pneg %p114
      $region34: #{tpu_custom_call.1} parent=31 // pred_check_branch
        %3749 = sbr.rel (%p3747) target = $region36
      $region35: #{tpu_custom_call.1} parent=31 // pred_region
        %s3750 = smul.u32 32, %s19
      $region36: #{tpu_custom_call.1} parent=31 // pred_fallthru
        _
    $region32: #{tpu_custom_call.1} parent=5 // pred_fallthru
      _
    %p3751 = scmp.le.s32.totalorder 2, %s9
    // Predicated region
    $region37: #{tpu_custom_call.1} parent=5 // pred_check
      %p3752 = pneg %p3751
    $region38: #{tpu_custom_call.1} parent=5 // pred_check_branch
      %3754 = sbr.rel (%p3752) target = $region40
    $region39: #{tpu_custom_call.1} parent=5 // pred_region
      %s3755 = ssub.s32 %s9, 2
      // Predicated region
      $region41: #{tpu_custom_call.1} parent=39 // pred_check
        %p3756 = pneg %p120
      $region42: #{tpu_custom_call.1} parent=39 // pred_check_branch
        %3758 = sbr.rel (%p3756) target = $region44
      $region43: #{tpu_custom_call.1} parent=39 // pred_region
        %s3759 = smul.u32 32, %s21
        %p3760 = scmp.lt.s32.totalorder %s20, 1
        %s3761 = scalar_select %p3760, %s20, 1
        %p3762 = scmp.lt.s32.totalorder %s3759, 127
        %s3763 = scalar_select %p3762, %s3759, 127
        %s3764 = smul.addr %s3761, 128
        %s3765 = sadd.s32 %s3763, %s3764
        %s3766 = smul.addr %s3765, 4
        %s3767 = scalar_lea.vmem %s3, %s3766
      $region44: #{tpu_custom_call.1} parent=39 // pred_fallthru
        _
    $region40: #{tpu_custom_call.1} parent=5 // pred_fallthru
      _
  $region6: #{tpu_custom_call.1} parent=0 // loop_footer
    %s13 = sadd.s32 1, %s9
  $region7: #{tpu_custom_call.1} parent=0 // loop_footer_branch
    %8 = sbr.rel target = $region3
  $region8: #{tpu_custom_call.1} parent=0 // loop_exit
    _

</llo_original>
